<compile_context>
chip_gen: v6e
topology: v6e:2x2x1
jax: 0.10.0
libtpu: 0.0.40
codegen_flags: <defaults>
</compile_context>

<pallas_src>
import functools

import jax
import jax.numpy as jnp
from jax.experimental import pallas as pl
from jax.experimental.pallas import tpu as pltpu

LN_EPS = 1e-5  # PyTorch nn.LayerNorm default eps (elementwise_affine=False)


def _ln_relu(x):
    """LayerNorm (no affine, biased variance) followed by ReLU, in f32."""
    mu = jnp.mean(x, axis=-1, keepdims=True)
    xc = x - mu
    var = jnp.mean(xc * xc, axis=-1, keepdims=True)
    return jnp.maximum(xc * jax.lax.rsqrt(var + LN_EPS), 0.0)


def prodecoder_kernel(
    # batch-tiled inputs
    z_ref, eps_ref,
    # resident fused parameters (whole-array in VMEM)
    w1z_ref,        # (n_input, 3H+4P) bf16  [bk_w1|fo_w1|sg_w1|al_wz|be_wz|fs_wz|mx_wz]
    b1_ref,         # (1, 3H) f32
    w2_ref,         # (3H, 3H) bf16  block-diag(bk_w2, fo_w2, sg_w2)
    b2_ref,         # (1, 3H) f32
    wh_ref,         # (3H, 4P) bf16  block-diag([al_wh|be_wh], fs_wh, mx_wh)
    bh_ref,         # (1, 4P) f32    [al_b|be_b|fs_b|mx_b]
    # packed lane-dense output
    out_ref,        # (TB, 8P) f32
    *, n_hidden, n_prot,
):
    H, P = n_hidden, n_prot
    z_bf = z_ref[...].astype(jnp.bfloat16)
    eps = eps_ref[...]

    # ---- one z-side matmul: first layer of the 3 FCLayers stacks + all 4 z-side heads
    # TODO(synk): dropout(p=0.1) omitted — forward implemented in eval mode.
    y = jnp.dot(z_bf, w1z_ref[...], preferred_element_type=jnp.float32)      # (TB, 3H+4P)
    h1 = y[:, :3 * H] + b1_ref[...]                                          # (TB, 3H)
    hz = y[:, 3 * H:]                                                        # (TB, 4P)

    # per-branch LayerNorm + ReLU; 128-lane-aligned slices / concat are cheap relayouts
    h_cat = jnp.concatenate(
        [_ln_relu(h1[:, 0:H]), _ln_relu(h1[:, H:2 * H]), _ln_relu(h1[:, 2 * H:3 * H])],
        axis=-1)                                                             # (TB, 3H)

    # ---- one block-diagonal second-layer matmul for the 3 FCLayers stacks ----
    h2 = (jnp.dot(h_cat.astype(jnp.bfloat16), w2_ref[...],
                  preferred_element_type=jnp.float32) + b2_ref[...])         # (TB, 3H)
    h2_cat = jnp.concatenate(
        [_ln_relu(h2[:, 0:H]), _ln_relu(h2[:, H:2 * H]), _ln_relu(h2[:, 2 * H:3 * H])],
        axis=-1)                                  # [py_back | py_fore | p_mix] (TB, 3H)

    # ---- one block-diagonal head matmul; Linear(cat([h, z])) == h @ Wh + z @ Wz + b ----
    head = (jnp.dot(h2_cat.astype(jnp.bfloat16), wh_ref[...],
                    preferred_element_type=jnp.float32) + hz + bh_ref[...])  # (TB, 4P)

    back_alpha = head[:, 0:P]
    back_beta = jnp.exp(head[:, P:2 * P])
    # Normal(alpha, beta).rsample() == alpha + beta * eps, eps ~ N(0, 1)
    log_back_mean = back_alpha + back_beta * eps
    rate_back = jnp.exp(log_back_mean)

    fore_scale = jnp.maximum(head[:, 2 * P:3 * P], 0.0) + 1.0 + 1e-8
    rate_fore = rate_back * fore_scale

    mixing = head[:, 3 * P:4 * P]
    protein_mixing = jax.nn.sigmoid(mixing)
    unnorm = (1.0 - protein_mixing) * rate_fore
    # torch.nn.functional.normalize(x, p=1, dim=-1): x / clamp_min(||x||_1, 1e-12)
    denom = jnp.maximum(jnp.sum(jnp.abs(unnorm), axis=-1, keepdims=True), 1e-12)
    scale = unnorm / denom   # exact divide (not EUP-bound; parity with torch normalize)

    # single lane-dense store: [alpha | beta | rate_back | fore_scale |
    #                           rate_fore | mixing | scale | log_back_mean]
    out_ref[...] = jnp.concatenate(
        [back_alpha, back_beta, rate_back, fore_scale,
         rate_fore, mixing, scale, log_back_mean], axis=-1)


PARAM_ORDER = [
    "bk_w1", "bk_b1", "bk_w2", "bk_b2",
    "fo_w1", "fo_b1", "fo_w2", "fo_b2",
    "sg_w1", "sg_b1", "sg_w2", "sg_b2",
    "al_wh", "al_wz", "al_b",
    "be_wh", "be_wz", "be_b",
    "fs_wh", "fs_wz", "fs_b",
    "mx_wh", "mx_wz", "mx_b",
]


def init_params(key, n_input, n_hidden, n_prot):
    """Deterministic synthetic parameters (scaled normal init), f32."""
    params = {}
    keys = jax.random.split(key, len(PARAM_ORDER))

    def w(k, shape):
        fan_in = shape[0]
        return jax.random.normal(k, shape, jnp.float32) / jnp.sqrt(float(fan_in))

    shapes = {
        "bk_w1": (n_input, n_hidden), "bk_b1": (1, n_hidden),
        "bk_w2": (n_hidden, n_hidden), "bk_b2": (1, n_hidden),
        "fo_w1": (n_input, n_hidden), "fo_b1": (1, n_hidden),
        "fo_w2": (n_hidden, n_hidden), "fo_b2": (1, n_hidden),
        "sg_w1": (n_input, n_hidden), "sg_b1": (1, n_hidden),
        "sg_w2": (n_hidden, n_hidden), "sg_b2": (1, n_hidden),
        "al_wh": (n_hidden, n_prot), "al_wz": (n_input, n_prot), "al_b": (1, n_prot),
        "be_wh": (n_hidden, n_prot), "be_wz": (n_input, n_prot), "be_b": (1, n_prot),
        "fs_wh": (n_hidden, n_prot), "fs_wz": (n_input, n_prot), "fs_b": (1, n_prot),
        "mx_wh": (n_hidden, n_prot), "mx_wz": (n_input, n_prot), "mx_b": (1, n_prot),
    }
    for name, k in zip(PARAM_ORDER, keys):
        shp = shapes[name]
        if name.endswith("_b") or name.endswith("b1") or name.endswith("b2"):
            params[name] = 0.01 * jax.random.normal(k, shp, jnp.float32)
        else:
            params[name] = w(k, shp)
    return params


def _block_diag(blocks):
    rows = sum(b.shape[0] for b in blocks)
    cols = sum(b.shape[1] for b in blocks)
    out = jnp.zeros((rows, cols), blocks[0].dtype)
    r = c = 0
    for b in blocks:
        out = out.at[r:r + b.shape[0], c:c + b.shape[1]].set(b)
        r += b.shape[0]
        c += b.shape[1]
    return out


def _fuse_params(params):
    """Fuse per-branch weights into 3 lane-dense matmul groups (z-side / 2nd layer / heads)."""
    w1z = jnp.concatenate(
        [params["bk_w1"], params["fo_w1"], params["sg_w1"],
         params["al_wz"], params["be_wz"], params["fs_wz"], params["mx_wz"]],
        axis=-1).astype(jnp.bfloat16)                                 # (n_input, 3H+4P)
    b1 = jnp.concatenate(
        [params["bk_b1"], params["fo_b1"], params["sg_b1"]], axis=-1)
    w2_bd = _block_diag(
        [params["bk_w2"], params["fo_w2"], params["sg_w2"]]).astype(jnp.bfloat16)
    b2 = jnp.concatenate(
        [params["bk_b2"], params["fo_b2"], params["sg_b2"]], axis=-1)
    wh_bd = _block_diag(
        [jnp.concatenate([params["al_wh"], params["be_wh"]], axis=-1),
         params["fs_wh"], params["mx_wh"]]).astype(jnp.bfloat16)      # (3H, 4P)
    bh = jnp.concatenate(
        [params["al_b"], params["be_b"], params["fs_b"], params["mx_b"]], axis=-1)
    return w1z, b1, w2_bd, b2, wh_bd, bh


def _pick_batch_tile(B, block_b):
    """Largest tile <= block_b, but keep >= 2 grid steps when B allows (v7x dual-TC)."""
    tb = max(8, min(block_b, B))
    if B >= 16 and pl.cdiv(B, tb) < 2:
        tb = pl.cdiv(B, 2)
    return max(8, ((tb + 7) // 8) * 8)   # sublane-aligned batch tile


def prodecoder_forward(z, eps, params, *, block_b=1024):
    B, n_input = z.shape
    P = eps.shape[-1]
    H = params["bk_w2"].shape[0]

    fused = _fuse_params(params)

    TB = _pick_batch_tile(B, block_b)
    B_pad = pl.cdiv(B, TB) * TB
    if B_pad != B:
        z_p = jnp.pad(z, ((0, B_pad - B), (0, 0)))
        eps_p = jnp.pad(eps, ((0, B_pad - B), (0, 0)))
    else:
        z_p, eps_p = z, eps

    inputs = (z_p, eps_p) + fused

    def resident(arr):
        nd = arr.ndim
        return pl.BlockSpec(arr.shape, lambda i, nd=nd: (0,) * nd)

    in_specs = [
        pl.BlockSpec((TB, n_input), lambda i: (i, 0)),   # z (batch-tiled)
        pl.BlockSpec((TB, P), lambda i: (i, 0)),         # eps (batch-tiled)
    ] + [resident(a) for a in fused]
    out_specs = pl.BlockSpec((TB, 8 * P), lambda i: (i, 0))

    # advisory cost + explicit scoped-VMEM budget (v5e defaults to only 16 MiB)
    flops = 2 * B_pad * (n_input * (3 * H + 4 * P) + (3 * H) * (3 * H) + (3 * H) * (4 * P))
    transcendentals = B_pad * (3 * P + 7)
    bytes_in = sum(int(a.size) * a.dtype.itemsize for a in inputs)
    bytes_out = B_pad * 8 * P * 4
    bytes_io = 2 * TB * 4 * (n_input + P + 8 * P)                # double-buffered tiles
    bytes_w = sum(int(a.size) * a.dtype.itemsize for a in fused)
    bytes_work = TB * 4 * 4 * (3 * H + 4 * P)                    # live f32 intermediates
    vmem_limit = int(min(64 * 1024 * 1024,
                         max(32 * 1024 * 1024,
                             2 * (bytes_io + bytes_w + bytes_work))))

    fn = pl.pallas_call(
        functools.partial(prodecoder_kernel, n_hidden=H, n_prot=P),
        out_shape=jax.ShapeDtypeStruct((B_pad, 8 * P), jnp.float32),
        grid=(B_pad // TB,),
        in_specs=in_specs,
        out_specs=out_specs,
        compiler_params=pltpu.CompilerParams(
            dimension_semantics=("parallel",),
            vmem_limit_bytes=vmem_limit),
        cost_estimate=pl.CostEstimate(
            flops=flops, transcendentals=transcendentals,
            bytes_accessed=bytes_in + bytes_out),
    )
    out = fn(*inputs)[:B]

    py_ = {
        "back_alpha": out[:, 0 * P:1 * P],
        "back_beta": out[:, 1 * P:2 * P],
        "rate_back": out[:, 2 * P:3 * P],
        "fore_scale": out[:, 3 * P:4 * P],
        "rate_fore": out[:, 4 * P:5 * P],
        "mixing": out[:, 5 * P:6 * P],
        "scale": out[:, 6 * P:7 * P],
    }
    log_pro_back_mean = out[:, 7 * P:8 * P]
    return py_, log_pro_back_mean


if __name__ == "__main__":
    # small but grid-exercising shapes: B=200 -> tile auto-clamped to 104 -> 2 grid steps
    B, N_INPUT, N_HIDDEN, N_PROT = 200, 32, 128, 16

    key = jax.random.PRNGKey(0)
    k_z, k_eps, k_params = jax.random.split(key, 3)

    z = jax.random.normal(k_z, (B, N_INPUT), jnp.float32)
    # reparameterization noise for Normal(alpha, beta).rsample()
    eps = jax.random.normal(k_eps, (B, N_PROT), jnp.float32)
    params = init_params(k_params, N_INPUT, N_HIDDEN, N_PROT)

    py_, log_pro_back_mean = prodecoder_forward(z, eps, params)
    jax.block_until_ready((py_, log_pro_back_mean))

    # light sanity checks
    assert py_["scale"].shape == (B, N_PROT)
    assert log_pro_back_mean.shape == (B, N_PROT)
    for v in py_.values():
        assert bool(jnp.all(jnp.isfinite(v)))
    # L1-normalized scale sums to ~1 per row (exact divide in kernel)
    assert bool(jnp.allclose(jnp.sum(py_["scale"], axis=-1), 1.0, atol=1e-4))
    # fore_scale >= 1 and rate_fore = rate_back * fore_scale
    assert bool(jnp.all(py_["fore_scale"] >= 1.0))
    assert bool(jnp.allclose(py_["rate_fore"],
                             py_["rate_back"] * py_["fore_scale"],
                             rtol=1e-4, atol=1e-5))

    print("KERNEL_OK")
</pallas_src>

<mosaic_0001>
module attributes {stable_mosaic.version = 11 : i64} {
  func.func @prodecoder_kernel(%arg0: i32, %arg1: memref<104x32xf32, #tpu.memory_space<vmem>>, %arg2: memref<104x16xf32, #tpu.memory_space<vmem>>, %arg3: memref<32x448xbf16, #tpu.memory_space<vmem>>, %arg4: memref<1x384xf32, #tpu.memory_space<vmem>>, %arg5: memref<384x384xbf16, #tpu.memory_space<vmem>>, %arg6: memref<1x384xf32, #tpu.memory_space<vmem>>, %arg7: memref<384x64xbf16, #tpu.memory_space<vmem>>, %arg8: memref<1x64xf32, #tpu.memory_space<vmem>>, %arg9: memref<104x128xf32, #tpu.memory_space<vmem>>) attributes {dimension_semantics = [#tpu.dimension_semantics<parallel>], iteration_bounds = array<i64: 2>, scalar_prefetch = 0 : i64, scratch_operands = 0 : i64, tpu.core_type = #tpu.core_type<tc>, window_params = [{transform_indices = @transform_0, window_bounds = array<i64: 104, 32>}, {transform_indices = @transform_1, window_bounds = array<i64: 104, 16>}, {pipeline_mode = #tpu.pipeline_mode<synchronous>, transform_indices = @transform_2, window_bounds = array<i64: 32, 448>}, {pipeline_mode = #tpu.pipeline_mode<synchronous>, transform_indices = @transform_3, window_bounds = array<i64: 1, 384>}, {pipeline_mode = #tpu.pipeline_mode<synchronous>, transform_indices = @transform_4, window_bounds = array<i64: 384, 384>}, {pipeline_mode = #tpu.pipeline_mode<synchronous>, transform_indices = @transform_5, window_bounds = array<i64: 1, 384>}, {pipeline_mode = #tpu.pipeline_mode<synchronous>, transform_indices = @transform_6, window_bounds = array<i64: 384, 64>}, {pipeline_mode = #tpu.pipeline_mode<synchronous>, transform_indices = @transform_7, window_bounds = array<i64: 1, 64>}, {transform_indices = @transform_8, window_bounds = array<i64: 104, 128>}]} {
    %c0 = arith.constant 0 : index
    %c0_0 = arith.constant 0 : index
    %0 = vector.load %arg1[%c0, %c0_0] : memref<104x32xf32, #tpu.memory_space<vmem>>, vector<104x32xf32>
    %1 = arith.truncf %0 : vector<104x32xf32> to vector<104x32xbf16>
    %c0_1 = arith.constant 0 : index
    %c0_2 = arith.constant 0 : index
    %2 = vector.load %arg2[%c0_1, %c0_2] : memref<104x16xf32, #tpu.memory_space<vmem>>, vector<104x16xf32>
    %c0_3 = arith.constant 0 : index
    %c0_4 = arith.constant 0 : index
    %3 = vector.load %arg3[%c0_3, %c0_4] : memref<32x448xbf16, #tpu.memory_space<vmem>>, vector<32x448xbf16>
    %cst = arith.constant dense<0.000000e+00> : vector<104x448xf32>
    %4 = tpu.matmul %1, %3, %cst {dimension_numbers = #tpu.dot_dimension_numbers<[1], [0], [0], [1], [0, 0, 1, 1], [], []>} : vector<104x32xbf16>, vector<32x448xbf16>, vector<104x448xf32> -> vector<104x448xf32>
    %5 = vector.extract_strided_slice %4 {offsets = [0, 0], sizes = [104, 384], strides = [1, 1]} : vector<104x448xf32> to vector<104x384xf32>
    %c0_5 = arith.constant 0 : index
    %c0_6 = arith.constant 0 : index
    %6 = vector.load %arg4[%c0_5, %c0_6] : memref<1x384xf32, #tpu.memory_space<vmem>>, vector<1x384xf32>
    %7 = vector.broadcast %6 : vector<1x384xf32> to vector<104x384xf32>
    %8 = arith.addf %5, %7 : vector<104x384xf32>
    %9 = vector.extract_strided_slice %4 {offsets = [0, 384], sizes = [104, 64], strides = [1, 1]} : vector<104x448xf32> to vector<104x64xf32>
    %10 = vector.extract_strided_slice %8 {offsets = [0, 0], sizes = [104, 128], strides = [1, 1]} : vector<104x384xf32> to vector<104x128xf32>
    %cst_7 = arith.constant dense<0.000000e+00> : vector<104xf32>
    %11 = vector.multi_reduction <add>, %10, %cst_7 [1] : vector<104x128xf32> to vector<104xf32>
    %12 = vector.shape_cast %11 : vector<104xf32> to vector<104x1xf32>
    %cst_8 = arith.constant 1.280000e+02 : f32
    %13 = vector.broadcast %cst_8 : f32 to vector<104x1xf32>
    %14 = arith.divf %12, %13 : vector<104x1xf32>
    %15 = vector.broadcast %14 : vector<104x1xf32> to vector<104x128xf32>
    %16 = arith.subf %10, %15 : vector<104x128xf32>
    %17 = arith.mulf %16, %16 : vector<104x128xf32>
    %cst_9 = arith.constant dense<0.000000e+00> : vector<104xf32>
    %18 = vector.multi_reduction <add>, %17, %cst_9 [1] : vector<104x128xf32> to vector<104xf32>
    %19 = vector.shape_cast %18 : vector<104xf32> to vector<104x1xf32>
    %cst_10 = arith.constant 1.280000e+02 : f32
    %20 = vector.broadcast %cst_10 : f32 to vector<104x1xf32>
    %21 = arith.divf %19, %20 : vector<104x1xf32>
    %cst_11 = arith.constant 9.99999974E-6 : f32
    %22 = vector.broadcast %cst_11 : f32 to vector<104x1xf32>
    %23 = arith.addf %21, %22 : vector<104x1xf32>
    %24 = math.rsqrt %23 : vector<104x1xf32>
    %25 = vector.broadcast %24 : vector<104x1xf32> to vector<104x128xf32>
    %26 = arith.mulf %16, %25 : vector<104x128xf32>
    %cst_12 = arith.constant 0.000000e+00 : f32
    %27 = vector.broadcast %cst_12 : f32 to vector<104x128xf32>
    %28 = arith.maximumf %26, %27 : vector<104x128xf32>
    %29 = vector.extract_strided_slice %8 {offsets = [0, 128], sizes = [104, 128], strides = [1, 1]} : vector<104x384xf32> to vector<104x128xf32>
    %cst_13 = arith.constant dense<0.000000e+00> : vector<104xf32>
    %30 = vector.multi_reduction <add>, %29, %cst_13 [1] : vector<104x128xf32> to vector<104xf32>
    %31 = vector.shape_cast %30 : vector<104xf32> to vector<104x1xf32>
    %cst_14 = arith.constant 1.280000e+02 : f32
    %32 = vector.broadcast %cst_14 : f32 to vector<104x1xf32>
    %33 = arith.divf %31, %32 : vector<104x1xf32>
    %34 = vector.broadcast %33 : vector<104x1xf32> to vector<104x128xf32>
    %35 = arith.subf %29, %34 : vector<104x128xf32>
    %36 = arith.mulf %35, %35 : vector<104x128xf32>
    %cst_15 = arith.constant dense<0.000000e+00> : vector<104xf32>
    %37 = vector.multi_reduction <add>, %36, %cst_15 [1] : vector<104x128xf32> to vector<104xf32>
    %38 = vector.shape_cast %37 : vector<104xf32> to vector<104x1xf32>
    %cst_16 = arith.constant 1.280000e+02 : f32
    %39 = vector.broadcast %cst_16 : f32 to vector<104x1xf32>
    %40 = arith.divf %38, %39 : vector<104x1xf32>
    %cst_17 = arith.constant 9.99999974E-6 : f32
    %41 = vector.broadcast %cst_17 : f32 to vector<104x1xf32>
    %42 = arith.addf %40, %41 : vector<104x1xf32>
    %43 = math.rsqrt %42 : vector<104x1xf32>
    %44 = vector.broadcast %43 : vector<104x1xf32> to vector<104x128xf32>
    %45 = arith.mulf %35, %44 : vector<104x128xf32>
    %cst_18 = arith.constant 0.000000e+00 : f32
    %46 = vector.broadcast %cst_18 : f32 to vector<104x128xf32>
    %47 = arith.maximumf %45, %46 : vector<104x128xf32>
    %48 = vector.extract_strided_slice %8 {offsets = [0, 256], sizes = [104, 128], strides = [1, 1]} : vector<104x384xf32> to vector<104x128xf32>
    %cst_19 = arith.constant dense<0.000000e+00> : vector<104xf32>
    %49 = vector.multi_reduction <add>, %48, %cst_19 [1] : vector<104x128xf32> to vector<104xf32>
    %50 = vector.shape_cast %49 : vector<104xf32> to vector<104x1xf32>
    %cst_20 = arith.constant 1.280000e+02 : f32
    %51 = vector.broadcast %cst_20 : f32 to vector<104x1xf32>
    %52 = arith.divf %50, %51 : vector<104x1xf32>
    %53 = vector.broadcast %52 : vector<104x1xf32> to vector<104x128xf32>
    %54 = arith.subf %48, %53 : vector<104x128xf32>
    %55 = arith.mulf %54, %54 : vector<104x128xf32>
    %cst_21 = arith.constant dense<0.000000e+00> : vector<104xf32>
    %56 = vector.multi_reduction <add>, %55, %cst_21 [1] : vector<104x128xf32> to vector<104xf32>
    %57 = vector.shape_cast %56 : vector<104xf32> to vector<104x1xf32>
    %cst_22 = arith.constant 1.280000e+02 : f32
    %58 = vector.broadcast %cst_22 : f32 to vector<104x1xf32>
    %59 = arith.divf %57, %58 : vector<104x1xf32>
    %cst_23 = arith.constant 9.99999974E-6 : f32
    %60 = vector.broadcast %cst_23 : f32 to vector<104x1xf32>
    %61 = arith.addf %59, %60 : vector<104x1xf32>
    %62 = math.rsqrt %61 : vector<104x1xf32>
    %63 = vector.broadcast %62 : vector<104x1xf32> to vector<104x128xf32>
    %64 = arith.mulf %54, %63 : vector<104x128xf32>
    %cst_24 = arith.constant 0.000000e+00 : f32
    %65 = vector.broadcast %cst_24 : f32 to vector<104x128xf32>
    %66 = arith.maximumf %64, %65 : vector<104x128xf32>
    %67 = tpu.concatenate %28, %47, %66 in 1 : vector<104x128xf32>, vector<104x128xf32>, vector<104x128xf32> -> vector<104x384xf32>
    %68 = arith.truncf %67 : vector<104x384xf32> to vector<104x384xbf16>
    %c0_25 = arith.constant 0 : index
    %c0_26 = arith.constant 0 : index
    %69 = vector.load %arg5[%c0_25, %c0_26] : memref<384x384xbf16, #tpu.memory_space<vmem>>, vector<384x384xbf16>
    %cst_27 = arith.constant dense<0.000000e+00> : vector<104x384xf32>
    %70 = tpu.matmul %68, %69, %cst_27 {dimension_numbers = #tpu.dot_dimension_numbers<[1], [0], [0], [1], [0, 0, 1, 1], [], []>} : vector<104x384xbf16>, vector<384x384xbf16>, vector<104x384xf32> -> vector<104x384xf32>
    %c0_28 = arith.constant 0 : index
    %c0_29 = arith.constant 0 : index
    %71 = vector.load %arg6[%c0_28, %c0_29] : memref<1x384xf32, #tpu.memory_space<vmem>>, vector<1x384xf32>
    %72 = vector.broadcast %71 : vector<1x384xf32> to vector<104x384xf32>
    %73 = arith.addf %70, %72 : vector<104x384xf32>
    %74 = vector.extract_strided_slice %73 {offsets = [0, 0], sizes = [104, 128], strides = [1, 1]} : vector<104x384xf32> to vector<104x128xf32>
    %cst_30 = arith.constant dense<0.000000e+00> : vector<104xf32>
    %75 = vector.multi_reduction <add>, %74, %cst_30 [1] : vector<104x128xf32> to vector<104xf32>
    %76 = vector.shape_cast %75 : vector<104xf32> to vector<104x1xf32>
    %cst_31 = arith.constant 1.280000e+02 : f32
    %77 = vector.broadcast %cst_31 : f32 to vector<104x1xf32>
    %78 = arith.divf %76, %77 : vector<104x1xf32>
    %79 = vector.broadcast %78 : vector<104x1xf32> to vector<104x128xf32>
    %80 = arith.subf %74, %79 : vector<104x128xf32>
    %81 = arith.mulf %80, %80 : vector<104x128xf32>
    %cst_32 = arith.constant dense<0.000000e+00> : vector<104xf32>
    %82 = vector.multi_reduction <add>, %81, %cst_32 [1] : vector<104x128xf32> to vector<104xf32>
    %83 = vector.shape_cast %82 : vector<104xf32> to vector<104x1xf32>
    %cst_33 = arith.constant 1.280000e+02 : f32
    %84 = vector.broadcast %cst_33 : f32 to vector<104x1xf32>
    %85 = arith.divf %83, %84 : vector<104x1xf32>
    %cst_34 = arith.constant 9.99999974E-6 : f32
    %86 = vector.broadcast %cst_34 : f32 to vector<104x1xf32>
    %87 = arith.addf %85, %86 : vector<104x1xf32>
    %88 = math.rsqrt %87 : vector<104x1xf32>
    %89 = vector.broadcast %88 : vector<104x1xf32> to vector<104x128xf32>
    %90 = arith.mulf %80, %89 : vector<104x128xf32>
    %cst_35 = arith.constant 0.000000e+00 : f32
    %91 = vector.broadcast %cst_35 : f32 to vector<104x128xf32>
    %92 = arith.maximumf %90, %91 : vector<104x128xf32>
    %93 = vector.extract_strided_slice %73 {offsets = [0, 128], sizes = [104, 128], strides = [1, 1]} : vector<104x384xf32> to vector<104x128xf32>
    %cst_36 = arith.constant dense<0.000000e+00> : vector<104xf32>
    %94 = vector.multi_reduction <add>, %93, %cst_36 [1] : vector<104x128xf32> to vector<104xf32>
    %95 = vector.shape_cast %94 : vector<104xf32> to vector<104x1xf32>
    %cst_37 = arith.constant 1.280000e+02 : f32
    %96 = vector.broadcast %cst_37 : f32 to vector<104x1xf32>
    %97 = arith.divf %95, %96 : vector<104x1xf32>
    %98 = vector.broadcast %97 : vector<104x1xf32> to vector<104x128xf32>
    %99 = arith.subf %93, %98 : vector<104x128xf32>
    %100 = arith.mulf %99, %99 : vector<104x128xf32>
    %cst_38 = arith.constant dense<0.000000e+00> : vector<104xf32>
    %101 = vector.multi_reduction <add>, %100, %cst_38 [1] : vector<104x128xf32> to vector<104xf32>
    %102 = vector.shape_cast %101 : vector<104xf32> to vector<104x1xf32>
    %cst_39 = arith.constant 1.280000e+02 : f32
    %103 = vector.broadcast %cst_39 : f32 to vector<104x1xf32>
    %104 = arith.divf %102, %103 : vector<104x1xf32>
    %cst_40 = arith.constant 9.99999974E-6 : f32
    %105 = vector.broadcast %cst_40 : f32 to vector<104x1xf32>
    %106 = arith.addf %104, %105 : vector<104x1xf32>
    %107 = math.rsqrt %106 : vector<104x1xf32>
    %108 = vector.broadcast %107 : vector<104x1xf32> to vector<104x128xf32>
    %109 = arith.mulf %99, %108 : vector<104x128xf32>
    %cst_41 = arith.constant 0.000000e+00 : f32
    %110 = vector.broadcast %cst_41 : f32 to vector<104x128xf32>
    %111 = arith.maximumf %109, %110 : vector<104x128xf32>
    %112 = vector.extract_strided_slice %73 {offsets = [0, 256], sizes = [104, 128], strides = [1, 1]} : vector<104x384xf32> to vector<104x128xf32>
    %cst_42 = arith.constant dense<0.000000e+00> : vector<104xf32>
    %113 = vector.multi_reduction <add>, %112, %cst_42 [1] : vector<104x128xf32> to vector<104xf32>
    %114 = vector.shape_cast %113 : vector<104xf32> to vector<104x1xf32>
    %cst_43 = arith.constant 1.280000e+02 : f32
    %115 = vector.broadcast %cst_43 : f32 to vector<104x1xf32>
    %116 = arith.divf %114, %115 : vector<104x1xf32>
    %117 = vector.broadcast %116 : vector<104x1xf32> to vector<104x128xf32>
    %118 = arith.subf %112, %117 : vector<104x128xf32>
    %119 = arith.mulf %118, %118 : vector<104x128xf32>
    %cst_44 = arith.constant dense<0.000000e+00> : vector<104xf32>
    %120 = vector.multi_reduction <add>, %119, %cst_44 [1] : vector<104x128xf32> to vector<104xf32>
    %121 = vector.shape_cast %120 : vector<104xf32> to vector<104x1xf32>
    %cst_45 = arith.constant 1.280000e+02 : f32
    %122 = vector.broadcast %cst_45 : f32 to vector<104x1xf32>
    %123 = arith.divf %121, %122 : vector<104x1xf32>
    %cst_46 = arith.constant 9.99999974E-6 : f32
    %124 = vector.broadcast %cst_46 : f32 to vector<104x1xf32>
    %125 = arith.addf %123, %124 : vector<104x1xf32>
    %126 = math.rsqrt %125 : vector<104x1xf32>
    %127 = vector.broadcast %126 : vector<104x1xf32> to vector<104x128xf32>
    %128 = arith.mulf %118, %127 : vector<104x128xf32>
    %cst_47 = arith.constant 0.000000e+00 : f32
    %129 = vector.broadcast %cst_47 : f32 to vector<104x128xf32>
    %130 = arith.maximumf %128, %129 : vector<104x128xf32>
    %131 = tpu.concatenate %92, %111, %130 in 1 : vector<104x128xf32>, vector<104x128xf32>, vector<104x128xf32> -> vector<104x384xf32>
    %132 = arith.truncf %131 : vector<104x384xf32> to vector<104x384xbf16>
    %c0_48 = arith.constant 0 : index
    %c0_49 = arith.constant 0 : index
    %133 = vector.load %arg7[%c0_48, %c0_49] : memref<384x64xbf16, #tpu.memory_space<vmem>>, vector<384x64xbf16>
    %cst_50 = arith.constant dense<0.000000e+00> : vector<104x64xf32>
    %134 = tpu.matmul %132, %133, %cst_50 {dimension_numbers = #tpu.dot_dimension_numbers<[1], [0], [0], [1], [0, 0, 1, 1], [], []>} : vector<104x384xbf16>, vector<384x64xbf16>, vector<104x64xf32> -> vector<104x64xf32>
    %135 = arith.addf %134, %9 : vector<104x64xf32>
    %c0_51 = arith.constant 0 : index
    %c0_52 = arith.constant 0 : index
    %136 = vector.load %arg8[%c0_51, %c0_52] : memref<1x64xf32, #tpu.memory_space<vmem>>, vector<1x64xf32>
    %137 = vector.broadcast %136 : vector<1x64xf32> to vector<104x64xf32>
    %138 = arith.addf %135, %137 : vector<104x64xf32>
    %139 = vector.extract_strided_slice %138 {offsets = [0, 0], sizes = [104, 16], strides = [1, 1]} : vector<104x64xf32> to vector<104x16xf32>
    %140 = vector.extract_strided_slice %138 {offsets = [0, 16], sizes = [104, 16], strides = [1, 1]} : vector<104x64xf32> to vector<104x16xf32>
    %141 = math.exp %140 : vector<104x16xf32>
    %142 = arith.mulf %141, %2 : vector<104x16xf32>
    %143 = arith.addf %139, %142 : vector<104x16xf32>
    %144 = math.exp %143 : vector<104x16xf32>
    %145 = vector.extract_strided_slice %138 {offsets = [0, 32], sizes = [104, 16], strides = [1, 1]} : vector<104x64xf32> to vector<104x16xf32>
    %cst_53 = arith.constant 0.000000e+00 : f32
    %146 = vector.broadcast %cst_53 : f32 to vector<104x16xf32>
    %147 = arith.maximumf %145, %146 : vector<104x16xf32>
    %cst_54 = arith.constant 1.000000e+00 : f32
    %148 = vector.broadcast %cst_54 : f32 to vector<104x16xf32>
    %149 = arith.addf %147, %148 : vector<104x16xf32>
    %cst_55 = arith.constant 9.99999993E-9 : f32
    %150 = vector.broadcast %cst_55 : f32 to vector<104x16xf32>
    %151 = arith.addf %149, %150 : vector<104x16xf32>
    %152 = arith.mulf %144, %151 : vector<104x16xf32>
    %153 = vector.extract_strided_slice %138 {offsets = [0, 48], sizes = [104, 16], strides = [1, 1]} : vector<104x64xf32> to vector<104x16xf32>
    %154 = arith.negf %153 : vector<104x16xf32>
    %155 = math.exp %154 : vector<104x16xf32>
    %cst_56 = arith.constant 1.000000e+00 : f32
    %156 = vector.broadcast %cst_56 : f32 to vector<104x16xf32>
    %157 = arith.addf %156, %155 : vector<104x16xf32>
    %158 = arith.divf %156, %157 : vector<104x16xf32>
    %cst_57 = arith.constant 1.000000e+00 : f32
    %159 = vector.broadcast %cst_57 : f32 to vector<104x16xf32>
    %160 = arith.subf %159, %158 : vector<104x16xf32>
    %161 = arith.mulf %160, %152 : vector<104x16xf32>
    %162 = math.absf %161 : vector<104x16xf32>
    %cst_58 = arith.constant dense<0.000000e+00> : vector<104xf32>
    %163 = vector.multi_reduction <add>, %162, %cst_58 [1] : vector<104x16xf32> to vector<104xf32>
    %164 = vector.shape_cast %163 : vector<104xf32> to vector<104x1xf32>
    %cst_59 = arith.constant 9.99999996E-13 : f32
    %165 = vector.broadcast %cst_59 : f32 to vector<104x1xf32>
    %166 = arith.maximumf %164, %165 : vector<104x1xf32>
    %167 = vector.broadcast %166 : vector<104x1xf32> to vector<104x16xf32>
    %168 = arith.divf %161, %167 : vector<104x16xf32>
    %169 = tpu.concatenate %139, %141, %144, %151, %152, %153, %168, %143 in 1 : vector<104x16xf32>, vector<104x16xf32>, vector<104x16xf32>, vector<104x16xf32>, vector<104x16xf32>, vector<104x16xf32>, vector<104x16xf32>, vector<104x16xf32> -> vector<104x128xf32>
    %c0_60 = arith.constant 0 : index
    %c0_61 = arith.constant 0 : index
    %170 = vector.load %arg9[%c0_60, %c0_61] : memref<104x128xf32, #tpu.memory_space<vmem>>, vector<104x128xf32>
    tpu.vector_store %arg9[%c0_60, %c0_61], %169 {strides = array<i32>} : memref<104x128xf32, #tpu.memory_space<vmem>>, vector<104x128xf32>,
    return
  }
  func.func @transform_0(%arg0: i32) -> (i32, i32) {
    %c0_i32 = arith.constant 0 : i32
    %c0_i32_0 = arith.constant 0 : i32
    return %arg0, %c0_i32 : i32, i32
  }
  func.func @transform_1(%arg0: i32) -> (i32, i32) {
    %c0_i32 = arith.constant 0 : i32
    %c0_i32_0 = arith.constant 0 : i32
    return %arg0, %c0_i32 : i32, i32
  }
  func.func @transform_2(%arg0: i32) -> (i32, i32) {
    %c0_i32 = arith.constant 0 : i32
    %c0_i32_0 = arith.constant 0 : i32
    %c0_i32_1 = arith.constant 0 : i32
    return %c0_i32, %c0_i32_0 : i32, i32
  }
  func.func @transform_3(%arg0: i32) -> (i32, i32) {
    %c0_i32 = arith.constant 0 : i32
    %c0_i32_0 = arith.constant 0 : i32
    %c0_i32_1 = arith.constant 0 : i32
    return %c0_i32, %c0_i32_0 : i32, i32
  }
  func.func @transform_4(%arg0: i32) -> (i32, i32) {
    %c0_i32 = arith.constant 0 : i32
    %c0_i32_0 = arith.constant 0 : i32
    %c0_i32_1 = arith.constant 0 : i32
    return %c0_i32, %c0_i32_0 : i32, i32
  }
  func.func @transform_5(%arg0: i32) -> (i32, i32) {
    %c0_i32 = arith.constant 0 : i32
    %c0_i32_0 = arith.constant 0 : i32
    %c0_i32_1 = arith.constant 0 : i32
    return %c0_i32, %c0_i32_0 : i32, i32
  }
  func.func @transform_6(%arg0: i32) -> (i32, i32) {
    %c0_i32 = arith.constant 0 : i32
    %c0_i32_0 = arith.constant 0 : i32
    %c0_i32_1 = arith.constant 0 : i32
    return %c0_i32, %c0_i32_0 : i32, i32
  }
  func.func @transform_7(%arg0: i32) -> (i32, i32) {
    %c0_i32 = arith.constant 0 : i32
    %c0_i32_0 = arith.constant 0 : i32
    %c0_i32_1 = arith.constant 0 : i32
    return %c0_i32, %c0_i32_0 : i32, i32
  }
  func.func @transform_8(%arg0: i32) -> (i32, i32) {
    %c0_i32 = arith.constant 0 : i32
    %c0_i32_0 = arith.constant 0 : i32
    return %arg0, %c0_i32 : i32, i32
  }
}

</mosaic_0001>

<llo_original>
// kernel: tpu_custom_call.1
$region0: #{tpu_custom_call.1}
  #allocation0 [shape = 'u32[]', space=smem, size = 0x4, offset = 0x4, fixed_abs, tag = 'smem constant byte address 0x4 - core index']
  #allocation1 [shape = 'u32[144,128]{1,0:T(1,128)}', space=vmem, size = 0x12000, scoped, tag = 'internal scratch']
  %s0 = inlined_call_operand.vmem [shape: f32[208,32], index: 0, kind: input, shape index: {}]
  %s1 = inlined_call_operand.vmem [shape: f32[208,16], index: 1, kind: input, shape index: {}]
  %s2 = inlined_call_operand.vmem [shape: bf16[32,448], index: 2, kind: input, shape index: {}]
  %s3 = inlined_call_operand.vmem [shape: f32[1,384], index: 3, kind: input, shape index: {}]
  %s4 = inlined_call_operand.vmem [shape: bf16[384,384], index: 4, kind: input, shape index: {}]
  %s5 = inlined_call_operand.vmem [shape: f32[1,384], index: 5, kind: input, shape index: {}]
  %s6 = inlined_call_operand.vmem [shape: bf16[384,64], index: 6, kind: input, shape index: {}]
  %s7 = inlined_call_operand.vmem [shape: f32[1,64], index: 7, kind: input, shape index: {}]
  %s8 = inlined_call_operand.hbm [shape: f32[208,128], index: 8, kind: output, shape index: {}]
  %s9 = sld [smem:[#allocation0]]
  $region65: #{tpu_custom_call.1} parent=0
    _
  %s11 = ssub.s32 1, %s9
  %s12 = scalar_select 0, %s11, %s9
  $region1: #{tpu_custom_call.1} parent=0
    #allocation2 [shape = 'u8[106496]{0}', space=vmem, size = 0x1a000, scoped, tag = 'output window, operand 0']
    #allocation3 [shape = 's32[2]{0}', space=sflag, size = 0x8, scoped, tag = 'scoped memory for tpu_custom_call.1']
    %13 = vsyncpa [#allocation3], 0
    %s14 = scalar_lea.sflag [#allocation3], 1
    %15 = vsyncpa %s14, 0
    loop: start=0, step=1, limit=4
    $region2: #{tpu_custom_call.1} parent=1 // loop_pre_header
      _
    $region3: #{tpu_custom_call.1} parent=1 // loop_header
      %s17 = sphi 0, %s21
      %p18 = scmp.ge.s32.totalorder %s17, 4
      %s27 = sphi 0, %s29
      %s30 = sphi 0, %s27
      %s31 = sphi 0, %s30
      %s47 = sphi 0, %s31
      %s53 = sphi 0, %s55
      %s56 = sphi 0, %s53
      %s57 = sphi 0, %s56
      %s73 = sphi 0, %s57
      %s77 = sphi 0, %s77
      %s79 = sphi 0, %s77
      %s80 = sphi 0, %s79
      %s94 = sphi 0, %s80
      %s98 = sphi 0, %s98
      %s100 = sphi 0, %s98
      %s101 = sphi 0, %s100
      %s115 = sphi 0, %s101
      %s119 = sphi 0, %s119
      %s121 = sphi 0, %s119
      %s122 = sphi 0, %s121
      %s136 = sphi 0, %s122
      %s140 = sphi 0, %s140
      %s142 = sphi 0, %s140
      %s143 = sphi 0, %s142
      %s157 = sphi 0, %s143
      %s161 = sphi 0, %s161
      %s163 = sphi 0, %s161
      %s164 = sphi 0, %s163
      %s178 = sphi 0, %s164
      %s182 = sphi 0, %s182
      %s184 = sphi 0, %s182
      %s185 = sphi 0, %s184
      %s199 = sphi 0, %s185
      %s205 = sphi 0, %s207
      %s208 = sphi 0, %s205
      %s209 = sphi 0, %s208
      %s225 = sphi 0, %s209
    $region4: #{tpu_custom_call.1} parent=1 // loop_header_branch
      %20 = sbr.rel (%p18) target = $region8
    $region5: #{tpu_custom_call.1} parent=1 // loop_body
      %s22 = ssub.s32 %s17, 1
      %s23 = ssub.s32 %s17, 2
      %s24 = sadd.s32 %s17, 1
      %s25 = ssub.s32 %s17, %s24
      %p26 = scmp.eq.s32.totalorder %s25, 0
      %s28 = sadd.s32 %s27, 1
      %s29 = scalar_select %p26, %s27, %s28
      %p32 = pneg %p26
      %p33 = scmp.eq.s32.totalorder %s17, 1
      %p34 = por %p32, %p33
      %p35 = scmp.ne.s32.totalorder %s27, %s30
      %p36 = scmp.eq.s32.totalorder %s17, 0
      %p37 = por %p35, %p36
      %p38 = scmp.ne.s32.totalorder %s27, %s30
      %p39 = scmp.eq.s32.totalorder %s22, 1
      %p40 = por %p38, %p39
      %p41 = scmp.ne.s32.totalorder %s30, %s31
      %p42 = scmp.eq.s32.totalorder %s22, 0
      %p43 = por %p41, %p42
      %p44 = scmp.ne.s32.totalorder %s30, %s31
      %p45 = scmp.eq.s32.totalorder %s23, 1
      %p46 = por %p44, %p45
      %p48 = scmp.ne.s32.totalorder %s31, %s47
      %p49 = scmp.eq.s32.totalorder %s23, 0
      %p50 = por %p48, %p49
      %s51 = ssub.s32 %s17, %s24
      %p52 = scmp.eq.s32.totalorder %s51, 0
      %s54 = sadd.s32 %s53, 1
      %s55 = scalar_select %p52, %s53, %s54
      %p58 = pneg %p52
      %p59 = scmp.eq.s32.totalorder %s17, 1
      %p60 = por %p58, %p59
      %p61 = scmp.ne.s32.totalorder %s53, %s56
      %p62 = scmp.eq.s32.totalorder %s17, 0
      %p63 = por %p61, %p62
      %p64 = scmp.ne.s32.totalorder %s53, %s56
      %p65 = scmp.eq.s32.totalorder %s22, 1
      %p66 = por %p64, %p65
      %p67 = scmp.ne.s32.totalorder %s56, %s57
      %p68 = scmp.eq.s32.totalorder %s22, 0
      %p69 = por %p67, %p68
      %p70 = scmp.ne.s32.totalorder %s56, %s57
      %p71 = scmp.eq.s32.totalorder %s23, 1
      %p72 = por %p70, %p71
      %p74 = scmp.ne.s32.totalorder %s57, %s73
      %p75 = scmp.eq.s32.totalorder %s23, 0
      %p76 = por %p74, %p75
      %s78 = sadd.s32 %s77, 1
      %p81 = scmp.eq.s32.totalorder %s17, 1
      %p82 = scmp.ne.s32.totalorder %s77, %s79
      %p83 = scmp.eq.s32.totalorder %s17, 0
      %p84 = por %p82, %p83
      %p85 = scmp.ne.s32.totalorder %s77, %s79
      %p86 = scmp.eq.s32.totalorder %s22, 1
      %p87 = por %p85, %p86
      %p88 = scmp.ne.s32.totalorder %s79, %s80
      %p89 = scmp.eq.s32.totalorder %s22, 0
      %p90 = por %p88, %p89
      %p91 = scmp.ne.s32.totalorder %s79, %s80
      %p92 = scmp.eq.s32.totalorder %s23, 1
      %p93 = por %p91, %p92
      %p95 = scmp.ne.s32.totalorder %s80, %s94
      %p96 = scmp.eq.s32.totalorder %s23, 0
      %p97 = por %p95, %p96
      %s99 = sadd.s32 %s98, 1
      %p102 = scmp.eq.s32.totalorder %s17, 1
      %p103 = scmp.ne.s32.totalorder %s98, %s100
      %p104 = scmp.eq.s32.totalorder %s17, 0
      %p105 = por %p103, %p104
      %p106 = scmp.ne.s32.totalorder %s98, %s100
      %p107 = scmp.eq.s32.totalorder %s22, 1
      %p108 = por %p106, %p107
      %p109 = scmp.ne.s32.totalorder %s100, %s101
      %p110 = scmp.eq.s32.totalorder %s22, 0
      %p111 = por %p109, %p110
      %p112 = scmp.ne.s32.totalorder %s100, %s101
      %p113 = scmp.eq.s32.totalorder %s23, 1
      %p114 = por %p112, %p113
      %p116 = scmp.ne.s32.totalorder %s101, %s115
      %p117 = scmp.eq.s32.totalorder %s23, 0
      %p118 = por %p116, %p117
      %s120 = sadd.s32 %s119, 1
      %p123 = scmp.eq.s32.totalorder %s17, 1
      %p124 = scmp.ne.s32.totalorder %s119, %s121
      %p125 = scmp.eq.s32.totalorder %s17, 0
      %p126 = por %p124, %p125
      %p127 = scmp.ne.s32.totalorder %s119, %s121
      %p128 = scmp.eq.s32.totalorder %s22, 1
      %p129 = por %p127, %p128
      %p130 = scmp.ne.s32.totalorder %s121, %s122
      %p131 = scmp.eq.s32.totalorder %s22, 0
      %p132 = por %p130, %p131
      %p133 = scmp.ne.s32.totalorder %s121, %s122
      %p134 = scmp.eq.s32.totalorder %s23, 1
      %p135 = por %p133, %p134
      %p137 = scmp.ne.s32.totalorder %s122, %s136
      %p138 = scmp.eq.s32.totalorder %s23, 0
      %p139 = por %p137, %p138
      %s141 = sadd.s32 %s140, 1
      %p144 = scmp.eq.s32.totalorder %s17, 1
      %p145 = scmp.ne.s32.totalorder %s140, %s142
      %p146 = scmp.eq.s32.totalorder %s17, 0
      %p147 = por %p145, %p146
      %p148 = scmp.ne.s32.totalorder %s140, %s142
      %p149 = scmp.eq.s32.totalorder %s22, 1
      %p150 = por %p148, %p149
      %p151 = scmp.ne.s32.totalorder %s142, %s143
      %p152 = scmp.eq.s32.totalorder %s22, 0
      %p153 = por %p151, %p152
      %p154 = scmp.ne.s32.totalorder %s142, %s143
      %p155 = scmp.eq.s32.totalorder %s23, 1
      %p156 = por %p154, %p155
      %p158 = scmp.ne.s32.totalorder %s143, %s157
      %p159 = scmp.eq.s32.totalorder %s23, 0
      %p160 = por %p158, %p159
      %s162 = sadd.s32 %s161, 1
      %p165 = scmp.eq.s32.totalorder %s17, 1
      %p166 = scmp.ne.s32.totalorder %s161, %s163
      %p167 = scmp.eq.s32.totalorder %s17, 0
      %p168 = por %p166, %p167
      %p169 = scmp.ne.s32.totalorder %s161, %s163
      %p170 = scmp.eq.s32.totalorder %s22, 1
      %p171 = por %p169, %p170
      %p172 = scmp.ne.s32.totalorder %s163, %s164
      %p173 = scmp.eq.s32.totalorder %s22, 0
      %p174 = por %p172, %p173
      %p175 = scmp.ne.s32.totalorder %s163, %s164
      %p176 = scmp.eq.s32.totalorder %s23, 1
      %p177 = por %p175, %p176
      %p179 = scmp.ne.s32.totalorder %s164, %s178
      %p180 = scmp.eq.s32.totalorder %s23, 0
      %p181 = por %p179, %p180
      %s183 = sadd.s32 %s182, 1
      %p186 = scmp.eq.s32.totalorder %s17, 1
      %p187 = scmp.ne.s32.totalorder %s182, %s184
      %p188 = scmp.eq.s32.totalorder %s17, 0
      %p189 = por %p187, %p188
      %p190 = scmp.ne.s32.totalorder %s182, %s184
      %p191 = scmp.eq.s32.totalorder %s22, 1
      %p192 = por %p190, %p191
      %p193 = scmp.ne.s32.totalorder %s184, %s185
      %p194 = scmp.eq.s32.totalorder %s22, 0
      %p195 = por %p193, %p194
      %p196 = scmp.ne.s32.totalorder %s184, %s185
      %p197 = scmp.eq.s32.totalorder %s23, 1
      %p198 = por %p196, %p197
      %p200 = scmp.ne.s32.totalorder %s185, %s199
      %p201 = scmp.eq.s32.totalorder %s23, 0
      %p202 = por %p200, %p201
      %s203 = ssub.s32 %s17, %s24
      %p204 = scmp.eq.s32.totalorder %s203, 0
      %s206 = sadd.s32 %s205, 1
      %s207 = scalar_select %p204, %s205, %s206
      %p210 = pneg %p204
      %p211 = scmp.eq.s32.totalorder %s17, 1
      %p212 = por %p210, %p211
      %p213 = scmp.ne.s32.totalorder %s205, %s208
      %p214 = scmp.eq.s32.totalorder %s17, 0
      %p215 = por %p213, %p214
      %p216 = scmp.ne.s32.totalorder %s205, %s208
      %p217 = scmp.eq.s32.totalorder %s22, 1
      %p218 = por %p216, %p217
      %p219 = scmp.ne.s32.totalorder %s208, %s209
      %p220 = scmp.eq.s32.totalorder %s22, 0
      %p221 = por %p219, %p220
      %p222 = scmp.ne.s32.totalorder %s208, %s209
      %p223 = scmp.eq.s32.totalorder %s23, 1
      %p224 = por %p222, %p223
      %p226 = scmp.ne.s32.totalorder %s209, %s225
      %p227 = scmp.eq.s32.totalorder %s23, 0
      %p228 = por %p226, %p227
      %p229 = scmp.le.s32.totalorder 1, %s17
      %p230 = scmp.lt.s32.totalorder %s17, 3
      %p231 = pnand %p229, %p230
      %p232 = pneg %p231
      // Predicated region
      $region9: #{tpu_custom_call.1} parent=5 // pred_check
        _
      $region10: #{tpu_custom_call.1} parent=5 // pred_check_branch
        %234 = sbr.rel (%p231) target = $region12
      $region11: #{tpu_custom_call.1} parent=5 // pred_region
        %s235 = ssub.s32 %s17, 1
        // Predicated region
        $region13: #{tpu_custom_call.1} parent=11 // pred_check
          %p236 = pneg %p90
        $region14: #{tpu_custom_call.1} parent=11 // pred_check_branch
          %238 = sbr.rel (%p236) target = $region16
        $region15: #{tpu_custom_call.1} parent=11 // pred_region
          _
        $region16: #{tpu_custom_call.1} parent=11 // pred_fallthru
          _
        // Predicated region
        $region17: #{tpu_custom_call.1} parent=11 // pred_check
          %p239 = pneg %p111
        $region18: #{tpu_custom_call.1} parent=11 // pred_check_branch
          %241 = sbr.rel (%p239) target = $region20
        $region19: #{tpu_custom_call.1} parent=11 // pred_region
          _
        $region20: #{tpu_custom_call.1} parent=11 // pred_fallthru
          _
        // Predicated region
        $region21: #{tpu_custom_call.1} parent=11 // pred_check
          %p242 = pneg %p132
        $region22: #{tpu_custom_call.1} parent=11 // pred_check_branch
          %244 = sbr.rel (%p242) target = $region24
        $region23: #{tpu_custom_call.1} parent=11 // pred_region
          _
        $region24: #{tpu_custom_call.1} parent=11 // pred_fallthru
          _
        // Predicated region
        $region25: #{tpu_custom_call.1} parent=11 // pred_check
          %p245 = pneg %p153
        $region26: #{tpu_custom_call.1} parent=11 // pred_check_branch
          %247 = sbr.rel (%p245) target = $region28
        $region27: #{tpu_custom_call.1} parent=11 // pred_region
          _
        $region28: #{tpu_custom_call.1} parent=11 // pred_fallthru
          _
        // Predicated region
        $region29: #{tpu_custom_call.1} parent=11 // pred_check
          %p248 = pneg %p174
        $region30: #{tpu_custom_call.1} parent=11 // pred_check_branch
          %250 = sbr.rel (%p248) target = $region32
        $region31: #{tpu_custom_call.1} parent=11 // pred_region
          _
        $region32: #{tpu_custom_call.1} parent=11 // pred_fallthru
          _
        // Predicated region
        $region33: #{tpu_custom_call.1} parent=11 // pred_check
          %p251 = pneg %p195
        $region34: #{tpu_custom_call.1} parent=11 // pred_check_branch
          %253 = sbr.rel (%p251) target = $region36
        $region35: #{tpu_custom_call.1} parent=11 // pred_region
          _
        $region36: #{tpu_custom_call.1} parent=11 // pred_fallthru
          _
      $region12: #{tpu_custom_call.1} parent=5 // pred_fallthru
        _
      %p254 = scmp.lt.s32.totalorder %s17, 2
      // Predicated region
      $region37: #{tpu_custom_call.1} parent=5 // pred_check
        %p255 = pneg %p254
      $region38: #{tpu_custom_call.1} parent=5 // pred_check_branch
        %257 = sbr.rel (%p255) target = $region40
      $region39: #{tpu_custom_call.1} parent=5 // pred_region
        // Predicated region
        $region41: #{tpu_custom_call.1} parent=39 // pred_check
          %p258 = pneg %p37
        $region42: #{tpu_custom_call.1} parent=39 // pred_check_branch
          %260 = sbr.rel (%p258) target = $region44
        $region43: #{tpu_custom_call.1} parent=39 // pred_region
          %s261 = smul.u32 13, %s17
          %p262 = scmp.lt.s32.totalorder %s261, 25
          %s263 = scalar_select %p262, %s261, 25
          %s264 = smul.addr %s263, 8
          %s265 = scalar_lea.vmem %s0, %s264
          %s266 = smul.u32 13, %s17
        $region44: #{tpu_custom_call.1} parent=39 // pred_fallthru
          _
        // Predicated region
        $region45: #{tpu_custom_call.1} parent=39 // pred_check
          %p267 = pneg %p63
        $region46: #{tpu_custom_call.1} parent=39 // pred_check_branch
          %269 = sbr.rel (%p267) target = $region48
        $region47: #{tpu_custom_call.1} parent=39 // pred_region
          %s270 = smul.u32 13, %s17
          %p271 = scmp.lt.s32.totalorder %s270, 25
          %s272 = scalar_select %p271, %s270, 25
          %s273 = smul.addr %s272, 8
          %s274 = scalar_lea.vmem %s1, %s273
          %s275 = smul.u32 13, %s17
        $region48: #{tpu_custom_call.1} parent=39 // pred_fallthru
          _
      $region40: #{tpu_custom_call.1} parent=5 // pred_fallthru
        _
      %p276 = scmp.le.s32.totalorder 1, %s17
      %p277 = scmp.lt.s32.totalorder %s17, 3
      %p278 = pnand %p276, %p277
      %p279 = pneg %p278
      // Predicated region
      $region49: #{tpu_custom_call.1} parent=5 // pred_check
        _
      $region50: #{tpu_custom_call.1} parent=5 // pred_check_branch
        %281 = sbr.rel (%p278) target = $region52
      $region51: #{tpu_custom_call.1} parent=5 // pred_region
        %s282 = ssub.s32 %s17, 1
        %s283 = smul.u32 13, %s22
        %p284 = scmp.lt.s32.totalorder %s283, 25
        %s285 = scalar_select %p284, %s283, 25
        %s286 = smul.addr %s285, 8
        %s287 = scalar_lea.vmem %s0, %s286
        %p288 = pneg %p43
        %p289 = pneg %p40
        %s290 = smul.u32 13, %s22
        %p291 = scmp.lt.s32.totalorder %s290, 25
        %s292 = scalar_select %p291, %s290, 25
        %s293 = smul.addr %s292, 8
        %s294 = scalar_lea.vmem %s1, %s293
        %p295 = pneg %p69
        %p296 = pneg %p66
        %p297 = pneg %p90
        %p298 = pneg %p87
        %p299 = pneg %p111
        %p300 = pneg %p108
        %p301 = pneg %p132
        %p302 = pneg %p129
        %p303 = pneg %p153
        %p304 = pneg %p150
        %p305 = pneg %p174
        %p306 = pneg %p171
        %p307 = pneg %p195
        %p308 = pneg %p192
        %p309 = pneg %p221
        %p310 = pneg %p218
        %s311 = sand.u32 %s208, 1
        %s312 = scalar_lea.sflag [#allocation3], %s311
        %s313 = sand.u32 %s208, 1
        %s314 = smul.addr %s313, 104
        %s315 = scalar_lea.vmem [#allocation2], %s314
        %s316 = smul.u32 13, %s22
        %p317 = scmp.lt.s32.totalorder %s316, 25
        %s318 = scalar_select %p317, %s316, 25
        %s319 = smul.addr %s318, 8
        %s320 = scalar_lea.vmem %s0, %s319
        %s321 = smul.u32 13, %s22
        %s322 = smul.u32 13, %s22
        %p323 = scmp.lt.s32.totalorder %s322, 25
        %s324 = scalar_select %p323, %s322, 25
        %s325 = smul.addr %s324, 8
        %s326 = scalar_lea.vmem %s1, %s325
        %s327 = smul.u32 13, %s22
        %s328 = smul.u32 13, %s22
        %v330 = vld [vmem:[%s320] sm:$0xff]
        %v331 = vld [vmem:[%s320 + $0x8] sm:$0xff]
        %v332 = vld [vmem:[%s320 + $0x10] sm:$0xff]
        %v333 = vld [vmem:[%s320 + $0x18] sm:$0xff]
        %v334 = vld [vmem:[%s320 + $0x20] sm:$0xff]
        %v335 = vld [vmem:[%s320 + $0x28] sm:$0xff]
        %v336 = vld [vmem:[%s320 + $0x30] sm:$0xff]
        %v337 = vld [vmem:[%s320 + $0x38] sm:$0xff]
        %v338 = vld [vmem:[%s320 + $0x40] sm:$0xff]
        %v339 = vld [vmem:[%s320 + $0x48] sm:$0xff]
        %v340 = vld [vmem:[%s320 + $0x50] sm:$0xff]
        %v341 = vld [vmem:[%s320 + $0x58] sm:$0xff]
        %v342 = vld [vmem:[%s320 + $0x60] sm:$0xff]
        %v343 = vpack.c.bf16 %v331, %v330
        %v344 = vpack.c.bf16 %v333, %v332
        %v345 = vpack.c.bf16 %v335, %v334
        %v346 = vpack.c.bf16 %v337, %v336
        %v347 = vpack.c.bf16 %v339, %v338
        %v348 = vpack.c.bf16 %v341, %v340
        %v349 = vpack.c.bf16 %v342, %v342
        %v350 = vld [vmem:[%s326] sm:$0xff]
        %v351 = vld [vmem:[%s326 + $0x8] sm:$0xff]
        %v352 = vld [vmem:[%s326 + $0x10] sm:$0xff]
        %v353 = vld [vmem:[%s326 + $0x18] sm:$0xff]
        %v354 = vld [vmem:[%s326 + $0x20] sm:$0xff]
        %v355 = vld [vmem:[%s326 + $0x28] sm:$0xff]
        %v356 = vld [vmem:[%s326 + $0x30] sm:$0xff]
        %v357 = vld [vmem:[%s326 + $0x38] sm:$0xff]
        %v358 = vld [vmem:[%s326 + $0x40] sm:$0xff]
        %v359 = vld [vmem:[%s326 + $0x48] sm:$0xff]
        %v360 = vld [vmem:[%s326 + $0x50] sm:$0xff]
        %v361 = vld [vmem:[%s326 + $0x58] sm:$0xff]
        %v362 = vld [vmem:[%s326 + $0x60] sm:$0xff]
        %v363 = vld [vmem:[%s2] sm:$0xff]
        %v364 = vld [vmem:[%s2 + $0x8] sm:$0xff]
        %v365 = vld [vmem:[%s2 + $0x10] sm:$0xff]
        %v366 = vld [vmem:[%s2 + $0x18] sm:$0xff]
        %v367 = vld [vmem:[%s2 + $0x20] sm:$0xff]
        %v368 = vld [vmem:[%s2 + $0x28] sm:$0xff]
        %v369 = vld [vmem:[%s2 + $0x30] sm:$0xff]
        %v370 = vld [vmem:[%s2 + $0x38] sm:$0xff]
        %v379 = vunpack.c.l.b16 %v363
        %v380 = vunpack.c.h.b16 %v363
        %v381 = vunpack.c.l.b16 %v364
        %v382 = vunpack.c.h.b16 %v364
        %v383 = vunpack.c.l.b16 %v365
        %v384 = vunpack.c.h.b16 %v365
        %v385 = vunpack.c.l.b16 %v366
        %v386 = vunpack.c.h.b16 %v366
        %v387 = vunpack.c.l.b16 %v367
        %v388 = vunpack.c.h.b16 %v367
        %v389 = vunpack.c.l.b16 %v368
        %v390 = vunpack.c.h.b16 %v368
        %v391 = vunpack.c.l.b16 %v369
        %v392 = vunpack.c.h.b16 %v369
        %v393 = vunpack.c.l.b16 %v370
        %v394 = vunpack.c.h.b16 %v370
        %v395 = vpack.c.b16 %v383, %v379
        %v396 = vpack.c.b16 %v384, %v380
        %v397 = vpack.c.b16 %v385, %v381
        %v398 = vpack.c.b16 %v386, %v382
        %v399 = vpack.c.b16 %v391, %v387
        %v400 = vpack.c.b16 %v392, %v388
        %v401 = vpack.c.b16 %v393, %v389
        %v402 = vpack.c.b16 %v394, %v390
        %vm411 = vcmask 261120
        %v413 = vsel %vm411, %v343, 0
        %v416 = vsel %vm411, %v344, 0
        %v419 = vsel %vm411, %v345, 0
        %v422 = vsel %vm411, %v346, 0
        %v425 = vsel %vm411, %v347, 0
        %v428 = vsel %vm411, %v348, 0
        %v431 = vsel %vm411, %v349, 0
        %433 = vmatprep.subr.bf16.mxu0 0
        %434 = vmatpush1.bf16.msra.mxu0 0
        %435 = vmatprep.subr.bf16.mxu0 0
        %436 = vmatpush1.bf16.msra.mxu0 0
        %437 = vmatprep.subr.bf16.mxu0 0
        %438 = vmatpush1.bf16.msra.mxu0 0
        %439 = vmatprep.subr.bf16.mxu0 0
        %440 = vmatpush1.bf16.msra.mxu0 0
        %441 = vmatprep.subr.bf16.mxu0 0
        %442 = vmatpush1.bf16.msra.mxu0 0
        %443 = vmatprep.subr.bf16.mxu0 0
        %444 = vmatpush1.bf16.msra.mxu0 0
        %445 = vmatprep.subr.bf16.mxu0 %v400
        %446 = vmatpush1.bf16.msra.mxu0 %v399
        %447 = vmatprep.subr.bf16.mxu0 %v396
        %448 = vmatpush1.bf16.msra.mxu0 %v395
        %449 = vmatprep.subr.bf16.mxu0 0
        %450 = vmatpush2.bf16.msra.mxu0 0
        %451 = vmatprep.subr.bf16.mxu0 0
        %452 = vmatpush2.bf16.msra.mxu0 0
        %453 = vmatprep.subr.bf16.mxu0 0
        %454 = vmatpush2.bf16.msra.mxu0 0
        %455 = vmatprep.subr.bf16.mxu0 0
        %456 = vmatpush2.bf16.msra.mxu0 0
        %457 = vmatprep.subr.bf16.mxu0 0
        %458 = vmatpush2.bf16.msra.mxu0 0
        %459 = vmatprep.subr.bf16.mxu0 0
        %460 = vmatpush2.bf16.msra.mxu0 0
        %461 = vmatprep.subr.bf16.mxu0 0
        %462 = vmatpush2.bf16.msra.mxu0 0
        %463 = vmatprep.subr.bf16.mxu0 0
        %464 = vmatpush2.bf16.msra.mxu0 0
        %465 = vmatprep.mubr.bf16.mxu0 0
        %466 = vmatmul.mubr.bf16.gmra.mxu0 %v413
        %v467 = vpop.f32.mrf.mxu0
        %v468 = vadd.f32 0.0, %v467
        %v469 = vpop.f32.mrf.mxu0
        %v470 = vadd.f32 0.0, %v469
        %v471 = vpop.f32.mrf.mxu0
        %v472 = vadd.f32 0.0, %v471
        %v473 = vpop.f32.mrf.mxu0
        %v474 = vadd.f32 0.0, %v473
        %475 = vmatprep.mubr.bf16.mxu0 0
        %476 = vmatmul.mubr.bf16.gmra.mxu0 %v416
        %v477 = vpop.f32.mrf.mxu0
        %v478 = vadd.f32 0.0, %v477
        %v479 = vpop.f32.mrf.mxu0
        %v480 = vadd.f32 0.0, %v479
        %v481 = vpop.f32.mrf.mxu0
        %v482 = vadd.f32 0.0, %v481
        %v483 = vpop.f32.mrf.mxu0
        %v484 = vadd.f32 0.0, %v483
        %485 = vmatprep.mubr.bf16.mxu0 0
        %486 = vmatmul.mubr.bf16.gmra.mxu0 %v419
        %v487 = vpop.f32.mrf.mxu0
        %v488 = vadd.f32 0.0, %v487
        %v489 = vpop.f32.mrf.mxu0
        %v490 = vadd.f32 0.0, %v489
        %v491 = vpop.f32.mrf.mxu0
        %v492 = vadd.f32 0.0, %v491
        %v493 = vpop.f32.mrf.mxu0
        %v494 = vadd.f32 0.0, %v493
        %495 = vmatprep.mubr.bf16.mxu0 0
        %496 = vmatmul.mubr.bf16.gmra.mxu0 %v422
        %v497 = vpop.f32.mrf.mxu0
        %v498 = vadd.f32 0.0, %v497
        %v499 = vpop.f32.mrf.mxu0
        %v500 = vadd.f32 0.0, %v499
        %v501 = vpop.f32.mrf.mxu0
        %v502 = vadd.f32 0.0, %v501
        %v503 = vpop.f32.mrf.mxu0
        %v504 = vadd.f32 0.0, %v503
        %505 = vmatprep.mubr.bf16.mxu0 0
        %506 = vmatmul.mubr.bf16.gmra.mxu0 %v425
        %v507 = vpop.f32.mrf.mxu0
        %v508 = vadd.f32 0.0, %v507
        %v509 = vpop.f32.mrf.mxu0
        %v510 = vadd.f32 0.0, %v509
        %v511 = vpop.f32.mrf.mxu0
        %v512 = vadd.f32 0.0, %v511
        %v513 = vpop.f32.mrf.mxu0
        %v514 = vadd.f32 0.0, %v513
        %515 = vmatprep.mubr.bf16.mxu0 0
        %516 = vmatmul.mubr.bf16.gmra.mxu0 %v428
        %v517 = vpop.f32.mrf.mxu0
        %v518 = vadd.f32 0.0, %v517
        %v519 = vpop.f32.mrf.mxu0
        %v520 = vadd.f32 0.0, %v519
        %v521 = vpop.f32.mrf.mxu0
        %v522 = vadd.f32 0.0, %v521
        %v523 = vpop.f32.mrf.mxu0
        %v524 = vadd.f32 0.0, %v523
        %525 = vmatprep.mubr.bf16.mxu0 0
        %526 = vmatmul.mubr.bf16.gmra.mxu0 %v431
        %v527 = vpop.f32.mrf.mxu0
        %v528 = vadd.f32 0.0, %v527
        %v529 = vpop.f32.mrf.mxu0
        %v530 = vadd.f32 0.0, %v529
        %v531 = vpop.f32.mrf.mxu0
        %v532 = vpop.f32.mrf.mxu0
        %533 = vdwg.mxu0
        %534 = vmatprep.subr.bf16.mxu0 0
        %535 = vmatpush1.bf16.msra.mxu0 0
        %536 = vmatprep.subr.bf16.mxu0 0
        %537 = vmatpush1.bf16.msra.mxu0 0
        %538 = vmatprep.subr.bf16.mxu0 0
        %539 = vmatpush1.bf16.msra.mxu0 0
        %540 = vmatprep.subr.bf16.mxu0 0
        %541 = vmatpush1.bf16.msra.mxu0 0
        %542 = vmatprep.subr.bf16.mxu0 0
        %543 = vmatpush1.bf16.msra.mxu0 0
        %544 = vmatprep.subr.bf16.mxu0 0
        %545 = vmatpush1.bf16.msra.mxu0 0
        %546 = vmatprep.subr.bf16.mxu0 %v402
        %547 = vmatpush1.bf16.msra.mxu0 %v401
        %548 = vmatprep.subr.bf16.mxu0 %v398
        %549 = vmatpush1.bf16.msra.mxu0 %v397
        %550 = vmatprep.subr.bf16.mxu0 0
        %551 = vmatpush2.bf16.msra.mxu0 0
        %552 = vmatprep.subr.bf16.mxu0 0
        %553 = vmatpush2.bf16.msra.mxu0 0
        %554 = vmatprep.subr.bf16.mxu0 0
        %555 = vmatpush2.bf16.msra.mxu0 0
        %556 = vmatprep.subr.bf16.mxu0 0
        %557 = vmatpush2.bf16.msra.mxu0 0
        %558 = vmatprep.subr.bf16.mxu0 0
        %559 = vmatpush2.bf16.msra.mxu0 0
        %560 = vmatprep.subr.bf16.mxu0 0
        %561 = vmatpush2.bf16.msra.mxu0 0
        %562 = vmatprep.subr.bf16.mxu0 0
        %563 = vmatpush2.bf16.msra.mxu0 0
        %564 = vmatprep.subr.bf16.mxu0 0
        %565 = vmatpush2.bf16.msra.mxu0 0
        %566 = vmatprep.mubr.bf16.mxu0 0
        %567 = vmatmul.mubr.bf16.gmra.mxu0 %v413
        %v568 = vpop.f32.mrf.mxu0
        %v569 = vadd.f32 0.0, %v568
        %v570 = vpop.f32.mrf.mxu0
        %v571 = vadd.f32 0.0, %v570
        %v572 = vpop.f32.mrf.mxu0
        %v573 = vadd.f32 0.0, %v572
        %v574 = vpop.f32.mrf.mxu0
        %v575 = vadd.f32 0.0, %v574
        %576 = vmatprep.mubr.bf16.mxu0 0
        %577 = vmatmul.mubr.bf16.gmra.mxu0 %v416
        %v578 = vpop.f32.mrf.mxu0
        %v579 = vadd.f32 0.0, %v578
        %v580 = vpop.f32.mrf.mxu0
        %v581 = vadd.f32 0.0, %v580
        %v582 = vpop.f32.mrf.mxu0
        %v583 = vadd.f32 0.0, %v582
        %v584 = vpop.f32.mrf.mxu0
        %v585 = vadd.f32 0.0, %v584
        %586 = vmatprep.mubr.bf16.mxu0 0
        %587 = vmatmul.mubr.bf16.gmra.mxu0 %v419
        %v588 = vpop.f32.mrf.mxu0
        %v589 = vadd.f32 0.0, %v588
        %v590 = vpop.f32.mrf.mxu0
        %v591 = vadd.f32 0.0, %v590
        %v592 = vpop.f32.mrf.mxu0
        %v593 = vadd.f32 0.0, %v592
        %v594 = vpop.f32.mrf.mxu0
        %v595 = vadd.f32 0.0, %v594
        %596 = vmatprep.mubr.bf16.mxu0 0
        %597 = vmatmul.mubr.bf16.gmra.mxu0 %v422
        %v598 = vpop.f32.mrf.mxu0
        %v599 = vadd.f32 0.0, %v598
        %v600 = vpop.f32.mrf.mxu0
        %v601 = vadd.f32 0.0, %v600
        %v602 = vpop.f32.mrf.mxu0
        %v603 = vadd.f32 0.0, %v602
        %v604 = vpop.f32.mrf.mxu0
        %v605 = vadd.f32 0.0, %v604
        %606 = vmatprep.mubr.bf16.mxu0 0
        %607 = vmatmul.mubr.bf16.gmra.mxu0 %v425
        %v608 = vpop.f32.mrf.mxu0
        %v609 = vadd.f32 0.0, %v608
        %v610 = vpop.f32.mrf.mxu0
        %v611 = vadd.f32 0.0, %v610
        %v612 = vpop.f32.mrf.mxu0
        %v613 = vadd.f32 0.0, %v612
        %v614 = vpop.f32.mrf.mxu0
        %v615 = vadd.f32 0.0, %v614
        %616 = vmatprep.mubr.bf16.mxu0 0
        %617 = vmatmul.mubr.bf16.gmra.mxu0 %v428
        %v618 = vpop.f32.mrf.mxu0
        %v619 = vadd.f32 0.0, %v618
        %v620 = vpop.f32.mrf.mxu0
        %v621 = vadd.f32 0.0, %v620
        %v622 = vpop.f32.mrf.mxu0
        %v623 = vadd.f32 0.0, %v622
        %v624 = vpop.f32.mrf.mxu0
        %v625 = vadd.f32 0.0, %v624
        %626 = vmatprep.mubr.bf16.mxu0 0
        %627 = vmatmul.mubr.bf16.gmra.mxu0 %v431
        %v628 = vpop.f32.mrf.mxu0
        %v629 = vadd.f32 0.0, %v628
        %v630 = vpop.f32.mrf.mxu0
        %v631 = vadd.f32 0.0, %v630
        %v632 = vpop.f32.mrf.mxu0
        %v633 = vpop.f32.mrf.mxu0
        %634 = vdwg.mxu0
        %v635 = vld [vmem:[%s3] sm:$0x7]
        %v637 = vlaneseq
        %v638 = vshrl.u32 %v637, 7
        %v639 = vsub.s32 0, %v638
        %v640 = vrot.slane %v635, %v639
        %v641 = vlaneseq
        %v642 = vshrl.u32 %v641, 7
        %v643 = vsub.s32 1, %v642
        %v644 = vrot.slane %v635, %v643
        %v645 = vlaneseq
        %v646 = vshrl.u32 %v645, 7
        %v647 = vsub.s32 2, %v646
        %v648 = vrot.slane %v635, %v647
        %v652 = vadd.f32 %v468, %v640
        %v653 = vadd.f32 %v470, %v644
        %v654 = vadd.f32 %v569, %v648
        %v655 = vadd.f32 %v472, %v640
        %v656 = vadd.f32 %v474, %v644
        %v657 = vadd.f32 %v573, %v648
        %v658 = vadd.f32 %v478, %v640
        %v659 = vadd.f32 %v480, %v644
        %v660 = vadd.f32 %v579, %v648
        %v661 = vadd.f32 %v482, %v640
        %v662 = vadd.f32 %v484, %v644
        %v663 = vadd.f32 %v583, %v648
        %v664 = vadd.f32 %v488, %v640
        %v665 = vadd.f32 %v490, %v644
        %v666 = vadd.f32 %v589, %v648
        %v667 = vadd.f32 %v492, %v640
        %v668 = vadd.f32 %v494, %v644
        %v669 = vadd.f32 %v593, %v648
        %v670 = vadd.f32 %v498, %v640
        %v671 = vadd.f32 %v500, %v644
        %v672 = vadd.f32 %v599, %v648
        %v673 = vadd.f32 %v502, %v640
        %v674 = vadd.f32 %v504, %v644
        %v675 = vadd.f32 %v603, %v648
        %v676 = vadd.f32 %v508, %v640
        %v677 = vadd.f32 %v510, %v644
        %v678 = vadd.f32 %v609, %v648
        %v679 = vadd.f32 %v512, %v640
        %v680 = vadd.f32 %v514, %v644
        %v681 = vadd.f32 %v613, %v648
        %v682 = vadd.f32 %v518, %v640
        %v683 = vadd.f32 %v520, %v644
        %v684 = vadd.f32 %v619, %v648
        %v685 = vadd.f32 %v522, %v640
        %v686 = vadd.f32 %v524, %v644
        %v687 = vadd.f32 %v623, %v648
        %v688 = vadd.f32 %v528, %v640
        %v689 = vadd.f32 %v530, %v644
        %v690 = vadd.f32 %v629, %v648
        %691 = vadd.xlane.f32.xlu0 %v652
        %v692 = vpop.xlane.xlu0 %691
        %693 = vadd.xlane.f32.xlu0 %v655
        %v694 = vpop.xlane.xlu0 %693
        %695 = vadd.xlane.f32.xlu0 %v658
        %v696 = vpop.xlane.xlu0 %695
        %697 = vadd.xlane.f32.xlu0 %v661
        %v698 = vpop.xlane.xlu0 %697
        %699 = vadd.xlane.f32.xlu0 %v664
        %v700 = vpop.xlane.xlu0 %699
        %701 = vadd.xlane.f32.xlu0 %v667
        %v702 = vpop.xlane.xlu0 %701
        %703 = vadd.xlane.f32.xlu0 %v670
        %v704 = vpop.xlane.xlu0 %703
        %705 = vadd.xlane.f32.xlu0 %v673
        %v706 = vpop.xlane.xlu0 %705
        %707 = vadd.xlane.f32.xlu0 %v676
        %v708 = vpop.xlane.xlu0 %707
        %709 = vadd.xlane.f32.xlu0 %v679
        %v710 = vpop.xlane.xlu0 %709
        %711 = vadd.xlane.f32.xlu0 %v682
        %v712 = vpop.xlane.xlu0 %711
        %713 = vadd.xlane.f32.xlu0 %v685
        %v714 = vpop.xlane.xlu0 %713
        %715 = vadd.xlane.f32.xlu0 %v688
        %v716 = vpop.xlane.xlu0 %715
        %v717 = vrcp.pop 128.0
        %v718 = vmul.f32 %v692, %v717
        %v719 = vmul.f32 %v694, %v717
        %v720 = vmul.f32 %v696, %v717
        %v721 = vmul.f32 %v698, %v717
        %v722 = vmul.f32 %v700, %v717
        %v723 = vmul.f32 %v702, %v717
        %v724 = vmul.f32 %v704, %v717
        %v725 = vmul.f32 %v706, %v717
        %v726 = vmul.f32 %v708, %v717
        %v727 = vmul.f32 %v710, %v717
        %v728 = vmul.f32 %v712, %v717
        %v729 = vmul.f32 %v714, %v717
        %v730 = vmul.f32 %v716, %v717
        %v731 = vsub.f32 %v652, %v718
        %v732 = vsub.f32 %v655, %v719
        %v733 = vsub.f32 %v658, %v720
        %v734 = vsub.f32 %v661, %v721
        %v735 = vsub.f32 %v664, %v722
        %v736 = vsub.f32 %v667, %v723
        %v737 = vsub.f32 %v670, %v724
        %v738 = vsub.f32 %v673, %v725
        %v739 = vsub.f32 %v676, %v726
        %v740 = vsub.f32 %v679, %v727
        %v741 = vsub.f32 %v682, %v728
        %v742 = vsub.f32 %v685, %v729
        %v743 = vsub.f32 %v688, %v730
        %v744 = vmul.f32 %v731, %v731
        %v745 = vmul.f32 %v732, %v732
        %v746 = vmul.f32 %v733, %v733
        %v747 = vmul.f32 %v734, %v734
        %v748 = vmul.f32 %v735, %v735
        %v749 = vmul.f32 %v736, %v736
        %v750 = vmul.f32 %v737, %v737
        %v751 = vmul.f32 %v738, %v738
        %v752 = vmul.f32 %v739, %v739
        %v753 = vmul.f32 %v740, %v740
        %v754 = vmul.f32 %v741, %v741
        %v755 = vmul.f32 %v742, %v742
        %v756 = vmul.f32 %v743, %v743
        %757 = vadd.xlane.f32.xlu0 %v744
        %v758 = vpop.xlane.xlu0 %757
        %759 = vadd.xlane.f32.xlu0 %v745
        %v760 = vpop.xlane.xlu0 %759
        %761 = vadd.xlane.f32.xlu0 %v746
        %v762 = vpop.xlane.xlu0 %761
        %763 = vadd.xlane.f32.xlu0 %v747
        %v764 = vpop.xlane.xlu0 %763
        %765 = vadd.xlane.f32.xlu0 %v748
        %v766 = vpop.xlane.xlu0 %765
        %767 = vadd.xlane.f32.xlu0 %v749
        %v768 = vpop.xlane.xlu0 %767
        %769 = vadd.xlane.f32.xlu0 %v750
        %v770 = vpop.xlane.xlu0 %769
        %771 = vadd.xlane.f32.xlu0 %v751
        %v772 = vpop.xlane.xlu0 %771
        %773 = vadd.xlane.f32.xlu0 %v752
        %v774 = vpop.xlane.xlu0 %773
        %775 = vadd.xlane.f32.xlu0 %v753
        %v776 = vpop.xlane.xlu0 %775
        %777 = vadd.xlane.f32.xlu0 %v754
        %v778 = vpop.xlane.xlu0 %777
        %779 = vadd.xlane.f32.xlu0 %v755
        %v780 = vpop.xlane.xlu0 %779
        %781 = vadd.xlane.f32.xlu0 %v756
        %v782 = vpop.xlane.xlu0 %781
        %v783 = vmul.f32 %v758, %v717
        %v784 = vmul.f32 %v760, %v717
        %v785 = vmul.f32 %v762, %v717
        %v786 = vmul.f32 %v764, %v717
        %v787 = vmul.f32 %v766, %v717
        %v788 = vmul.f32 %v768, %v717
        %v789 = vmul.f32 %v770, %v717
        %v790 = vmul.f32 %v772, %v717
        %v791 = vmul.f32 %v774, %v717
        %v792 = vmul.f32 %v776, %v717
        %v793 = vmul.f32 %v778, %v717
        %v794 = vmul.f32 %v780, %v717
        %v795 = vmul.f32 %v782, %v717
        %v796 = vadd.f32 %v783, 1e-05
        %v797 = vadd.f32 %v784, 1e-05
        %v798 = vadd.f32 %v785, 1e-05
        %v799 = vadd.f32 %v786, 1e-05
        %v800 = vadd.f32 %v787, 1e-05
        %v801 = vadd.f32 %v788, 1e-05
        %v802 = vadd.f32 %v789, 1e-05
        %v803 = vadd.f32 %v790, 1e-05
        %v804 = vadd.f32 %v791, 1e-05
        %v805 = vadd.f32 %v792, 1e-05
        %v806 = vadd.f32 %v793, 1e-05
        %v807 = vadd.f32 %v794, 1e-05
        %v808 = vadd.f32 %v795, 1e-05
        %v809 = vrsqrt.pop %v796
        %v810 = vrsqrt.pop %v797
        %v811 = vrsqrt.pop %v798
        %v812 = vrsqrt.pop %v799
        %v813 = vrsqrt.pop %v800
        %v814 = vrsqrt.pop %v801
        %v815 = vrsqrt.pop %v802
        %v816 = vrsqrt.pop %v803
        %v817 = vrsqrt.pop %v804
        %v818 = vrsqrt.pop %v805
        %v819 = vrsqrt.pop %v806
        %v820 = vrsqrt.pop %v807
        %v821 = vrsqrt.pop %v808
        %v822 = vmul.f32 %v731, %v809
        %v823 = vmul.f32 %v732, %v810
        %v824 = vmul.f32 %v733, %v811
        %v825 = vmul.f32 %v734, %v812
        %v826 = vmul.f32 %v735, %v813
        %v827 = vmul.f32 %v736, %v814
        %v828 = vmul.f32 %v737, %v815
        %v829 = vmul.f32 %v738, %v816
        %v830 = vmul.f32 %v739, %v817
        %v831 = vmul.f32 %v740, %v818
        %v832 = vmul.f32 %v741, %v819
        %v833 = vmul.f32 %v742, %v820
        %v834 = vmul.f32 %v743, %v821
        %v835 = vmax.f32 %v822, 0.0
        %v836 = vmax.f32 %v823, 0.0
        %v837 = vmax.f32 %v824, 0.0
        %v838 = vmax.f32 %v825, 0.0
        %v839 = vmax.f32 %v826, 0.0
        %v840 = vmax.f32 %v827, 0.0
        %v841 = vmax.f32 %v828, 0.0
        %v842 = vmax.f32 %v829, 0.0
        %v843 = vmax.f32 %v830, 0.0
        %v844 = vmax.f32 %v831, 0.0
        %v845 = vmax.f32 %v832, 0.0
        %v846 = vmax.f32 %v833, 0.0
        %v847 = vmax.f32 %v834, 0.0
        %848 = vadd.xlane.f32.xlu0 %v653
        %v849 = vpop.xlane.xlu0 %848
        %850 = vadd.xlane.f32.xlu0 %v656
        %v851 = vpop.xlane.xlu0 %850
        %852 = vadd.xlane.f32.xlu0 %v659
        %v853 = vpop.xlane.xlu0 %852
        %854 = vadd.xlane.f32.xlu0 %v662
        %v855 = vpop.xlane.xlu0 %854
        %856 = vadd.xlane.f32.xlu0 %v665
        %v857 = vpop.xlane.xlu0 %856
        %858 = vadd.xlane.f32.xlu0 %v668
        %v859 = vpop.xlane.xlu0 %858
        %860 = vadd.xlane.f32.xlu0 %v671
        %v861 = vpop.xlane.xlu0 %860
        %862 = vadd.xlane.f32.xlu0 %v674
        %v863 = vpop.xlane.xlu0 %862
        %864 = vadd.xlane.f32.xlu0 %v677
        %v865 = vpop.xlane.xlu0 %864
        %866 = vadd.xlane.f32.xlu0 %v680
        %v867 = vpop.xlane.xlu0 %866
        %868 = vadd.xlane.f32.xlu0 %v683
        %v869 = vpop.xlane.xlu0 %868
        %870 = vadd.xlane.f32.xlu0 %v686
        %v871 = vpop.xlane.xlu0 %870
        %872 = vadd.xlane.f32.xlu0 %v689
        %v873 = vpop.xlane.xlu0 %872
        %v874 = vmul.f32 %v849, %v717
        %v875 = vmul.f32 %v851, %v717
        %v876 = vmul.f32 %v853, %v717
        %v877 = vmul.f32 %v855, %v717
        %v878 = vmul.f32 %v857, %v717
        %v879 = vmul.f32 %v859, %v717
        %v880 = vmul.f32 %v861, %v717
        %v881 = vmul.f32 %v863, %v717
        %v882 = vmul.f32 %v865, %v717
        %v883 = vmul.f32 %v867, %v717
        %v884 = vmul.f32 %v869, %v717
        %v885 = vmul.f32 %v871, %v717
        %v886 = vmul.f32 %v873, %v717
        %v887 = vsub.f32 %v653, %v874
        %v888 = vsub.f32 %v656, %v875
        %v889 = vsub.f32 %v659, %v876
        %v890 = vsub.f32 %v662, %v877
        %v891 = vsub.f32 %v665, %v878
        %v892 = vsub.f32 %v668, %v879
        %v893 = vsub.f32 %v671, %v880
        %v894 = vsub.f32 %v674, %v881
        %v895 = vsub.f32 %v677, %v882
        %v896 = vsub.f32 %v680, %v883
        %v897 = vsub.f32 %v683, %v884
        %v898 = vsub.f32 %v686, %v885
        %v899 = vsub.f32 %v689, %v886
        %v900 = vmul.f32 %v887, %v887
        %v901 = vmul.f32 %v888, %v888
        %v902 = vmul.f32 %v889, %v889
        %v903 = vmul.f32 %v890, %v890
        %v904 = vmul.f32 %v891, %v891
        %v905 = vmul.f32 %v892, %v892
        %v906 = vmul.f32 %v893, %v893
        %v907 = vmul.f32 %v894, %v894
        %v908 = vmul.f32 %v895, %v895
        %v909 = vmul.f32 %v896, %v896
        %v910 = vmul.f32 %v897, %v897
        %v911 = vmul.f32 %v898, %v898
        %v912 = vmul.f32 %v899, %v899
        %913 = vadd.xlane.f32.xlu0 %v900
        %v914 = vpop.xlane.xlu0 %913
        %915 = vadd.xlane.f32.xlu0 %v901
        %v916 = vpop.xlane.xlu0 %915
        %917 = vadd.xlane.f32.xlu0 %v902
        %v918 = vpop.xlane.xlu0 %917
        %919 = vadd.xlane.f32.xlu0 %v903
        %v920 = vpop.xlane.xlu0 %919
        %921 = vadd.xlane.f32.xlu0 %v904
        %v922 = vpop.xlane.xlu0 %921
        %923 = vadd.xlane.f32.xlu0 %v905
        %v924 = vpop.xlane.xlu0 %923
        %925 = vadd.xlane.f32.xlu0 %v906
        %v926 = vpop.xlane.xlu0 %925
        %927 = vadd.xlane.f32.xlu0 %v907
        %v928 = vpop.xlane.xlu0 %927
        %929 = vadd.xlane.f32.xlu0 %v908
        %v930 = vpop.xlane.xlu0 %929
        %931 = vadd.xlane.f32.xlu0 %v909
        %v932 = vpop.xlane.xlu0 %931
        %933 = vadd.xlane.f32.xlu0 %v910
        %v934 = vpop.xlane.xlu0 %933
        %935 = vadd.xlane.f32.xlu0 %v911
        %v936 = vpop.xlane.xlu0 %935
        %937 = vadd.xlane.f32.xlu0 %v912
        %v938 = vpop.xlane.xlu0 %937
        %v939 = vmul.f32 %v914, %v717
        %v940 = vmul.f32 %v916, %v717
        %v941 = vmul.f32 %v918, %v717
        %v942 = vmul.f32 %v920, %v717
        %v943 = vmul.f32 %v922, %v717
        %v944 = vmul.f32 %v924, %v717
        %v945 = vmul.f32 %v926, %v717
        %v946 = vmul.f32 %v928, %v717
        %v947 = vmul.f32 %v930, %v717
        %v948 = vmul.f32 %v932, %v717
        %v949 = vmul.f32 %v934, %v717
        %v950 = vmul.f32 %v936, %v717
        %v951 = vmul.f32 %v938, %v717
        %v952 = vadd.f32 %v939, 1e-05
        %v953 = vadd.f32 %v940, 1e-05
        %v954 = vadd.f32 %v941, 1e-05
        %v955 = vadd.f32 %v942, 1e-05
        %v956 = vadd.f32 %v943, 1e-05
        %v957 = vadd.f32 %v944, 1e-05
        %v958 = vadd.f32 %v945, 1e-05
        %v959 = vadd.f32 %v946, 1e-05
        %v960 = vadd.f32 %v947, 1e-05
        %v961 = vadd.f32 %v948, 1e-05
        %v962 = vadd.f32 %v949, 1e-05
        %v963 = vadd.f32 %v950, 1e-05
        %v964 = vadd.f32 %v951, 1e-05
        %v965 = vrsqrt.pop %v952
        %v966 = vrsqrt.pop %v953
        %v967 = vrsqrt.pop %v954
        %v968 = vrsqrt.pop %v955
        %v969 = vrsqrt.pop %v956
        %v970 = vrsqrt.pop %v957
        %v971 = vrsqrt.pop %v958
        %v972 = vrsqrt.pop %v959
        %v973 = vrsqrt.pop %v960
        %v974 = vrsqrt.pop %v961
        %v975 = vrsqrt.pop %v962
        %v976 = vrsqrt.pop %v963
        %v977 = vrsqrt.pop %v964
        %v978 = vmul.f32 %v887, %v965
        %v979 = vmul.f32 %v888, %v966
        %v980 = vmul.f32 %v889, %v967
        %v981 = vmul.f32 %v890, %v968
        %v982 = vmul.f32 %v891, %v969
        %v983 = vmul.f32 %v892, %v970
        %v984 = vmul.f32 %v893, %v971
        %v985 = vmul.f32 %v894, %v972
        %v986 = vmul.f32 %v895, %v973
        %v987 = vmul.f32 %v896, %v974
        %v988 = vmul.f32 %v897, %v975
        %v989 = vmul.f32 %v898, %v976
        %v990 = vmul.f32 %v899, %v977
        %v991 = vmax.f32 %v978, 0.0
        %v992 = vmax.f32 %v979, 0.0
        %v993 = vmax.f32 %v980, 0.0
        %v994 = vmax.f32 %v981, 0.0
        %v995 = vmax.f32 %v982, 0.0
        %v996 = vmax.f32 %v983, 0.0
        %v997 = vmax.f32 %v984, 0.0
        %v998 = vmax.f32 %v985, 0.0
        %v999 = vmax.f32 %v986, 0.0
        %v1000 = vmax.f32 %v987, 0.0
        %v1001 = vmax.f32 %v988, 0.0
        %v1002 = vmax.f32 %v989, 0.0
        %v1003 = vmax.f32 %v990, 0.0
        %1004 = vadd.xlane.f32.xlu0 %v654
        %v1005 = vpop.xlane.xlu0 %1004
        %1006 = vadd.xlane.f32.xlu0 %v657
        %v1007 = vpop.xlane.xlu0 %1006
        %1008 = vadd.xlane.f32.xlu0 %v660
        %v1009 = vpop.xlane.xlu0 %1008
        %1010 = vadd.xlane.f32.xlu0 %v663
        %v1011 = vpop.xlane.xlu0 %1010
        %1012 = vadd.xlane.f32.xlu0 %v666
        %v1013 = vpop.xlane.xlu0 %1012
        %1014 = vadd.xlane.f32.xlu0 %v669
        %v1015 = vpop.xlane.xlu0 %1014
        %1016 = vadd.xlane.f32.xlu0 %v672
        %v1017 = vpop.xlane.xlu0 %1016
        %1018 = vadd.xlane.f32.xlu0 %v675
        %v1019 = vpop.xlane.xlu0 %1018
        %1020 = vadd.xlane.f32.xlu0 %v678
        %v1021 = vpop.xlane.xlu0 %1020
        %1022 = vadd.xlane.f32.xlu0 %v681
        %v1023 = vpop.xlane.xlu0 %1022
        %1024 = vadd.xlane.f32.xlu0 %v684
        %v1025 = vpop.xlane.xlu0 %1024
        %1026 = vadd.xlane.f32.xlu0 %v687
        %v1027 = vpop.xlane.xlu0 %1026
        %1028 = vadd.xlane.f32.xlu0 %v690
        %v1029 = vpop.xlane.xlu0 %1028
        %v1030 = vmul.f32 %v1005, %v717
        %v1031 = vmul.f32 %v1007, %v717
        %v1032 = vmul.f32 %v1009, %v717
        %v1033 = vmul.f32 %v1011, %v717
        %v1034 = vmul.f32 %v1013, %v717
        %v1035 = vmul.f32 %v1015, %v717
        %v1036 = vmul.f32 %v1017, %v717
        %v1037 = vmul.f32 %v1019, %v717
        %v1038 = vmul.f32 %v1021, %v717
        %v1039 = vmul.f32 %v1023, %v717
        %v1040 = vmul.f32 %v1025, %v717
        %v1041 = vmul.f32 %v1027, %v717
        %v1042 = vmul.f32 %v1029, %v717
        %v1043 = vsub.f32 %v654, %v1030
        %v1044 = vsub.f32 %v657, %v1031
        %v1045 = vsub.f32 %v660, %v1032
        %v1046 = vsub.f32 %v663, %v1033
        %v1047 = vsub.f32 %v666, %v1034
        %v1048 = vsub.f32 %v669, %v1035
        %v1049 = vsub.f32 %v672, %v1036
        %v1050 = vsub.f32 %v675, %v1037
        %v1051 = vsub.f32 %v678, %v1038
        %v1052 = vsub.f32 %v681, %v1039
        %v1053 = vsub.f32 %v684, %v1040
        %v1054 = vsub.f32 %v687, %v1041
        %v1055 = vsub.f32 %v690, %v1042
        %v1056 = vmul.f32 %v1043, %v1043
        %v1057 = vmul.f32 %v1044, %v1044
        %v1058 = vmul.f32 %v1045, %v1045
        %v1059 = vmul.f32 %v1046, %v1046
        %v1060 = vmul.f32 %v1047, %v1047
        %v1061 = vmul.f32 %v1048, %v1048
        %v1062 = vmul.f32 %v1049, %v1049
        %v1063 = vmul.f32 %v1050, %v1050
        %v1064 = vmul.f32 %v1051, %v1051
        %v1065 = vmul.f32 %v1052, %v1052
        %v1066 = vmul.f32 %v1053, %v1053
        %v1067 = vmul.f32 %v1054, %v1054
        %v1068 = vmul.f32 %v1055, %v1055
        %1069 = vadd.xlane.f32.xlu0 %v1056
        %v1070 = vpop.xlane.xlu0 %1069
        %1071 = vadd.xlane.f32.xlu0 %v1057
        %v1072 = vpop.xlane.xlu0 %1071
        %1073 = vadd.xlane.f32.xlu0 %v1058
        %v1074 = vpop.xlane.xlu0 %1073
        %1075 = vadd.xlane.f32.xlu0 %v1059
        %v1076 = vpop.xlane.xlu0 %1075
        %1077 = vadd.xlane.f32.xlu0 %v1060
        %v1078 = vpop.xlane.xlu0 %1077
        %1079 = vadd.xlane.f32.xlu0 %v1061
        %v1080 = vpop.xlane.xlu0 %1079
        %1081 = vadd.xlane.f32.xlu0 %v1062
        %v1082 = vpop.xlane.xlu0 %1081
        %1083 = vadd.xlane.f32.xlu0 %v1063
        %v1084 = vpop.xlane.xlu0 %1083
        %1085 = vadd.xlane.f32.xlu0 %v1064
        %v1086 = vpop.xlane.xlu0 %1085
        %1087 = vadd.xlane.f32.xlu0 %v1065
        %v1088 = vpop.xlane.xlu0 %1087
        %1089 = vadd.xlane.f32.xlu0 %v1066
        %v1090 = vpop.xlane.xlu0 %1089
        %1091 = vadd.xlane.f32.xlu0 %v1067
        %v1092 = vpop.xlane.xlu0 %1091
        %1093 = vadd.xlane.f32.xlu0 %v1068
        %v1094 = vpop.xlane.xlu0 %1093
        %v1095 = vmul.f32 %v1070, %v717
        %v1096 = vmul.f32 %v1072, %v717
        %v1097 = vmul.f32 %v1074, %v717
        %v1098 = vmul.f32 %v1076, %v717
        %v1099 = vmul.f32 %v1078, %v717
        %v1100 = vmul.f32 %v1080, %v717
        %v1101 = vmul.f32 %v1082, %v717
        %v1102 = vmul.f32 %v1084, %v717
        %v1103 = vmul.f32 %v1086, %v717
        %v1104 = vmul.f32 %v1088, %v717
        %v1105 = vmul.f32 %v1090, %v717
        %v1106 = vmul.f32 %v1092, %v717
        %v1107 = vmul.f32 %v1094, %v717
        %v1108 = vadd.f32 %v1095, 1e-05
        %v1109 = vadd.f32 %v1096, 1e-05
        %v1110 = vadd.f32 %v1097, 1e-05
        %v1111 = vadd.f32 %v1098, 1e-05
        %v1112 = vadd.f32 %v1099, 1e-05
        %v1113 = vadd.f32 %v1100, 1e-05
        %v1114 = vadd.f32 %v1101, 1e-05
        %v1115 = vadd.f32 %v1102, 1e-05
        %v1116 = vadd.f32 %v1103, 1e-05
        %v1117 = vadd.f32 %v1104, 1e-05
        %v1118 = vadd.f32 %v1105, 1e-05
        %v1119 = vadd.f32 %v1106, 1e-05
        %v1120 = vadd.f32 %v1107, 1e-05
        %v1121 = vrsqrt.pop %v1108
        %v1122 = vrsqrt.pop %v1109
        %v1123 = vrsqrt.pop %v1110
        %v1124 = vrsqrt.pop %v1111
        %v1125 = vrsqrt.pop %v1112
        %v1126 = vrsqrt.pop %v1113
        %v1127 = vrsqrt.pop %v1114
        %v1128 = vrsqrt.pop %v1115
        %v1129 = vrsqrt.pop %v1116
        %v1130 = vrsqrt.pop %v1117
        %v1131 = vrsqrt.pop %v1118
        %v1132 = vrsqrt.pop %v1119
        %v1133 = vrsqrt.pop %v1120
        %v1134 = vmul.f32 %v1043, %v1121
        %v1135 = vmul.f32 %v1044, %v1122
        %v1136 = vmul.f32 %v1045, %v1123
        %v1137 = vmul.f32 %v1046, %v1124
        %v1138 = vmul.f32 %v1047, %v1125
        %v1139 = vmul.f32 %v1048, %v1126
        %v1140 = vmul.f32 %v1049, %v1127
        %v1141 = vmul.f32 %v1050, %v1128
        %v1142 = vmul.f32 %v1051, %v1129
        %v1143 = vmul.f32 %v1052, %v1130
        %v1144 = vmul.f32 %v1053, %v1131
        %v1145 = vmul.f32 %v1054, %v1132
        %v1146 = vmul.f32 %v1055, %v1133
        %v1147 = vmax.f32 %v1134, 0.0
        %v1148 = vmax.f32 %v1135, 0.0
        %v1149 = vmax.f32 %v1136, 0.0
        %v1150 = vmax.f32 %v1137, 0.0
        %v1151 = vmax.f32 %v1138, 0.0
        %v1152 = vmax.f32 %v1139, 0.0
        %v1153 = vmax.f32 %v1140, 0.0
        %v1154 = vmax.f32 %v1141, 0.0
        %v1155 = vmax.f32 %v1142, 0.0
        %v1156 = vmax.f32 %v1143, 0.0
        %v1157 = vmax.f32 %v1144, 0.0
        %v1158 = vmax.f32 %v1145, 0.0
        %v1159 = vmax.f32 %v1146, 0.0
        %v1160 = vpack.c.bf16 %v836, %v835
        %v1161 = vpack.c.bf16 %v992, %v991
        %v1162 = vpack.c.bf16 %v1148, %v1147
        %v1163 = vpack.c.bf16 %v838, %v837
        %v1164 = vpack.c.bf16 %v994, %v993
        %v1165 = vpack.c.bf16 %v1150, %v1149
        %v1166 = vpack.c.bf16 %v840, %v839
        %v1167 = vpack.c.bf16 %v996, %v995
        %v1168 = vpack.c.bf16 %v1152, %v1151
        %v1169 = vpack.c.bf16 %v842, %v841
        %v1170 = vpack.c.bf16 %v998, %v997
        %v1171 = vpack.c.bf16 %v1154, %v1153
        %v1172 = vpack.c.bf16 %v844, %v843
        %v1173 = vpack.c.bf16 %v1000, %v999
        %v1174 = vpack.c.bf16 %v1156, %v1155
        %v1175 = vpack.c.bf16 %v846, %v845
        %v1176 = vpack.c.bf16 %v1002, %v1001
        %v1177 = vpack.c.bf16 %v1158, %v1157
        %v1178 = vpack.c.bf16 %v847, %v847
        %v1179 = vpack.c.bf16 %v1003, %v1003
        %v1180 = vpack.c.bf16 %v1159, %v1159
        %v1181 = vld [vmem:[%s4] sm:$0xff]
        %v1182 = vld [vmem:[%s4 + $0x8] sm:$0xf]
        %v1183 = vld [vmem:[%s4 + $0xc] sm:$0xff]
        %v1184 = vld [vmem:[%s4 + $0x14] sm:$0xf]
        %v1185 = vld [vmem:[%s4 + $0x18] sm:$0xff]
        %v1186 = vld [vmem:[%s4 + $0x20] sm:$0xf]
        %v1187 = vld [vmem:[%s4 + $0x24] sm:$0xff]
        %v1188 = vld [vmem:[%s4 + $0x2c] sm:$0xf]
        %v1189 = vld [vmem:[%s4 + $0x30] sm:$0xff]
        %v1190 = vld [vmem:[%s4 + $0x38] sm:$0xf]
        %v1191 = vld [vmem:[%s4 + $0x3c] sm:$0xff]
        %v1192 = vld [vmem:[%s4 + $0x44] sm:$0xf]
        %v1193 = vld [vmem:[%s4 + $0x48] sm:$0xff]
        %v1194 = vld [vmem:[%s4 + $0x50] sm:$0xf]
        %v1195 = vld [vmem:[%s4 + $0x54] sm:$0xff]
        %v1196 = vld [vmem:[%s4 + $0x5c] sm:$0xf]
        %v1197 = vld [vmem:[%s4 + $0x60] sm:$0xff]
        %v1198 = vld [vmem:[%s4 + $0x68] sm:$0xf]
        %v1199 = vld [vmem:[%s4 + $0x6c] sm:$0xff]
        %v1200 = vld [vmem:[%s4 + $0x74] sm:$0xf]
        %v1201 = vld [vmem:[%s4 + $0x78] sm:$0xff]
        %v1202 = vld [vmem:[%s4 + $0x80] sm:$0xf]
        %v1203 = vld [vmem:[%s4 + $0x84] sm:$0xff]
        %v1204 = vld [vmem:[%s4 + $0x8c] sm:$0xf]
        %v1205 = vld [vmem:[%s4 + $0x90] sm:$0xff]
        %v1206 = vld [vmem:[%s4 + $0x98] sm:$0xf]
        %v1207 = vld [vmem:[%s4 + $0x9c] sm:$0xff]
        %v1208 = vld [vmem:[%s4 + $0xa4] sm:$0xf]
        %v1209 = vld [vmem:[%s4 + $0xa8] sm:$0xff]
        %v1210 = vld [vmem:[%s4 + $0xb0] sm:$0xf]
        %v1211 = vld [vmem:[%s4 + $0xb4] sm:$0xff]
        %v1212 = vld [vmem:[%s4 + $0xbc] sm:$0xf]
        %v1213 = vld [vmem:[%s4 + $0xc0] sm:$0xff]
        %v1214 = vld [vmem:[%s4 + $0xc8] sm:$0xf]
        %v1215 = vld [vmem:[%s4 + $0xcc] sm:$0xff]
        %v1216 = vld [vmem:[%s4 + $0xd4] sm:$0xf]
        %v1217 = vld [vmem:[%s4 + $0xd8] sm:$0xff]
        %v1218 = vld [vmem:[%s4 + $0xe0] sm:$0xf]
        %v1219 = vld [vmem:[%s4 + $0xe4] sm:$0xff]
        %v1220 = vld [vmem:[%s4 + $0xec] sm:$0xf]
        %v1221 = vld [vmem:[%s4 + $0xf0] sm:$0xff]
        %v1222 = vld [vmem:[%s4 + $0xf8] sm:$0xf]
        %v1223 = vld [vmem:[%s4 + $0xfc] sm:$0xff]
        %v1224 = vld [vmem:[%s4 + $0x104] sm:$0xf]
        %v1225 = vld [vmem:[%s4 + $0x108] sm:$0xff]
        %v1226 = vld [vmem:[%s4 + $0x110] sm:$0xf]
        %v1227 = vld [vmem:[%s4 + $0x114] sm:$0xff]
        %v1228 = vld [vmem:[%s4 + $0x11c] sm:$0xf]
        %v1229 = vld [vmem:[%s4 + $0x120] sm:$0xff]
        %v1230 = vld [vmem:[%s4 + $0x128] sm:$0xf]
        %v1231 = vld [vmem:[%s4 + $0x12c] sm:$0xff]
        %v1232 = vld [vmem:[%s4 + $0x134] sm:$0xf]
        %v1233 = vld [vmem:[%s4 + $0x138] sm:$0xff]
        %v1234 = vld [vmem:[%s4 + $0x140] sm:$0xf]
        %v1235 = vld [vmem:[%s4 + $0x144] sm:$0xff]
        %v1236 = vld [vmem:[%s4 + $0x14c] sm:$0xf]
        %v1237 = vld [vmem:[%s4 + $0x150] sm:$0xff]
        %v1238 = vld [vmem:[%s4 + $0x158] sm:$0xf]
        %v1239 = vld [vmem:[%s4 + $0x15c] sm:$0xff]
        %v1240 = vld [vmem:[%s4 + $0x164] sm:$0xf]
        %v1241 = vld [vmem:[%s4 + $0x168] sm:$0xff]
        %v1242 = vld [vmem:[%s4 + $0x170] sm:$0xf]
        %v1243 = vld [vmem:[%s4 + $0x174] sm:$0xff]
        %v1244 = vld [vmem:[%s4 + $0x17c] sm:$0xf]
        %v1245 = vld [vmem:[%s4 + $0x180] sm:$0xff]
        %v1246 = vld [vmem:[%s4 + $0x188] sm:$0xf]
        %v1247 = vld [vmem:[%s4 + $0x18c] sm:$0xff]
        %v1248 = vld [vmem:[%s4 + $0x194] sm:$0xf]
        %v1249 = vld [vmem:[%s4 + $0x198] sm:$0xff]
        %v1250 = vld [vmem:[%s4 + $0x1a0] sm:$0xf]
        %v1251 = vld [vmem:[%s4 + $0x1a4] sm:$0xff]
        %v1252 = vld [vmem:[%s4 + $0x1ac] sm:$0xf]
        %v1253 = vld [vmem:[%s4 + $0x1b0] sm:$0xff]
        %v1254 = vld [vmem:[%s4 + $0x1b8] sm:$0xf]
        %v1255 = vld [vmem:[%s4 + $0x1bc] sm:$0xff]
        %v1256 = vld [vmem:[%s4 + $0x1c4] sm:$0xf]
        %v1257 = vld [vmem:[%s4 + $0x1c8] sm:$0xff]
        %v1258 = vld [vmem:[%s4 + $0x1d0] sm:$0xf]
        %v1259 = vld [vmem:[%s4 + $0x1d4] sm:$0xff]
        %v1260 = vld [vmem:[%s4 + $0x1dc] sm:$0xf]
        %v1261 = vld [vmem:[%s4 + $0x1e0] sm:$0xff]
        %v1262 = vld [vmem:[%s4 + $0x1e8] sm:$0xf]
        %v1263 = vld [vmem:[%s4 + $0x1ec] sm:$0xff]
        %v1264 = vld [vmem:[%s4 + $0x1f4] sm:$0xf]
        %v1265 = vld [vmem:[%s4 + $0x1f8] sm:$0xff]
        %v1266 = vld [vmem:[%s4 + $0x200] sm:$0xf]
        %v1267 = vld [vmem:[%s4 + $0x204] sm:$0xff]
        %v1268 = vld [vmem:[%s4 + $0x20c] sm:$0xf]
        %v1269 = vld [vmem:[%s4 + $0x210] sm:$0xff]
        %v1270 = vld [vmem:[%s4 + $0x218] sm:$0xf]
        %v1271 = vld [vmem:[%s4 + $0x21c] sm:$0xff]
        %v1272 = vld [vmem:[%s4 + $0x224] sm:$0xf]
        %v1273 = vld [vmem:[%s4 + $0x228] sm:$0xff]
        %v1274 = vld [vmem:[%s4 + $0x230] sm:$0xf]
        %v1275 = vld [vmem:[%s4 + $0x234] sm:$0xff]
        %v1276 = vld [vmem:[%s4 + $0x23c] sm:$0xf]
        %v1277 = vld [vmem:[%s5] sm:$0x7]
        %v1279 = vlaneseq
        %v1280 = vshrl.u32 %v1279, 7
        %v1281 = vsub.s32 0, %v1280
        %v1282 = vrot.slane %v1277, %v1281
        %v1283 = vlaneseq
        %v1284 = vshrl.u32 %v1283, 7
        %v1285 = vsub.s32 1, %v1284
        %v1286 = vrot.slane %v1277, %v1285
        %v1287 = vlaneseq
        %v1288 = vshrl.u32 %v1287, 7
        %v1289 = vsub.s32 2, %v1288
        %v1290 = vrot.slane %v1277, %v1289
        %v1390 = vunpack.c.l.b16 %v1181
        %v1391 = vunpack.c.h.b16 %v1181
        %v1392 = vunpack.c.l.b16 %v1182
        %v1393 = vunpack.c.l.b16 %v1183
        %v1394 = vunpack.c.h.b16 %v1183
        %v1395 = vunpack.c.l.b16 %v1184
        %v1396 = vunpack.c.l.b16 %v1185
        %v1397 = vunpack.c.h.b16 %v1185
        %v1398 = vunpack.c.l.b16 %v1186
        %v1399 = vunpack.c.l.b16 %v1187
        %v1400 = vunpack.c.h.b16 %v1187
        %v1401 = vunpack.c.l.b16 %v1188
        %v1402 = vunpack.c.l.b16 %v1189
        %v1403 = vunpack.c.h.b16 %v1189
        %v1404 = vunpack.c.l.b16 %v1190
        %v1405 = vunpack.c.l.b16 %v1191
        %v1406 = vunpack.c.h.b16 %v1191
        %v1407 = vunpack.c.l.b16 %v1192
        %v1408 = vunpack.c.l.b16 %v1193
        %v1409 = vunpack.c.h.b16 %v1193
        %v1410 = vunpack.c.l.b16 %v1194
        %v1411 = vunpack.c.l.b16 %v1195
        %v1412 = vunpack.c.h.b16 %v1195
        %v1413 = vunpack.c.l.b16 %v1196
        %v1414 = vunpack.c.l.b16 %v1197
        %v1415 = vunpack.c.h.b16 %v1197
        %v1416 = vunpack.c.l.b16 %v1198
        %v1417 = vunpack.c.l.b16 %v1199
        %v1418 = vunpack.c.h.b16 %v1199
        %v1419 = vunpack.c.l.b16 %v1200
        %v1420 = vunpack.c.l.b16 %v1201
        %v1421 = vunpack.c.h.b16 %v1201
        %v1422 = vunpack.c.l.b16 %v1202
        %v1423 = vunpack.c.l.b16 %v1203
        %v1424 = vunpack.c.h.b16 %v1203
        %v1425 = vunpack.c.l.b16 %v1204
        %v1426 = vunpack.c.l.b16 %v1205
        %v1427 = vunpack.c.h.b16 %v1205
        %v1428 = vunpack.c.l.b16 %v1206
        %v1429 = vunpack.c.l.b16 %v1207
        %v1430 = vunpack.c.h.b16 %v1207
        %v1431 = vunpack.c.l.b16 %v1208
        %v1432 = vunpack.c.l.b16 %v1209
        %v1433 = vunpack.c.h.b16 %v1209
        %v1434 = vunpack.c.l.b16 %v1210
        %v1435 = vunpack.c.l.b16 %v1211
        %v1436 = vunpack.c.h.b16 %v1211
        %v1437 = vunpack.c.l.b16 %v1212
        %v1438 = vunpack.c.l.b16 %v1213
        %v1439 = vunpack.c.h.b16 %v1213
        %v1440 = vunpack.c.l.b16 %v1214
        %v1441 = vunpack.c.l.b16 %v1215
        %v1442 = vunpack.c.h.b16 %v1215
        %v1443 = vunpack.c.l.b16 %v1216
        %v1444 = vunpack.c.l.b16 %v1217
        %v1445 = vunpack.c.h.b16 %v1217
        %v1446 = vunpack.c.l.b16 %v1218
        %v1447 = vunpack.c.l.b16 %v1219
        %v1448 = vunpack.c.h.b16 %v1219
        %v1449 = vunpack.c.l.b16 %v1220
        %v1450 = vunpack.c.l.b16 %v1221
        %v1451 = vunpack.c.h.b16 %v1221
        %v1452 = vunpack.c.l.b16 %v1222
        %v1453 = vunpack.c.l.b16 %v1223
        %v1454 = vunpack.c.h.b16 %v1223
        %v1455 = vunpack.c.l.b16 %v1224
        %v1456 = vunpack.c.l.b16 %v1225
        %v1457 = vunpack.c.h.b16 %v1225
        %v1458 = vunpack.c.l.b16 %v1226
        %v1459 = vunpack.c.l.b16 %v1227
        %v1460 = vunpack.c.h.b16 %v1227
        %v1461 = vunpack.c.l.b16 %v1228
        %v1462 = vunpack.c.l.b16 %v1229
        %v1463 = vunpack.c.h.b16 %v1229
        %v1464 = vunpack.c.l.b16 %v1230
        %v1465 = vunpack.c.l.b16 %v1231
        %v1466 = vunpack.c.h.b16 %v1231
        %v1467 = vunpack.c.l.b16 %v1232
        %v1468 = vunpack.c.l.b16 %v1233
        %v1469 = vunpack.c.h.b16 %v1233
        %v1470 = vunpack.c.l.b16 %v1234
        %v1471 = vunpack.c.l.b16 %v1235
        %v1472 = vunpack.c.h.b16 %v1235
        %v1473 = vunpack.c.l.b16 %v1236
        %v1474 = vunpack.c.l.b16 %v1237
        %v1475 = vunpack.c.h.b16 %v1237
        %v1476 = vunpack.c.l.b16 %v1238
        %v1477 = vunpack.c.l.b16 %v1239
        %v1478 = vunpack.c.h.b16 %v1239
        %v1479 = vunpack.c.l.b16 %v1240
        %v1480 = vunpack.c.l.b16 %v1241
        %v1481 = vunpack.c.h.b16 %v1241
        %v1482 = vunpack.c.l.b16 %v1242
        %v1483 = vunpack.c.l.b16 %v1243
        %v1484 = vunpack.c.h.b16 %v1243
        %v1485 = vunpack.c.l.b16 %v1244
        %v1486 = vunpack.c.l.b16 %v1245
        %v1487 = vunpack.c.h.b16 %v1245
        %v1488 = vunpack.c.l.b16 %v1246
        %v1489 = vunpack.c.l.b16 %v1247
        %v1490 = vunpack.c.h.b16 %v1247
        %v1491 = vunpack.c.l.b16 %v1248
        %v1492 = vunpack.c.l.b16 %v1249
        %v1493 = vunpack.c.h.b16 %v1249
        %v1494 = vunpack.c.l.b16 %v1250
        %v1495 = vunpack.c.l.b16 %v1251
        %v1496 = vunpack.c.h.b16 %v1251
        %v1497 = vunpack.c.l.b16 %v1252
        %v1498 = vunpack.c.l.b16 %v1253
        %v1499 = vunpack.c.h.b16 %v1253
        %v1500 = vunpack.c.l.b16 %v1254
        %v1501 = vunpack.c.l.b16 %v1255
        %v1502 = vunpack.c.h.b16 %v1255
        %v1503 = vunpack.c.l.b16 %v1256
        %v1504 = vunpack.c.l.b16 %v1257
        %v1505 = vunpack.c.h.b16 %v1257
        %v1506 = vunpack.c.l.b16 %v1258
        %v1507 = vunpack.c.l.b16 %v1259
        %v1508 = vunpack.c.h.b16 %v1259
        %v1509 = vunpack.c.l.b16 %v1260
        %v1510 = vunpack.c.l.b16 %v1261
        %v1511 = vunpack.c.h.b16 %v1261
        %v1512 = vunpack.c.l.b16 %v1262
        %v1513 = vunpack.c.l.b16 %v1263
        %v1514 = vunpack.c.h.b16 %v1263
        %v1515 = vunpack.c.l.b16 %v1264
        %v1516 = vunpack.c.l.b16 %v1265
        %v1517 = vunpack.c.h.b16 %v1265
        %v1518 = vunpack.c.l.b16 %v1266
        %v1519 = vunpack.c.l.b16 %v1267
        %v1520 = vunpack.c.h.b16 %v1267
        %v1521 = vunpack.c.l.b16 %v1268
        %v1522 = vunpack.c.l.b16 %v1269
        %v1523 = vunpack.c.h.b16 %v1269
        %v1524 = vunpack.c.l.b16 %v1270
        %v1525 = vunpack.c.l.b16 %v1271
        %v1526 = vunpack.c.h.b16 %v1271
        %v1527 = vunpack.c.l.b16 %v1272
        %v1528 = vunpack.c.l.b16 %v1273
        %v1529 = vunpack.c.h.b16 %v1273
        %v1530 = vunpack.c.l.b16 %v1274
        %v1531 = vunpack.c.l.b16 %v1275
        %v1532 = vunpack.c.h.b16 %v1275
        %v1533 = vunpack.c.l.b16 %v1276
        %v1534 = vpack.c.b16 %v1393, %v1390
        %v1535 = vpack.c.b16 %v1394, %v1391
        %v1536 = vpack.c.b16 %v1395, %v1392
        %v1537 = vpack.c.b16 %v1399, %v1396
        %v1538 = vpack.c.b16 %v1400, %v1397
        %v1539 = vpack.c.b16 %v1401, %v1398
        %v1540 = vpack.c.b16 %v1405, %v1402
        %v1541 = vpack.c.b16 %v1406, %v1403
        %v1542 = vpack.c.b16 %v1407, %v1404
        %v1543 = vpack.c.b16 %v1411, %v1408
        %v1544 = vpack.c.b16 %v1412, %v1409
        %v1545 = vpack.c.b16 %v1413, %v1410
        %v1546 = vpack.c.b16 %v1417, %v1414
        %v1547 = vpack.c.b16 %v1418, %v1415
        %v1548 = vpack.c.b16 %v1419, %v1416
        %v1549 = vpack.c.b16 %v1423, %v1420
        %v1550 = vpack.c.b16 %v1424, %v1421
        %v1551 = vpack.c.b16 %v1425, %v1422
        %v1552 = vpack.c.b16 %v1429, %v1426
        %v1553 = vpack.c.b16 %v1430, %v1427
        %v1554 = vpack.c.b16 %v1431, %v1428
        %v1555 = vpack.c.b16 %v1435, %v1432
        %v1556 = vpack.c.b16 %v1436, %v1433
        %v1557 = vpack.c.b16 %v1437, %v1434
        %v1558 = vpack.c.b16 %v1441, %v1438
        %v1559 = vpack.c.b16 %v1442, %v1439
        %v1560 = vpack.c.b16 %v1443, %v1440
        %v1561 = vpack.c.b16 %v1447, %v1444
        %v1562 = vpack.c.b16 %v1448, %v1445
        %v1563 = vpack.c.b16 %v1449, %v1446
        %v1564 = vpack.c.b16 %v1453, %v1450
        %v1565 = vpack.c.b16 %v1454, %v1451
        %v1566 = vpack.c.b16 %v1455, %v1452
        %v1567 = vpack.c.b16 %v1459, %v1456
        %v1568 = vpack.c.b16 %v1460, %v1457
        %v1569 = vpack.c.b16 %v1461, %v1458
        %v1570 = vpack.c.b16 %v1465, %v1462
        %v1571 = vpack.c.b16 %v1466, %v1463
        %v1572 = vpack.c.b16 %v1467, %v1464
        %v1573 = vpack.c.b16 %v1471, %v1468
        %v1574 = vpack.c.b16 %v1472, %v1469
        %v1575 = vpack.c.b16 %v1473, %v1470
        %v1576 = vpack.c.b16 %v1477, %v1474
        %v1577 = vpack.c.b16 %v1478, %v1475
        %v1578 = vpack.c.b16 %v1479, %v1476
        %v1579 = vpack.c.b16 %v1483, %v1480
        %v1580 = vpack.c.b16 %v1484, %v1481
        %v1581 = vpack.c.b16 %v1485, %v1482
        %v1582 = vpack.c.b16 %v1489, %v1486
        %v1583 = vpack.c.b16 %v1490, %v1487
        %v1584 = vpack.c.b16 %v1491, %v1488
        %v1585 = vpack.c.b16 %v1495, %v1492
        %v1586 = vpack.c.b16 %v1496, %v1493
        %v1587 = vpack.c.b16 %v1497, %v1494
        %v1588 = vpack.c.b16 %v1501, %v1498
        %v1589 = vpack.c.b16 %v1502, %v1499
        %v1590 = vpack.c.b16 %v1503, %v1500
        %v1591 = vpack.c.b16 %v1507, %v1504
        %v1592 = vpack.c.b16 %v1508, %v1505
        %v1593 = vpack.c.b16 %v1509, %v1506
        %v1594 = vpack.c.b16 %v1513, %v1510
        %v1595 = vpack.c.b16 %v1514, %v1511
        %v1596 = vpack.c.b16 %v1515, %v1512
        %v1597 = vpack.c.b16 %v1519, %v1516
        %v1598 = vpack.c.b16 %v1520, %v1517
        %v1599 = vpack.c.b16 %v1521, %v1518
        %v1600 = vpack.c.b16 %v1525, %v1522
        %v1601 = vpack.c.b16 %v1526, %v1523
        %v1602 = vpack.c.b16 %v1527, %v1524
        %v1603 = vpack.c.b16 %v1531, %v1528
        %v1604 = vpack.c.b16 %v1532, %v1529
        %v1605 = vpack.c.b16 %v1533, %v1530
        %1678 = vmatprep.subr.bf16.mxu0 %v1556
        %1679 = vmatpush1.bf16.msra.mxu0 %v1555
        %1680 = vmatprep.subr.bf16.mxu0 %v1553
        %1681 = vmatpush1.bf16.msra.mxu0 %v1552
        %1682 = vmatprep.subr.bf16.mxu0 %v1550
        %1683 = vmatpush1.bf16.msra.mxu0 %v1549
        %1684 = vmatprep.subr.bf16.mxu0 %v1547
        %1685 = vmatpush1.bf16.msra.mxu0 %v1546
        %1686 = vmatprep.subr.bf16.mxu0 %v1544
        %1687 = vmatpush1.bf16.msra.mxu0 %v1543
        %1688 = vmatprep.subr.bf16.mxu0 %v1541
        %1689 = vmatpush1.bf16.msra.mxu0 %v1540
        %1690 = vmatprep.subr.bf16.mxu0 %v1538
        %1691 = vmatpush1.bf16.msra.mxu0 %v1537
        %1692 = vmatprep.subr.bf16.mxu0 %v1535
        %1693 = vmatpush1.bf16.msra.mxu0 %v1534
        %1694 = vmatprep.subr.bf16.mxu0 %v1580
        %1695 = vmatpush2.bf16.msra.mxu0 %v1579
        %1696 = vmatprep.subr.bf16.mxu0 %v1577
        %1697 = vmatpush2.bf16.msra.mxu0 %v1576
        %1698 = vmatprep.subr.bf16.mxu0 %v1574
        %1699 = vmatpush2.bf16.msra.mxu0 %v1573
        %1700 = vmatprep.subr.bf16.mxu0 %v1571
        %1701 = vmatpush2.bf16.msra.mxu0 %v1570
        %1702 = vmatprep.subr.bf16.mxu0 %v1568
        %1703 = vmatpush2.bf16.msra.mxu0 %v1567
        %1704 = vmatprep.subr.bf16.mxu0 %v1565
        %1705 = vmatpush2.bf16.msra.mxu0 %v1564
        %1706 = vmatprep.subr.bf16.mxu0 %v1562
        %1707 = vmatpush2.bf16.msra.mxu0 %v1561
        %1708 = vmatprep.subr.bf16.mxu0 %v1559
        %1709 = vmatpush2.bf16.msra.mxu0 %v1558
        %1710 = vmatprep.mubr.bf16.mxu0 %v1161
        %1711 = vmatmul.mubr.bf16.gmra.mxu0 %v1160
        %v1712 = vpop.f32.mrf.mxu0
        %v1713 = vadd.f32 %v1282, %v1712
        %v1714 = vpop.f32.mrf.mxu0
        %v1715 = vadd.f32 %v1286, %v1714
        %v1716 = vpop.f32.mrf.mxu0
        %v1717 = vadd.f32 %v1282, %v1716
        %v1718 = vpop.f32.mrf.mxu0
        %v1719 = vadd.f32 %v1286, %v1718
        %1720 = vmatprep.mubr.bf16.mxu0 %v1164
        %1721 = vmatmul.mubr.bf16.gmra.mxu0 %v1163
        %v1722 = vpop.f32.mrf.mxu0
        %v1723 = vadd.f32 %v1282, %v1722
        %v1724 = vpop.f32.mrf.mxu0
        %v1725 = vadd.f32 %v1286, %v1724
        %v1726 = vpop.f32.mrf.mxu0
        %v1727 = vadd.f32 %v1282, %v1726
        %v1728 = vpop.f32.mrf.mxu0
        %v1729 = vadd.f32 %v1286, %v1728
        %1730 = vmatprep.mubr.bf16.mxu0 %v1167
        %1731 = vmatmul.mubr.bf16.gmra.mxu0 %v1166
        %v1732 = vpop.f32.mrf.mxu0
        %v1733 = vadd.f32 %v1282, %v1732
        %v1734 = vpop.f32.mrf.mxu0
        %v1735 = vadd.f32 %v1286, %v1734
        %v1736 = vpop.f32.mrf.mxu0
        %v1737 = vadd.f32 %v1282, %v1736
        %v1738 = vpop.f32.mrf.mxu0
        %v1739 = vadd.f32 %v1286, %v1738
        %1740 = vmatprep.mubr.bf16.mxu0 %v1170
        %1741 = vmatmul.mubr.bf16.gmra.mxu0 %v1169
        %v1742 = vpop.f32.mrf.mxu0
        %v1743 = vadd.f32 %v1282, %v1742
        %v1744 = vpop.f32.mrf.mxu0
        %v1745 = vadd.f32 %v1286, %v1744
        %v1746 = vpop.f32.mrf.mxu0
        %v1747 = vadd.f32 %v1282, %v1746
        %v1748 = vpop.f32.mrf.mxu0
        %v1749 = vadd.f32 %v1286, %v1748
        %1750 = vmatprep.mubr.bf16.mxu0 %v1173
        %1751 = vmatmul.mubr.bf16.gmra.mxu0 %v1172
        %v1752 = vpop.f32.mrf.mxu0
        %v1753 = vadd.f32 %v1282, %v1752
        %v1754 = vpop.f32.mrf.mxu0
        %v1755 = vadd.f32 %v1286, %v1754
        %v1756 = vpop.f32.mrf.mxu0
        %v1757 = vadd.f32 %v1282, %v1756
        %v1758 = vpop.f32.mrf.mxu0
        %v1759 = vadd.f32 %v1286, %v1758
        %1760 = vmatprep.mubr.bf16.mxu0 %v1176
        %1761 = vmatmul.mubr.bf16.gmra.mxu0 %v1175
        %v1762 = vpop.f32.mrf.mxu0
        %v1763 = vadd.f32 %v1282, %v1762
        %v1764 = vpop.f32.mrf.mxu0
        %v1765 = vadd.f32 %v1286, %v1764
        %v1766 = vpop.f32.mrf.mxu0
        %v1767 = vadd.f32 %v1282, %v1766
        %v1768 = vpop.f32.mrf.mxu0
        %v1769 = vadd.f32 %v1286, %v1768
        %1770 = vmatprep.mubr.bf16.mxu0 %v1179
        %1771 = vmatmul.mubr.bf16.gmra.mxu0 %v1178
        %v1772 = vpop.f32.mrf.mxu0
        %v1773 = vadd.f32 %v1282, %v1772
        %v1774 = vpop.f32.mrf.mxu0
        %v1775 = vadd.f32 %v1286, %v1774
        %v1776 = vpop.f32.mrf.mxu0
        %v1777 = vpop.f32.mrf.mxu0
        %1778 = vdwg.mxu0
        %1779 = vmatprep.subr.bf16.mxu0 %v1604
        %1780 = vmatpush1.bf16.msra.mxu0 %v1603
        %1781 = vmatprep.subr.bf16.mxu0 %v1601
        %1782 = vmatpush1.bf16.msra.mxu0 %v1600
        %1783 = vmatprep.subr.bf16.mxu0 %v1598
        %1784 = vmatpush1.bf16.msra.mxu0 %v1597
        %1785 = vmatprep.subr.bf16.mxu0 %v1595
        %1786 = vmatpush1.bf16.msra.mxu0 %v1594
        %1787 = vmatprep.subr.bf16.mxu0 %v1592
        %1788 = vmatpush1.bf16.msra.mxu0 %v1591
        %1789 = vmatprep.subr.bf16.mxu0 %v1589
        %1790 = vmatpush1.bf16.msra.mxu0 %v1588
        %1791 = vmatprep.subr.bf16.mxu0 %v1586
        %1792 = vmatpush1.bf16.msra.mxu0 %v1585
        %1793 = vmatprep.subr.bf16.mxu0 %v1583
        %1794 = vmatpush1.bf16.msra.mxu0 %v1582
        %1795 = vmatprep.subr.bf16.mxu0 0
        %1796 = vmatpush2.bf16.msra.mxu0 0
        %1797 = vmatprep.subr.bf16.mxu0 0
        %1798 = vmatpush2.bf16.msra.mxu0 0
        %1799 = vmatprep.subr.bf16.mxu0 0
        %1800 = vmatpush2.bf16.msra.mxu0 0
        %1801 = vmatprep.subr.bf16.mxu0 0
        %1802 = vmatpush2.bf16.msra.mxu0 0
        %1803 = vmatprep.subr.bf16.mxu0 0
        %1804 = vmatpush2.bf16.msra.mxu0 0
        %1805 = vmatprep.subr.bf16.mxu0 0
        %1806 = vmatpush2.bf16.msra.mxu0 0
        %1807 = vmatprep.subr.bf16.mxu0 0
        %1808 = vmatpush2.bf16.msra.mxu0 0
        %1809 = vmatprep.subr.bf16.mxu0 0
        %1810 = vmatpush2.bf16.msra.mxu0 0
        %1811 = vmatprep.mubr.bf16.mxu0 0
        %1812 = vmatmul.mubr.bf16.gmra.mxu0 %v1162
        %v1813 = vpop.f32.mrf.mxu0
        %v1814 = vadd.f32 %v1713, %v1813
        %v1815 = vpop.f32.mrf.mxu0
        %v1816 = vadd.f32 %v1715, %v1815
        %v1817 = vpop.f32.mrf.mxu0
        %v1818 = vadd.f32 %v1717, %v1817
        %v1819 = vpop.f32.mrf.mxu0
        %v1820 = vadd.f32 %v1719, %v1819
        %1821 = vmatprep.mubr.bf16.mxu0 0
        %1822 = vmatmul.mubr.bf16.gmra.mxu0 %v1165
        %v1823 = vpop.f32.mrf.mxu0
        %v1824 = vadd.f32 %v1723, %v1823
        %v1825 = vpop.f32.mrf.mxu0
        %v1826 = vadd.f32 %v1725, %v1825
        %v1827 = vpop.f32.mrf.mxu0
        %v1828 = vadd.f32 %v1727, %v1827
        %v1829 = vpop.f32.mrf.mxu0
        %v1830 = vadd.f32 %v1729, %v1829
        %1831 = vmatprep.mubr.bf16.mxu0 0
        %1832 = vmatmul.mubr.bf16.gmra.mxu0 %v1168
        %v1833 = vpop.f32.mrf.mxu0
        %v1834 = vadd.f32 %v1733, %v1833
        %v1835 = vpop.f32.mrf.mxu0
        %v1836 = vadd.f32 %v1735, %v1835
        %v1837 = vpop.f32.mrf.mxu0
        %v1838 = vadd.f32 %v1737, %v1837
        %v1839 = vpop.f32.mrf.mxu0
        %v1840 = vadd.f32 %v1739, %v1839
        %1841 = vmatprep.mubr.bf16.mxu0 0
        %1842 = vmatmul.mubr.bf16.gmra.mxu0 %v1171
        %v1843 = vpop.f32.mrf.mxu0
        %v1844 = vadd.f32 %v1743, %v1843
        %v1845 = vpop.f32.mrf.mxu0
        %v1846 = vadd.f32 %v1745, %v1845
        %v1847 = vpop.f32.mrf.mxu0
        %v1848 = vadd.f32 %v1747, %v1847
        %v1849 = vpop.f32.mrf.mxu0
        %v1850 = vadd.f32 %v1749, %v1849
        %1851 = vmatprep.mubr.bf16.mxu0 0
        %1852 = vmatmul.mubr.bf16.gmra.mxu0 %v1174
        %v1853 = vpop.f32.mrf.mxu0
        %v1854 = vadd.f32 %v1753, %v1853
        %v1855 = vpop.f32.mrf.mxu0
        %v1856 = vadd.f32 %v1755, %v1855
        %v1857 = vpop.f32.mrf.mxu0
        %v1858 = vadd.f32 %v1757, %v1857
        %v1859 = vpop.f32.mrf.mxu0
        %v1860 = vadd.f32 %v1759, %v1859
        %1861 = vmatprep.mubr.bf16.mxu0 0
        %1862 = vmatmul.mubr.bf16.gmra.mxu0 %v1177
        %v1863 = vpop.f32.mrf.mxu0
        %v1864 = vadd.f32 %v1763, %v1863
        %v1865 = vpop.f32.mrf.mxu0
        %v1866 = vadd.f32 %v1765, %v1865
        %v1867 = vpop.f32.mrf.mxu0
        %v1868 = vadd.f32 %v1767, %v1867
        %v1869 = vpop.f32.mrf.mxu0
        %v1870 = vadd.f32 %v1769, %v1869
        %1871 = vmatprep.mubr.bf16.mxu0 0
        %1872 = vmatmul.mubr.bf16.gmra.mxu0 %v1180
        %v1873 = vpop.f32.mrf.mxu0
        %v1874 = vadd.f32 %v1773, %v1873
        %v1875 = vpop.f32.mrf.mxu0
        %v1876 = vadd.f32 %v1775, %v1875
        %v1877 = vpop.f32.mrf.mxu0
        %v1878 = vpop.f32.mrf.mxu0
        %1879 = vdwg.mxu0
        %1880 = vmatprep.subr.bf16.mxu0 0
        %1881 = vmatpush1.bf16.msra.mxu0 %v1557
        %1882 = vmatprep.subr.bf16.mxu0 0
        %1883 = vmatpush1.bf16.msra.mxu0 %v1554
        %1884 = vmatprep.subr.bf16.mxu0 0
        %1885 = vmatpush1.bf16.msra.mxu0 %v1551
        %1886 = vmatprep.subr.bf16.mxu0 0
        %1887 = vmatpush1.bf16.msra.mxu0 %v1548
        %1888 = vmatprep.subr.bf16.mxu0 0
        %1889 = vmatpush1.bf16.msra.mxu0 %v1545
        %1890 = vmatprep.subr.bf16.mxu0 0
        %1891 = vmatpush1.bf16.msra.mxu0 %v1542
        %1892 = vmatprep.subr.bf16.mxu0 0
        %1893 = vmatpush1.bf16.msra.mxu0 %v1539
        %1894 = vmatprep.subr.bf16.mxu0 0
        %1895 = vmatpush1.bf16.msra.mxu0 %v1536
        %1896 = vmatprep.subr.bf16.mxu0 0
        %1897 = vmatpush2.bf16.msra.mxu0 %v1581
        %1898 = vmatprep.subr.bf16.mxu0 0
        %1899 = vmatpush2.bf16.msra.mxu0 %v1578
        %1900 = vmatprep.subr.bf16.mxu0 0
        %1901 = vmatpush2.bf16.msra.mxu0 %v1575
        %1902 = vmatprep.subr.bf16.mxu0 0
        %1903 = vmatpush2.bf16.msra.mxu0 %v1572
        %1904 = vmatprep.subr.bf16.mxu0 0
        %1905 = vmatpush2.bf16.msra.mxu0 %v1569
        %1906 = vmatprep.subr.bf16.mxu0 0
        %1907 = vmatpush2.bf16.msra.mxu0 %v1566
        %1908 = vmatprep.subr.bf16.mxu0 0
        %1909 = vmatpush2.bf16.msra.mxu0 %v1563
        %1910 = vmatprep.subr.bf16.mxu0 0
        %1911 = vmatpush2.bf16.msra.mxu0 %v1560
        %1912 = vmatprep.mubr.bf16.mxu0 %v1161
        %1913 = vmatmul.mubr.bf16.gmra.mxu0 %v1160
        %v1914 = vpop.f32.mrf.mxu0
        %v1915 = vadd.f32 %v1290, %v1914
        %v1916 = vpop.f32.mrf.mxu0
        %v1917 = vpop.f32.mrf.mxu0
        %v1918 = vadd.f32 %v1290, %v1917
        %v1919 = vpop.f32.mrf.mxu0
        %1920 = vmatprep.mubr.bf16.mxu0 %v1164
        %1921 = vmatmul.mubr.bf16.gmra.mxu0 %v1163
        %v1922 = vpop.f32.mrf.mxu0
        %v1923 = vadd.f32 %v1290, %v1922
        %v1924 = vpop.f32.mrf.mxu0
        %v1925 = vpop.f32.mrf.mxu0
        %v1926 = vadd.f32 %v1290, %v1925
        %v1927 = vpop.f32.mrf.mxu0
        %1928 = vmatprep.mubr.bf16.mxu0 %v1167
        %1929 = vmatmul.mubr.bf16.gmra.mxu0 %v1166
        %v1930 = vpop.f32.mrf.mxu0
        %v1931 = vadd.f32 %v1290, %v1930
        %v1932 = vpop.f32.mrf.mxu0
        %v1933 = vpop.f32.mrf.mxu0
        %v1934 = vadd.f32 %v1290, %v1933
        %v1935 = vpop.f32.mrf.mxu0
        %1936 = vmatprep.mubr.bf16.mxu0 %v1170
        %1937 = vmatmul.mubr.bf16.gmra.mxu0 %v1169
        %v1938 = vpop.f32.mrf.mxu0
        %v1939 = vadd.f32 %v1290, %v1938
        %v1940 = vpop.f32.mrf.mxu0
        %v1941 = vpop.f32.mrf.mxu0
        %v1942 = vadd.f32 %v1290, %v1941
        %v1943 = vpop.f32.mrf.mxu0
        %1944 = vmatprep.mubr.bf16.mxu0 %v1173
        %1945 = vmatmul.mubr.bf16.gmra.mxu0 %v1172
        %v1946 = vpop.f32.mrf.mxu0
        %v1947 = vadd.f32 %v1290, %v1946
        %v1948 = vpop.f32.mrf.mxu0
        %v1949 = vpop.f32.mrf.mxu0
        %v1950 = vadd.f32 %v1290, %v1949
        %v1951 = vpop.f32.mrf.mxu0
        %1952 = vmatprep.mubr.bf16.mxu0 %v1176
        %1953 = vmatmul.mubr.bf16.gmra.mxu0 %v1175
        %v1954 = vpop.f32.mrf.mxu0
        %v1955 = vadd.f32 %v1290, %v1954
        %v1956 = vpop.f32.mrf.mxu0
        %v1957 = vpop.f32.mrf.mxu0
        %v1958 = vadd.f32 %v1290, %v1957
        %v1959 = vpop.f32.mrf.mxu0
        %1960 = vmatprep.mubr.bf16.mxu0 %v1179
        %1961 = vmatmul.mubr.bf16.gmra.mxu0 %v1178
        %v1962 = vpop.f32.mrf.mxu0
        %v1963 = vadd.f32 %v1290, %v1962
        %v1964 = vpop.f32.mrf.mxu0
        %v1965 = vpop.f32.mrf.mxu0
        %v1966 = vpop.f32.mrf.mxu0
        %1967 = vdwg.mxu0
        %1968 = vmatprep.subr.bf16.mxu0 0
        %1969 = vmatpush1.bf16.msra.mxu0 %v1605
        %1970 = vmatprep.subr.bf16.mxu0 0
        %1971 = vmatpush1.bf16.msra.mxu0 %v1602
        %1972 = vmatprep.subr.bf16.mxu0 0
        %1973 = vmatpush1.bf16.msra.mxu0 %v1599
        %1974 = vmatprep.subr.bf16.mxu0 0
        %1975 = vmatpush1.bf16.msra.mxu0 %v1596
        %1976 = vmatprep.subr.bf16.mxu0 0
        %1977 = vmatpush1.bf16.msra.mxu0 %v1593
        %1978 = vmatprep.subr.bf16.mxu0 0
        %1979 = vmatpush1.bf16.msra.mxu0 %v1590
        %1980 = vmatprep.subr.bf16.mxu0 0
        %1981 = vmatpush1.bf16.msra.mxu0 %v1587
        %1982 = vmatprep.subr.bf16.mxu0 0
        %1983 = vmatpush1.bf16.msra.mxu0 %v1584
        %1984 = vmatprep.subr.bf16.mxu0 0
        %1985 = vmatpush2.bf16.msra.mxu0 0
        %1986 = vmatprep.subr.bf16.mxu0 0
        %1987 = vmatpush2.bf16.msra.mxu0 0
        %1988 = vmatprep.subr.bf16.mxu0 0
        %1989 = vmatpush2.bf16.msra.mxu0 0
        %1990 = vmatprep.subr.bf16.mxu0 0
        %1991 = vmatpush2.bf16.msra.mxu0 0
        %1992 = vmatprep.subr.bf16.mxu0 0
        %1993 = vmatpush2.bf16.msra.mxu0 0
        %1994 = vmatprep.subr.bf16.mxu0 0
        %1995 = vmatpush2.bf16.msra.mxu0 0
        %1996 = vmatprep.subr.bf16.mxu0 0
        %1997 = vmatpush2.bf16.msra.mxu0 0
        %1998 = vmatprep.subr.bf16.mxu0 0
        %1999 = vmatpush2.bf16.msra.mxu0 0
        %2000 = vmatprep.mubr.bf16.mxu0 0
        %2001 = vmatmul.mubr.bf16.gmra.mxu0 %v1162
        %v2002 = vpop.f32.mrf.mxu0
        %v2003 = vadd.f32 %v1915, %v2002
        %v2004 = vpop.f32.mrf.mxu0
        %v2005 = vpop.f32.mrf.mxu0
        %v2006 = vadd.f32 %v1918, %v2005
        %v2007 = vpop.f32.mrf.mxu0
        %2008 = vmatprep.mubr.bf16.mxu0 0
        %2009 = vmatmul.mubr.bf16.gmra.mxu0 %v1165
        %v2010 = vpop.f32.mrf.mxu0
        %v2011 = vadd.f32 %v1923, %v2010
        %v2012 = vpop.f32.mrf.mxu0
        %v2013 = vpop.f32.mrf.mxu0
        %v2014 = vadd.f32 %v1926, %v2013
        %v2015 = vpop.f32.mrf.mxu0
        %2016 = vmatprep.mubr.bf16.mxu0 0
        %2017 = vmatmul.mubr.bf16.gmra.mxu0 %v1168
        %v2018 = vpop.f32.mrf.mxu0
        %v2019 = vadd.f32 %v1931, %v2018
        %v2020 = vpop.f32.mrf.mxu0
        %v2021 = vpop.f32.mrf.mxu0
        %v2022 = vadd.f32 %v1934, %v2021
        %v2023 = vpop.f32.mrf.mxu0
        %2024 = vmatprep.mubr.bf16.mxu0 0
        %2025 = vmatmul.mubr.bf16.gmra.mxu0 %v1171
        %v2026 = vpop.f32.mrf.mxu0
        %v2027 = vadd.f32 %v1939, %v2026
        %v2028 = vpop.f32.mrf.mxu0
        %v2029 = vpop.f32.mrf.mxu0
        %v2030 = vadd.f32 %v1942, %v2029
        %v2031 = vpop.f32.mrf.mxu0
        %2032 = vmatprep.mubr.bf16.mxu0 0
        %2033 = vmatmul.mubr.bf16.gmra.mxu0 %v1174
        %v2034 = vpop.f32.mrf.mxu0
        %v2035 = vadd.f32 %v1947, %v2034
        %v2036 = vpop.f32.mrf.mxu0
        %v2037 = vpop.f32.mrf.mxu0
        %v2038 = vadd.f32 %v1950, %v2037
        %v2039 = vpop.f32.mrf.mxu0
        %2040 = vmatprep.mubr.bf16.mxu0 0
        %2041 = vmatmul.mubr.bf16.gmra.mxu0 %v1177
        %v2042 = vpop.f32.mrf.mxu0
        %v2043 = vadd.f32 %v1955, %v2042
        %v2044 = vpop.f32.mrf.mxu0
        %v2045 = vpop.f32.mrf.mxu0
        %v2046 = vadd.f32 %v1958, %v2045
        %v2047 = vpop.f32.mrf.mxu0
        %2048 = vmatprep.mubr.bf16.mxu0 0
        %2049 = vmatmul.mubr.bf16.gmra.mxu0 %v1180
        %v2050 = vpop.f32.mrf.mxu0
        %v2051 = vadd.f32 %v1963, %v2050
        %v2052 = vpop.f32.mrf.mxu0
        %v2053 = vpop.f32.mrf.mxu0
        %v2054 = vpop.f32.mrf.mxu0
        %2055 = vdwg.mxu0
        %2056 = vadd.xlane.f32.xlu0 %v1814
        %v2057 = vpop.xlane.xlu0 %2056
        %2058 = vadd.xlane.f32.xlu0 %v1818
        %v2059 = vpop.xlane.xlu0 %2058
        %2060 = vadd.xlane.f32.xlu0 %v1824
        %v2061 = vpop.xlane.xlu0 %2060
        %2062 = vadd.xlane.f32.xlu0 %v1828
        %v2063 = vpop.xlane.xlu0 %2062
        %2064 = vadd.xlane.f32.xlu0 %v1834
        %v2065 = vpop.xlane.xlu0 %2064
        %2066 = vadd.xlane.f32.xlu0 %v1838
        %v2067 = vpop.xlane.xlu0 %2066
        %2068 = vadd.xlane.f32.xlu0 %v1844
        %v2069 = vpop.xlane.xlu0 %2068
        %2070 = vadd.xlane.f32.xlu0 %v1848
        %v2071 = vpop.xlane.xlu0 %2070
        %2072 = vadd.xlane.f32.xlu0 %v1854
        %v2073 = vpop.xlane.xlu0 %2072
        %2074 = vadd.xlane.f32.xlu0 %v1858
        %v2075 = vpop.xlane.xlu0 %2074
        %2076 = vadd.xlane.f32.xlu0 %v1864
        %v2077 = vpop.xlane.xlu0 %2076
        %2078 = vadd.xlane.f32.xlu0 %v1868
        %v2079 = vpop.xlane.xlu0 %2078
        %2080 = vadd.xlane.f32.xlu0 %v1874
        %v2081 = vpop.xlane.xlu0 %2080
        %v2082 = vmul.f32 %v2057, %v717
        %v2083 = vmul.f32 %v2059, %v717
        %v2084 = vmul.f32 %v2061, %v717
        %v2085 = vmul.f32 %v2063, %v717
        %v2086 = vmul.f32 %v2065, %v717
        %v2087 = vmul.f32 %v2067, %v717
        %v2088 = vmul.f32 %v2069, %v717
        %v2089 = vmul.f32 %v2071, %v717
        %v2090 = vmul.f32 %v2073, %v717
        %v2091 = vmul.f32 %v2075, %v717
        %v2092 = vmul.f32 %v2077, %v717
        %v2093 = vmul.f32 %v2079, %v717
        %v2094 = vmul.f32 %v2081, %v717
        %v2095 = vsub.f32 %v1814, %v2082
        %v2096 = vsub.f32 %v1818, %v2083
        %v2097 = vsub.f32 %v1824, %v2084
        %v2098 = vsub.f32 %v1828, %v2085
        %v2099 = vsub.f32 %v1834, %v2086
        %v2100 = vsub.f32 %v1838, %v2087
        %v2101 = vsub.f32 %v1844, %v2088
        %v2102 = vsub.f32 %v1848, %v2089
        %v2103 = vsub.f32 %v1854, %v2090
        %v2104 = vsub.f32 %v1858, %v2091
        %v2105 = vsub.f32 %v1864, %v2092
        %v2106 = vsub.f32 %v1868, %v2093
        %v2107 = vsub.f32 %v1874, %v2094
        %v2108 = vmul.f32 %v2095, %v2095
        %v2109 = vmul.f32 %v2096, %v2096
        %v2110 = vmul.f32 %v2097, %v2097
        %v2111 = vmul.f32 %v2098, %v2098
        %v2112 = vmul.f32 %v2099, %v2099
        %v2113 = vmul.f32 %v2100, %v2100
        %v2114 = vmul.f32 %v2101, %v2101
        %v2115 = vmul.f32 %v2102, %v2102
        %v2116 = vmul.f32 %v2103, %v2103
        %v2117 = vmul.f32 %v2104, %v2104
        %v2118 = vmul.f32 %v2105, %v2105
        %v2119 = vmul.f32 %v2106, %v2106
        %v2120 = vmul.f32 %v2107, %v2107
        %2121 = vadd.xlane.f32.xlu0 %v2108
        %v2122 = vpop.xlane.xlu0 %2121
        %2123 = vadd.xlane.f32.xlu0 %v2109
        %v2124 = vpop.xlane.xlu0 %2123
        %2125 = vadd.xlane.f32.xlu0 %v2110
        %v2126 = vpop.xlane.xlu0 %2125
        %2127 = vadd.xlane.f32.xlu0 %v2111
        %v2128 = vpop.xlane.xlu0 %2127
        %2129 = vadd.xlane.f32.xlu0 %v2112
        %v2130 = vpop.xlane.xlu0 %2129
        %2131 = vadd.xlane.f32.xlu0 %v2113
        %v2132 = vpop.xlane.xlu0 %2131
        %2133 = vadd.xlane.f32.xlu0 %v2114
        %v2134 = vpop.xlane.xlu0 %2133
        %2135 = vadd.xlane.f32.xlu0 %v2115
        %v2136 = vpop.xlane.xlu0 %2135
        %2137 = vadd.xlane.f32.xlu0 %v2116
        %v2138 = vpop.xlane.xlu0 %2137
        %2139 = vadd.xlane.f32.xlu0 %v2117
        %v2140 = vpop.xlane.xlu0 %2139
        %2141 = vadd.xlane.f32.xlu0 %v2118
        %v2142 = vpop.xlane.xlu0 %2141
        %2143 = vadd.xlane.f32.xlu0 %v2119
        %v2144 = vpop.xlane.xlu0 %2143
        %2145 = vadd.xlane.f32.xlu0 %v2120
        %v2146 = vpop.xlane.xlu0 %2145
        %v2147 = vmul.f32 %v2122, %v717
        %v2148 = vmul.f32 %v2124, %v717
        %v2149 = vmul.f32 %v2126, %v717
        %v2150 = vmul.f32 %v2128, %v717
        %v2151 = vmul.f32 %v2130, %v717
        %v2152 = vmul.f32 %v2132, %v717
        %v2153 = vmul.f32 %v2134, %v717
        %v2154 = vmul.f32 %v2136, %v717
        %v2155 = vmul.f32 %v2138, %v717
        %v2156 = vmul.f32 %v2140, %v717
        %v2157 = vmul.f32 %v2142, %v717
        %v2158 = vmul.f32 %v2144, %v717
        %v2159 = vmul.f32 %v2146, %v717
        %v2160 = vadd.f32 %v2147, 1e-05
        %v2161 = vadd.f32 %v2148, 1e-05
        %v2162 = vadd.f32 %v2149, 1e-05
        %v2163 = vadd.f32 %v2150, 1e-05
        %v2164 = vadd.f32 %v2151, 1e-05
        %v2165 = vadd.f32 %v2152, 1e-05
        %v2166 = vadd.f32 %v2153, 1e-05
        %v2167 = vadd.f32 %v2154, 1e-05
        %v2168 = vadd.f32 %v2155, 1e-05
        %v2169 = vadd.f32 %v2156, 1e-05
        %v2170 = vadd.f32 %v2157, 1e-05
        %v2171 = vadd.f32 %v2158, 1e-05
        %v2172 = vadd.f32 %v2159, 1e-05
        %v2173 = vrsqrt.pop %v2160
        %v2174 = vrsqrt.pop %v2161
        %v2175 = vrsqrt.pop %v2162
        %v2176 = vrsqrt.pop %v2163
        %v2177 = vrsqrt.pop %v2164
        %v2178 = vrsqrt.pop %v2165
        %v2179 = vrsqrt.pop %v2166
        %v2180 = vrsqrt.pop %v2167
        %v2181 = vrsqrt.pop %v2168
        %v2182 = vrsqrt.pop %v2169
        %v2183 = vrsqrt.pop %v2170
        %v2184 = vrsqrt.pop %v2171
        %v2185 = vrsqrt.pop %v2172
        %v2186 = vmul.f32 %v2095, %v2173
        %v2187 = vmul.f32 %v2096, %v2174
        %v2188 = vmul.f32 %v2097, %v2175
        %v2189 = vmul.f32 %v2098, %v2176
        %v2190 = vmul.f32 %v2099, %v2177
        %v2191 = vmul.f32 %v2100, %v2178
        %v2192 = vmul.f32 %v2101, %v2179
        %v2193 = vmul.f32 %v2102, %v2180
        %v2194 = vmul.f32 %v2103, %v2181
        %v2195 = vmul.f32 %v2104, %v2182
        %v2196 = vmul.f32 %v2105, %v2183
        %v2197 = vmul.f32 %v2106, %v2184
        %v2198 = vmul.f32 %v2107, %v2185
        %v2199 = vmax.f32 %v2186, 0.0
        %v2200 = vmax.f32 %v2187, 0.0
        %v2201 = vmax.f32 %v2188, 0.0
        %v2202 = vmax.f32 %v2189, 0.0
        %v2203 = vmax.f32 %v2190, 0.0
        %v2204 = vmax.f32 %v2191, 0.0
        %v2205 = vmax.f32 %v2192, 0.0
        %v2206 = vmax.f32 %v2193, 0.0
        %v2207 = vmax.f32 %v2194, 0.0
        %v2208 = vmax.f32 %v2195, 0.0
        %v2209 = vmax.f32 %v2196, 0.0
        %v2210 = vmax.f32 %v2197, 0.0
        %v2211 = vmax.f32 %v2198, 0.0
        %2212 = vadd.xlane.f32.xlu0 %v1816
        %v2213 = vpop.xlane.xlu0 %2212
        %2214 = vadd.xlane.f32.xlu0 %v1820
        %v2215 = vpop.xlane.xlu0 %2214
        %2216 = vadd.xlane.f32.xlu0 %v1826
        %v2217 = vpop.xlane.xlu0 %2216
        %2218 = vadd.xlane.f32.xlu0 %v1830
        %v2219 = vpop.xlane.xlu0 %2218
        %2220 = vadd.xlane.f32.xlu0 %v1836
        %v2221 = vpop.xlane.xlu0 %2220
        %2222 = vadd.xlane.f32.xlu0 %v1840
        %v2223 = vpop.xlane.xlu0 %2222
        %2224 = vadd.xlane.f32.xlu0 %v1846
        %v2225 = vpop.xlane.xlu0 %2224
        %2226 = vadd.xlane.f32.xlu0 %v1850
        %v2227 = vpop.xlane.xlu0 %2226
        %2228 = vadd.xlane.f32.xlu0 %v1856
        %v2229 = vpop.xlane.xlu0 %2228
        %2230 = vadd.xlane.f32.xlu0 %v1860
        %v2231 = vpop.xlane.xlu0 %2230
        %2232 = vadd.xlane.f32.xlu0 %v1866
        %v2233 = vpop.xlane.xlu0 %2232
        %2234 = vadd.xlane.f32.xlu0 %v1870
        %v2235 = vpop.xlane.xlu0 %2234
        %2236 = vadd.xlane.f32.xlu0 %v1876
        %v2237 = vpop.xlane.xlu0 %2236
        %v2238 = vmul.f32 %v2213, %v717
        %v2239 = vmul.f32 %v2215, %v717
        %v2240 = vmul.f32 %v2217, %v717
        %v2241 = vmul.f32 %v2219, %v717
        %v2242 = vmul.f32 %v2221, %v717
        %v2243 = vmul.f32 %v2223, %v717
        %v2244 = vmul.f32 %v2225, %v717
        %v2245 = vmul.f32 %v2227, %v717
        %v2246 = vmul.f32 %v2229, %v717
        %v2247 = vmul.f32 %v2231, %v717
        %v2248 = vmul.f32 %v2233, %v717
        %v2249 = vmul.f32 %v2235, %v717
        %v2250 = vmul.f32 %v2237, %v717
        %v2251 = vsub.f32 %v1816, %v2238
        %v2252 = vsub.f32 %v1820, %v2239
        %v2253 = vsub.f32 %v1826, %v2240
        %v2254 = vsub.f32 %v1830, %v2241
        %v2255 = vsub.f32 %v1836, %v2242
        %v2256 = vsub.f32 %v1840, %v2243
        %v2257 = vsub.f32 %v1846, %v2244
        %v2258 = vsub.f32 %v1850, %v2245
        %v2259 = vsub.f32 %v1856, %v2246
        %v2260 = vsub.f32 %v1860, %v2247
        %v2261 = vsub.f32 %v1866, %v2248
        %v2262 = vsub.f32 %v1870, %v2249
        %v2263 = vsub.f32 %v1876, %v2250
        %v2264 = vmul.f32 %v2251, %v2251
        %v2265 = vmul.f32 %v2252, %v2252
        %v2266 = vmul.f32 %v2253, %v2253
        %v2267 = vmul.f32 %v2254, %v2254
        %v2268 = vmul.f32 %v2255, %v2255
        %v2269 = vmul.f32 %v2256, %v2256
        %v2270 = vmul.f32 %v2257, %v2257
        %v2271 = vmul.f32 %v2258, %v2258
        %v2272 = vmul.f32 %v2259, %v2259
        %v2273 = vmul.f32 %v2260, %v2260
        %v2274 = vmul.f32 %v2261, %v2261
        %v2275 = vmul.f32 %v2262, %v2262
        %v2276 = vmul.f32 %v2263, %v2263
        %2277 = vadd.xlane.f32.xlu0 %v2264
        %v2278 = vpop.xlane.xlu0 %2277
        %2279 = vadd.xlane.f32.xlu0 %v2265
        %v2280 = vpop.xlane.xlu0 %2279
        %2281 = vadd.xlane.f32.xlu0 %v2266
        %v2282 = vpop.xlane.xlu0 %2281
        %2283 = vadd.xlane.f32.xlu0 %v2267
        %v2284 = vpop.xlane.xlu0 %2283
        %2285 = vadd.xlane.f32.xlu0 %v2268
        %v2286 = vpop.xlane.xlu0 %2285
        %2287 = vadd.xlane.f32.xlu0 %v2269
        %v2288 = vpop.xlane.xlu0 %2287
        %2289 = vadd.xlane.f32.xlu0 %v2270
        %v2290 = vpop.xlane.xlu0 %2289
        %2291 = vadd.xlane.f32.xlu0 %v2271
        %v2292 = vpop.xlane.xlu0 %2291
        %2293 = vadd.xlane.f32.xlu0 %v2272
        %v2294 = vpop.xlane.xlu0 %2293
        %2295 = vadd.xlane.f32.xlu0 %v2273
        %v2296 = vpop.xlane.xlu0 %2295
        %2297 = vadd.xlane.f32.xlu0 %v2274
        %v2298 = vpop.xlane.xlu0 %2297
        %2299 = vadd.xlane.f32.xlu0 %v2275
        %v2300 = vpop.xlane.xlu0 %2299
        %2301 = vadd.xlane.f32.xlu0 %v2276
        %v2302 = vpop.xlane.xlu0 %2301
        %v2303 = vmul.f32 %v2278, %v717
        %v2304 = vmul.f32 %v2280, %v717
        %v2305 = vmul.f32 %v2282, %v717
        %v2306 = vmul.f32 %v2284, %v717
        %v2307 = vmul.f32 %v2286, %v717
        %v2308 = vmul.f32 %v2288, %v717
        %v2309 = vmul.f32 %v2290, %v717
        %v2310 = vmul.f32 %v2292, %v717
        %v2311 = vmul.f32 %v2294, %v717
        %v2312 = vmul.f32 %v2296, %v717
        %v2313 = vmul.f32 %v2298, %v717
        %v2314 = vmul.f32 %v2300, %v717
        %v2315 = vmul.f32 %v2302, %v717
        %v2316 = vadd.f32 %v2303, 1e-05
        %v2317 = vadd.f32 %v2304, 1e-05
        %v2318 = vadd.f32 %v2305, 1e-05
        %v2319 = vadd.f32 %v2306, 1e-05
        %v2320 = vadd.f32 %v2307, 1e-05
        %v2321 = vadd.f32 %v2308, 1e-05
        %v2322 = vadd.f32 %v2309, 1e-05
        %v2323 = vadd.f32 %v2310, 1e-05
        %v2324 = vadd.f32 %v2311, 1e-05
        %v2325 = vadd.f32 %v2312, 1e-05
        %v2326 = vadd.f32 %v2313, 1e-05
        %v2327 = vadd.f32 %v2314, 1e-05
        %v2328 = vadd.f32 %v2315, 1e-05
        %v2329 = vrsqrt.pop %v2316
        %v2330 = vrsqrt.pop %v2317
        %v2331 = vrsqrt.pop %v2318
        %v2332 = vrsqrt.pop %v2319
        %v2333 = vrsqrt.pop %v2320
        %v2334 = vrsqrt.pop %v2321
        %v2335 = vrsqrt.pop %v2322
        %v2336 = vrsqrt.pop %v2323
        %v2337 = vrsqrt.pop %v2324
        %v2338 = vrsqrt.pop %v2325
        %v2339 = vrsqrt.pop %v2326
        %v2340 = vrsqrt.pop %v2327
        %v2341 = vrsqrt.pop %v2328
        %v2342 = vmul.f32 %v2251, %v2329
        %v2343 = vmul.f32 %v2252, %v2330
        %v2344 = vmul.f32 %v2253, %v2331
        %v2345 = vmul.f32 %v2254, %v2332
        %v2346 = vmul.f32 %v2255, %v2333
        %v2347 = vmul.f32 %v2256, %v2334
        %v2348 = vmul.f32 %v2257, %v2335
        %v2349 = vmul.f32 %v2258, %v2336
        %v2350 = vmul.f32 %v2259, %v2337
        %v2351 = vmul.f32 %v2260, %v2338
        %v2352 = vmul.f32 %v2261, %v2339
        %v2353 = vmul.f32 %v2262, %v2340
        %v2354 = vmul.f32 %v2263, %v2341
        %v2355 = vmax.f32 %v2342, 0.0
        %v2356 = vmax.f32 %v2343, 0.0
        %v2357 = vmax.f32 %v2344, 0.0
        %v2358 = vmax.f32 %v2345, 0.0
        %v2359 = vmax.f32 %v2346, 0.0
        %v2360 = vmax.f32 %v2347, 0.0
        %v2361 = vmax.f32 %v2348, 0.0
        %v2362 = vmax.f32 %v2349, 0.0
        %v2363 = vmax.f32 %v2350, 0.0
        %v2364 = vmax.f32 %v2351, 0.0
        %v2365 = vmax.f32 %v2352, 0.0
        %v2366 = vmax.f32 %v2353, 0.0
        %v2367 = vmax.f32 %v2354, 0.0
        %2368 = vadd.xlane.f32.xlu0 %v2003
        %v2369 = vpop.xlane.xlu0 %2368
        %2370 = vadd.xlane.f32.xlu0 %v2006
        %v2371 = vpop.xlane.xlu0 %2370
        %2372 = vadd.xlane.f32.xlu0 %v2011
        %v2373 = vpop.xlane.xlu0 %2372
        %2374 = vadd.xlane.f32.xlu0 %v2014
        %v2375 = vpop.xlane.xlu0 %2374
        %2376 = vadd.xlane.f32.xlu0 %v2019
        %v2377 = vpop.xlane.xlu0 %2376
        %2378 = vadd.xlane.f32.xlu0 %v2022
        %v2379 = vpop.xlane.xlu0 %2378
        %2380 = vadd.xlane.f32.xlu0 %v2027
        %v2381 = vpop.xlane.xlu0 %2380
        %2382 = vadd.xlane.f32.xlu0 %v2030
        %v2383 = vpop.xlane.xlu0 %2382
        %2384 = vadd.xlane.f32.xlu0 %v2035
        %v2385 = vpop.xlane.xlu0 %2384
        %2386 = vadd.xlane.f32.xlu0 %v2038
        %v2387 = vpop.xlane.xlu0 %2386
        %2388 = vadd.xlane.f32.xlu0 %v2043
        %v2389 = vpop.xlane.xlu0 %2388
        %2390 = vadd.xlane.f32.xlu0 %v2046
        %v2391 = vpop.xlane.xlu0 %2390
        %2392 = vadd.xlane.f32.xlu0 %v2051
        %v2393 = vpop.xlane.xlu0 %2392
        %v2394 = vmul.f32 %v2369, %v717
        %v2395 = vmul.f32 %v2371, %v717
        %v2396 = vmul.f32 %v2373, %v717
        %v2397 = vmul.f32 %v2375, %v717
        %v2398 = vmul.f32 %v2377, %v717
        %v2399 = vmul.f32 %v2379, %v717
        %v2400 = vmul.f32 %v2381, %v717
        %v2401 = vmul.f32 %v2383, %v717
        %v2402 = vmul.f32 %v2385, %v717
        %v2403 = vmul.f32 %v2387, %v717
        %v2404 = vmul.f32 %v2389, %v717
        %v2405 = vmul.f32 %v2391, %v717
        %v2406 = vmul.f32 %v2393, %v717
        %v2407 = vsub.f32 %v2003, %v2394
        %v2408 = vsub.f32 %v2006, %v2395
        %v2409 = vsub.f32 %v2011, %v2396
        %v2410 = vsub.f32 %v2014, %v2397
        %v2411 = vsub.f32 %v2019, %v2398
        %v2412 = vsub.f32 %v2022, %v2399
        %v2413 = vsub.f32 %v2027, %v2400
        %v2414 = vsub.f32 %v2030, %v2401
        %v2415 = vsub.f32 %v2035, %v2402
        %v2416 = vsub.f32 %v2038, %v2403
        %v2417 = vsub.f32 %v2043, %v2404
        %v2418 = vsub.f32 %v2046, %v2405
        %v2419 = vsub.f32 %v2051, %v2406
        %v2420 = vmul.f32 %v2407, %v2407
        %v2421 = vmul.f32 %v2408, %v2408
        %v2422 = vmul.f32 %v2409, %v2409
        %v2423 = vmul.f32 %v2410, %v2410
        %v2424 = vmul.f32 %v2411, %v2411
        %v2425 = vmul.f32 %v2412, %v2412
        %v2426 = vmul.f32 %v2413, %v2413
        %v2427 = vmul.f32 %v2414, %v2414
        %v2428 = vmul.f32 %v2415, %v2415
        %v2429 = vmul.f32 %v2416, %v2416
        %v2430 = vmul.f32 %v2417, %v2417
        %v2431 = vmul.f32 %v2418, %v2418
        %v2432 = vmul.f32 %v2419, %v2419
        %2433 = vadd.xlane.f32.xlu0 %v2420
        %v2434 = vpop.xlane.xlu0 %2433
        %2435 = vadd.xlane.f32.xlu0 %v2421
        %v2436 = vpop.xlane.xlu0 %2435
        %2437 = vadd.xlane.f32.xlu0 %v2422
        %v2438 = vpop.xlane.xlu0 %2437
        %2439 = vadd.xlane.f32.xlu0 %v2423
        %v2440 = vpop.xlane.xlu0 %2439
        %2441 = vadd.xlane.f32.xlu0 %v2424
        %v2442 = vpop.xlane.xlu0 %2441
        %2443 = vadd.xlane.f32.xlu0 %v2425
        %v2444 = vpop.xlane.xlu0 %2443
        %2445 = vadd.xlane.f32.xlu0 %v2426
        %v2446 = vpop.xlane.xlu0 %2445
        %2447 = vadd.xlane.f32.xlu0 %v2427
        %v2448 = vpop.xlane.xlu0 %2447
        %2449 = vadd.xlane.f32.xlu0 %v2428
        %v2450 = vpop.xlane.xlu0 %2449
        %2451 = vadd.xlane.f32.xlu0 %v2429
        %v2452 = vpop.xlane.xlu0 %2451
        %2453 = vadd.xlane.f32.xlu0 %v2430
        %v2454 = vpop.xlane.xlu0 %2453
        %2455 = vadd.xlane.f32.xlu0 %v2431
        %v2456 = vpop.xlane.xlu0 %2455
        %2457 = vadd.xlane.f32.xlu0 %v2432
        %v2458 = vpop.xlane.xlu0 %2457
        %v2459 = vmul.f32 %v2434, %v717
        %v2460 = vmul.f32 %v2436, %v717
        %v2461 = vmul.f32 %v2438, %v717
        %v2462 = vmul.f32 %v2440, %v717
        %v2463 = vmul.f32 %v2442, %v717
        %v2464 = vmul.f32 %v2444, %v717
        %v2465 = vmul.f32 %v2446, %v717
        %v2466 = vmul.f32 %v2448, %v717
        %v2467 = vmul.f32 %v2450, %v717
        %v2468 = vmul.f32 %v2452, %v717
        %v2469 = vmul.f32 %v2454, %v717
        %v2470 = vmul.f32 %v2456, %v717
        %v2471 = vmul.f32 %v2458, %v717
        %v2472 = vadd.f32 %v2459, 1e-05
        %v2473 = vadd.f32 %v2460, 1e-05
        %v2474 = vadd.f32 %v2461, 1e-05
        %v2475 = vadd.f32 %v2462, 1e-05
        %v2476 = vadd.f32 %v2463, 1e-05
        %v2477 = vadd.f32 %v2464, 1e-05
        %v2478 = vadd.f32 %v2465, 1e-05
        %v2479 = vadd.f32 %v2466, 1e-05
        %v2480 = vadd.f32 %v2467, 1e-05
        %v2481 = vadd.f32 %v2468, 1e-05
        %v2482 = vadd.f32 %v2469, 1e-05
        %v2483 = vadd.f32 %v2470, 1e-05
        %v2484 = vadd.f32 %v2471, 1e-05
        %v2485 = vrsqrt.pop %v2472
        %v2486 = vrsqrt.pop %v2473
        %v2487 = vrsqrt.pop %v2474
        %v2488 = vrsqrt.pop %v2475
        %v2489 = vrsqrt.pop %v2476
        %v2490 = vrsqrt.pop %v2477
        %v2491 = vrsqrt.pop %v2478
        %v2492 = vrsqrt.pop %v2479
        %v2493 = vrsqrt.pop %v2480
        %v2494 = vrsqrt.pop %v2481
        %v2495 = vrsqrt.pop %v2482
        %v2496 = vrsqrt.pop %v2483
        %v2497 = vrsqrt.pop %v2484
        %v2498 = vmul.f32 %v2407, %v2485
        %v2499 = vmul.f32 %v2408, %v2486
        %v2500 = vmul.f32 %v2409, %v2487
        %v2501 = vmul.f32 %v2410, %v2488
        %v2502 = vmul.f32 %v2411, %v2489
        %v2503 = vmul.f32 %v2412, %v2490
        %v2504 = vmul.f32 %v2413, %v2491
        %v2505 = vmul.f32 %v2414, %v2492
        %v2506 = vmul.f32 %v2415, %v2493
        %v2507 = vmul.f32 %v2416, %v2494
        %v2508 = vmul.f32 %v2417, %v2495
        %v2509 = vmul.f32 %v2418, %v2496
        %v2510 = vmul.f32 %v2419, %v2497
        %v2511 = vmax.f32 %v2498, 0.0
        %v2512 = vmax.f32 %v2499, 0.0
        %v2513 = vmax.f32 %v2500, 0.0
        %v2514 = vmax.f32 %v2501, 0.0
        %v2515 = vmax.f32 %v2502, 0.0
        %v2516 = vmax.f32 %v2503, 0.0
        %v2517 = vmax.f32 %v2504, 0.0
        %v2518 = vmax.f32 %v2505, 0.0
        %v2519 = vmax.f32 %v2506, 0.0
        %v2520 = vmax.f32 %v2507, 0.0
        %v2521 = vmax.f32 %v2508, 0.0
        %v2522 = vmax.f32 %v2509, 0.0
        %v2523 = vmax.f32 %v2510, 0.0
        %v2524 = vpack.c.bf16 %v2200, %v2199
        %v2525 = vpack.c.bf16 %v2356, %v2355
        %v2526 = vpack.c.bf16 %v2512, %v2511
        %v2527 = vpack.c.bf16 %v2202, %v2201
        %v2528 = vpack.c.bf16 %v2358, %v2357
        %v2529 = vpack.c.bf16 %v2514, %v2513
        %v2530 = vpack.c.bf16 %v2204, %v2203
        %v2531 = vpack.c.bf16 %v2360, %v2359
        %v2532 = vpack.c.bf16 %v2516, %v2515
        %v2533 = vpack.c.bf16 %v2206, %v2205
        %v2534 = vpack.c.bf16 %v2362, %v2361
        %v2535 = vpack.c.bf16 %v2518, %v2517
        %v2536 = vpack.c.bf16 %v2208, %v2207
        %v2537 = vpack.c.bf16 %v2364, %v2363
        %v2538 = vpack.c.bf16 %v2520, %v2519
        %v2539 = vpack.c.bf16 %v2210, %v2209
        %v2540 = vpack.c.bf16 %v2366, %v2365
        %v2541 = vpack.c.bf16 %v2522, %v2521
        %v2542 = vpack.c.bf16 %v2211, %v2211
        %v2543 = vpack.c.bf16 %v2367, %v2367
        %v2544 = vpack.c.bf16 %v2523, %v2523
        %v2545 = vld [vmem:[%s6] sm:$0xf]
        %v2546 = vld [vmem:[%s6 + $0x4] sm:$0xf]
        %v2547 = vld [vmem:[%s6 + $0x8] sm:$0xf]
        %v2548 = vld [vmem:[%s6 + $0xc] sm:$0xf]
        %v2549 = vld [vmem:[%s6 + $0x10] sm:$0xf]
        %v2550 = vld [vmem:[%s6 + $0x14] sm:$0xf]
        %v2551 = vld [vmem:[%s6 + $0x18] sm:$0xf]
        %v2552 = vld [vmem:[%s6 + $0x1c] sm:$0xf]
        %v2553 = vld [vmem:[%s6 + $0x20] sm:$0xf]
        %v2554 = vld [vmem:[%s6 + $0x24] sm:$0xf]
        %v2555 = vld [vmem:[%s6 + $0x28] sm:$0xf]
        %v2556 = vld [vmem:[%s6 + $0x2c] sm:$0xf]
        %v2557 = vld [vmem:[%s6 + $0x30] sm:$0xf]
        %v2558 = vld [vmem:[%s6 + $0x34] sm:$0xf]
        %v2559 = vld [vmem:[%s6 + $0x38] sm:$0xf]
        %v2560 = vld [vmem:[%s6 + $0x3c] sm:$0xf]
        %v2561 = vld [vmem:[%s6 + $0x40] sm:$0xf]
        %v2562 = vld [vmem:[%s6 + $0x44] sm:$0xf]
        %v2563 = vld [vmem:[%s6 + $0x48] sm:$0xf]
        %v2564 = vld [vmem:[%s6 + $0x4c] sm:$0xf]
        %v2565 = vld [vmem:[%s6 + $0x50] sm:$0xf]
        %v2566 = vld [vmem:[%s6 + $0x54] sm:$0xf]
        %v2567 = vld [vmem:[%s6 + $0x58] sm:$0xf]
        %v2568 = vld [vmem:[%s6 + $0x5c] sm:$0xf]
        %v2569 = vld [vmem:[%s6 + $0x60] sm:$0xf]
        %v2570 = vld [vmem:[%s6 + $0x64] sm:$0xf]
        %v2571 = vld [vmem:[%s6 + $0x68] sm:$0xf]
        %v2572 = vld [vmem:[%s6 + $0x6c] sm:$0xf]
        %v2573 = vld [vmem:[%s6 + $0x70] sm:$0xf]
        %v2574 = vld [vmem:[%s6 + $0x74] sm:$0xf]
        %v2575 = vld [vmem:[%s6 + $0x78] sm:$0xf]
        %v2576 = vld [vmem:[%s6 + $0x7c] sm:$0xf]
        %v2577 = vld [vmem:[%s6 + $0x80] sm:$0xf]
        %v2578 = vld [vmem:[%s6 + $0x84] sm:$0xf]
        %v2579 = vld [vmem:[%s6 + $0x88] sm:$0xf]
        %v2580 = vld [vmem:[%s6 + $0x8c] sm:$0xf]
        %v2581 = vld [vmem:[%s6 + $0x90] sm:$0xf]
        %v2582 = vld [vmem:[%s6 + $0x94] sm:$0xf]
        %v2583 = vld [vmem:[%s6 + $0x98] sm:$0xf]
        %v2584 = vld [vmem:[%s6 + $0x9c] sm:$0xf]
        %v2585 = vld [vmem:[%s6 + $0xa0] sm:$0xf]
        %v2586 = vld [vmem:[%s6 + $0xa4] sm:$0xf]
        %v2587 = vld [vmem:[%s6 + $0xa8] sm:$0xf]
        %v2588 = vld [vmem:[%s6 + $0xac] sm:$0xf]
        %v2589 = vld [vmem:[%s6 + $0xb0] sm:$0xf]
        %v2590 = vld [vmem:[%s6 + $0xb4] sm:$0xf]
        %v2591 = vld [vmem:[%s6 + $0xb8] sm:$0xf]
        %v2592 = vld [vmem:[%s6 + $0xbc] sm:$0xf]
        %v2641 = vunpack.c.l.b16 %v2545
        %v2642 = vunpack.c.l.b16 %v2546
        %v2643 = vunpack.c.l.b16 %v2547
        %v2644 = vunpack.c.l.b16 %v2548
        %v2645 = vunpack.c.l.b16 %v2549
        %v2646 = vunpack.c.l.b16 %v2550
        %v2647 = vunpack.c.l.b16 %v2551
        %v2648 = vunpack.c.l.b16 %v2552
        %v2649 = vunpack.c.l.b16 %v2553
        %v2650 = vunpack.c.l.b16 %v2554
        %v2651 = vunpack.c.l.b16 %v2555
        %v2652 = vunpack.c.l.b16 %v2556
        %v2653 = vunpack.c.l.b16 %v2557
        %v2654 = vunpack.c.l.b16 %v2558
        %v2655 = vunpack.c.l.b16 %v2559
        %v2656 = vunpack.c.l.b16 %v2560
        %v2657 = vunpack.c.l.b16 %v2561
        %v2658 = vunpack.c.l.b16 %v2562
        %v2659 = vunpack.c.l.b16 %v2563
        %v2660 = vunpack.c.l.b16 %v2564
        %v2661 = vunpack.c.l.b16 %v2565
        %v2662 = vunpack.c.l.b16 %v2566
        %v2663 = vunpack.c.l.b16 %v2567
        %v2664 = vunpack.c.l.b16 %v2568
        %v2665 = vunpack.c.l.b16 %v2569
        %v2666 = vunpack.c.l.b16 %v2570
        %v2667 = vunpack.c.l.b16 %v2571
        %v2668 = vunpack.c.l.b16 %v2572
        %v2669 = vunpack.c.l.b16 %v2573
        %v2670 = vunpack.c.l.b16 %v2574
        %v2671 = vunpack.c.l.b16 %v2575
        %v2672 = vunpack.c.l.b16 %v2576
        %v2673 = vunpack.c.l.b16 %v2577
        %v2674 = vunpack.c.l.b16 %v2578
        %v2675 = vunpack.c.l.b16 %v2579
        %v2676 = vunpack.c.l.b16 %v2580
        %v2677 = vunpack.c.l.b16 %v2581
        %v2678 = vunpack.c.l.b16 %v2582
        %v2679 = vunpack.c.l.b16 %v2583
        %v2680 = vunpack.c.l.b16 %v2584
        %v2681 = vunpack.c.l.b16 %v2585
        %v2682 = vunpack.c.l.b16 %v2586
        %v2683 = vunpack.c.l.b16 %v2587
        %v2684 = vunpack.c.l.b16 %v2588
        %v2685 = vunpack.c.l.b16 %v2589
        %v2686 = vunpack.c.l.b16 %v2590
        %v2687 = vunpack.c.l.b16 %v2591
        %v2688 = vunpack.c.l.b16 %v2592
        %v2689 = vpack.c.b16 %v2642, %v2641
        %v2690 = vpack.c.b16 %v2644, %v2643
        %v2691 = vpack.c.b16 %v2646, %v2645
        %v2692 = vpack.c.b16 %v2648, %v2647
        %v2693 = vpack.c.b16 %v2650, %v2649
        %v2694 = vpack.c.b16 %v2652, %v2651
        %v2695 = vpack.c.b16 %v2654, %v2653
        %v2696 = vpack.c.b16 %v2656, %v2655
        %v2697 = vpack.c.b16 %v2658, %v2657
        %v2698 = vpack.c.b16 %v2660, %v2659
        %v2699 = vpack.c.b16 %v2662, %v2661
        %v2700 = vpack.c.b16 %v2664, %v2663
        %v2701 = vpack.c.b16 %v2666, %v2665
        %v2702 = vpack.c.b16 %v2668, %v2667
        %v2703 = vpack.c.b16 %v2670, %v2669
        %v2704 = vpack.c.b16 %v2672, %v2671
        %v2705 = vpack.c.b16 %v2674, %v2673
        %v2706 = vpack.c.b16 %v2676, %v2675
        %v2707 = vpack.c.b16 %v2678, %v2677
        %v2708 = vpack.c.b16 %v2680, %v2679
        %v2709 = vpack.c.b16 %v2682, %v2681
        %v2710 = vpack.c.b16 %v2684, %v2683
        %v2711 = vpack.c.b16 %v2686, %v2685
        %v2712 = vpack.c.b16 %v2688, %v2687
        %2737 = vmatprep.subr.bf16.mxu0 0
        %2738 = vmatpush1.bf16.msra.mxu0 %v2696
        %2739 = vmatprep.subr.bf16.mxu0 0
        %2740 = vmatpush1.bf16.msra.mxu0 %v2695
        %2741 = vmatprep.subr.bf16.mxu0 0
        %2742 = vmatpush1.bf16.msra.mxu0 %v2694
        %2743 = vmatprep.subr.bf16.mxu0 0
        %2744 = vmatpush1.bf16.msra.mxu0 %v2693
        %2745 = vmatprep.subr.bf16.mxu0 0
        %2746 = vmatpush1.bf16.msra.mxu0 %v2692
        %2747 = vmatprep.subr.bf16.mxu0 0
        %2748 = vmatpush1.bf16.msra.mxu0 %v2691
        %2749 = vmatprep.subr.bf16.mxu0 0
        %2750 = vmatpush1.bf16.msra.mxu0 %v2690
        %2751 = vmatprep.subr.bf16.mxu0 0
        %2752 = vmatpush1.bf16.msra.mxu0 %v2689
        %2753 = vmatprep.subr.bf16.mxu0 0
        %2754 = vmatpush2.bf16.msra.mxu0 %v2704
        %2755 = vmatprep.subr.bf16.mxu0 0
        %2756 = vmatpush2.bf16.msra.mxu0 %v2703
        %2757 = vmatprep.subr.bf16.mxu0 0
        %2758 = vmatpush2.bf16.msra.mxu0 %v2702
        %2759 = vmatprep.subr.bf16.mxu0 0
        %2760 = vmatpush2.bf16.msra.mxu0 %v2701
        %2761 = vmatprep.subr.bf16.mxu0 0
        %2762 = vmatpush2.bf16.msra.mxu0 %v2700
        %2763 = vmatprep.subr.bf16.mxu0 0
        %2764 = vmatpush2.bf16.msra.mxu0 %v2699
        %2765 = vmatprep.subr.bf16.mxu0 0
        %2766 = vmatpush2.bf16.msra.mxu0 %v2698
        %2767 = vmatprep.subr.bf16.mxu0 0
        %2768 = vmatpush2.bf16.msra.mxu0 %v2697
        %2769 = vmatprep.mubr.bf16.mxu0 %v2525
        %2770 = vmatmul.mubr.bf16.gmra.mxu0 %v2524
        %v2771 = vpop.f32.mrf.mxu0
        %v2772 = vadd.f32 %v571, %v2771
        %v2773 = vpop.f32.mrf.mxu0
        %v2774 = vpop.f32.mrf.mxu0
        %v2775 = vadd.f32 %v575, %v2774
        %v2776 = vpop.f32.mrf.mxu0
        %2777 = vmatprep.mubr.bf16.mxu0 %v2528
        %2778 = vmatmul.mubr.bf16.gmra.mxu0 %v2527
        %v2779 = vpop.f32.mrf.mxu0
        %v2780 = vadd.f32 %v581, %v2779
        %v2781 = vpop.f32.mrf.mxu0
        %v2782 = vpop.f32.mrf.mxu0
        %v2783 = vadd.f32 %v585, %v2782
        %v2784 = vpop.f32.mrf.mxu0
        %2785 = vmatprep.mubr.bf16.mxu0 %v2531
        %2786 = vmatmul.mubr.bf16.gmra.mxu0 %v2530
        %v2787 = vpop.f32.mrf.mxu0
        %v2788 = vadd.f32 %v591, %v2787
        %v2789 = vpop.f32.mrf.mxu0
        %v2790 = vpop.f32.mrf.mxu0
        %v2791 = vadd.f32 %v595, %v2790
        %v2792 = vpop.f32.mrf.mxu0
        %2793 = vmatprep.mubr.bf16.mxu0 %v2534
        %2794 = vmatmul.mubr.bf16.gmra.mxu0 %v2533
        %v2795 = vpop.f32.mrf.mxu0
        %v2796 = vadd.f32 %v601, %v2795
        %v2797 = vpop.f32.mrf.mxu0
        %v2798 = vpop.f32.mrf.mxu0
        %v2799 = vadd.f32 %v605, %v2798
        %v2800 = vpop.f32.mrf.mxu0
        %2801 = vmatprep.mubr.bf16.mxu0 %v2537
        %2802 = vmatmul.mubr.bf16.gmra.mxu0 %v2536
        %v2803 = vpop.f32.mrf.mxu0
        %v2804 = vadd.f32 %v611, %v2803
        %v2805 = vpop.f32.mrf.mxu0
        %v2806 = vpop.f32.mrf.mxu0
        %v2807 = vadd.f32 %v615, %v2806
        %v2808 = vpop.f32.mrf.mxu0
        %2809 = vmatprep.mubr.bf16.mxu0 %v2540
        %2810 = vmatmul.mubr.bf16.gmra.mxu0 %v2539
        %v2811 = vpop.f32.mrf.mxu0
        %v2812 = vadd.f32 %v621, %v2811
        %v2813 = vpop.f32.mrf.mxu0
        %v2814 = vpop.f32.mrf.mxu0
        %v2815 = vadd.f32 %v625, %v2814
        %v2816 = vpop.f32.mrf.mxu0
        %2817 = vmatprep.mubr.bf16.mxu0 %v2543
        %2818 = vmatmul.mubr.bf16.gmra.mxu0 %v2542
        %v2819 = vpop.f32.mrf.mxu0
        %v2820 = vadd.f32 %v631, %v2819
        %v2821 = vpop.f32.mrf.mxu0
        %v2822 = vpop.f32.mrf.mxu0
        %v2823 = vpop.f32.mrf.mxu0
        %2824 = vdwg.mxu0
        %2825 = vmatprep.subr.bf16.mxu0 0
        %2826 = vmatpush1.bf16.msra.mxu0 %v2712
        %2827 = vmatprep.subr.bf16.mxu0 0
        %2828 = vmatpush1.bf16.msra.mxu0 %v2711
        %2829 = vmatprep.subr.bf16.mxu0 0
        %2830 = vmatpush1.bf16.msra.mxu0 %v2710
        %2831 = vmatprep.subr.bf16.mxu0 0
        %2832 = vmatpush1.bf16.msra.mxu0 %v2709
        %2833 = vmatprep.subr.bf16.mxu0 0
        %2834 = vmatpush1.bf16.msra.mxu0 %v2708
        %2835 = vmatprep.subr.bf16.mxu0 0
        %2836 = vmatpush1.bf16.msra.mxu0 %v2707
        %2837 = vmatprep.subr.bf16.mxu0 0
        %2838 = vmatpush1.bf16.msra.mxu0 %v2706
        %2839 = vmatprep.subr.bf16.mxu0 0
        %2840 = vmatpush1.bf16.msra.mxu0 %v2705
        %2841 = vmatprep.subr.bf16.mxu0 0
        %2842 = vmatpush2.bf16.msra.mxu0 0
        %2843 = vmatprep.subr.bf16.mxu0 0
        %2844 = vmatpush2.bf16.msra.mxu0 0
        %2845 = vmatprep.subr.bf16.mxu0 0
        %2846 = vmatpush2.bf16.msra.mxu0 0
        %2847 = vmatprep.subr.bf16.mxu0 0
        %2848 = vmatpush2.bf16.msra.mxu0 0
        %2849 = vmatprep.subr.bf16.mxu0 0
        %2850 = vmatpush2.bf16.msra.mxu0 0
        %2851 = vmatprep.subr.bf16.mxu0 0
        %2852 = vmatpush2.bf16.msra.mxu0 0
        %2853 = vmatprep.subr.bf16.mxu0 0
        %2854 = vmatpush2.bf16.msra.mxu0 0
        %2855 = vmatprep.subr.bf16.mxu0 0
        %2856 = vmatpush2.bf16.msra.mxu0 0
        %2857 = vmatprep.mubr.bf16.mxu0 0
        %2858 = vmatmul.mubr.bf16.gmra.mxu0 %v2526
        %v2859 = vpop.f32.mrf.mxu0
        %v2860 = vadd.f32 %v2772, %v2859
        %v2861 = vpop.f32.mrf.mxu0
        %v2862 = vpop.f32.mrf.mxu0
        %v2863 = vadd.f32 %v2775, %v2862
        %v2864 = vpop.f32.mrf.mxu0
        %2865 = vmatprep.mubr.bf16.mxu0 0
        %2866 = vmatmul.mubr.bf16.gmra.mxu0 %v2529
        %v2867 = vpop.f32.mrf.mxu0
        %v2868 = vadd.f32 %v2780, %v2867
        %v2869 = vpop.f32.mrf.mxu0
        %v2870 = vpop.f32.mrf.mxu0
        %v2871 = vadd.f32 %v2783, %v2870
        %v2872 = vpop.f32.mrf.mxu0
        %2873 = vmatprep.mubr.bf16.mxu0 0
        %2874 = vmatmul.mubr.bf16.gmra.mxu0 %v2532
        %v2875 = vpop.f32.mrf.mxu0
        %v2876 = vadd.f32 %v2788, %v2875
        %v2877 = vpop.f32.mrf.mxu0
        %v2878 = vpop.f32.mrf.mxu0
        %v2879 = vadd.f32 %v2791, %v2878
        %v2880 = vpop.f32.mrf.mxu0
        %2881 = vmatprep.mubr.bf16.mxu0 0
        %2882 = vmatmul.mubr.bf16.gmra.mxu0 %v2535
        %v2883 = vpop.f32.mrf.mxu0
        %v2884 = vadd.f32 %v2796, %v2883
        %v2885 = vpop.f32.mrf.mxu0
        %v2886 = vpop.f32.mrf.mxu0
        %v2887 = vadd.f32 %v2799, %v2886
        %v2888 = vpop.f32.mrf.mxu0
        %2889 = vmatprep.mubr.bf16.mxu0 0
        %2890 = vmatmul.mubr.bf16.gmra.mxu0 %v2538
        %v2891 = vpop.f32.mrf.mxu0
        %v2892 = vadd.f32 %v2804, %v2891
        %v2893 = vpop.f32.mrf.mxu0
        %v2894 = vpop.f32.mrf.mxu0
        %v2895 = vadd.f32 %v2807, %v2894
        %v2896 = vpop.f32.mrf.mxu0
        %2897 = vmatprep.mubr.bf16.mxu0 0
        %2898 = vmatmul.mubr.bf16.gmra.mxu0 %v2541
        %v2899 = vpop.f32.mrf.mxu0
        %v2900 = vadd.f32 %v2812, %v2899
        %v2901 = vpop.f32.mrf.mxu0
        %v2902 = vpop.f32.mrf.mxu0
        %v2903 = vadd.f32 %v2815, %v2902
        %v2904 = vpop.f32.mrf.mxu0
        %2905 = vmatprep.mubr.bf16.mxu0 0
        %2906 = vmatmul.mubr.bf16.gmra.mxu0 %v2544
        %v2907 = vpop.f32.mrf.mxu0
        %v2908 = vadd.f32 %v2820, %v2907
        %v2909 = vpop.f32.mrf.mxu0
        %v2910 = vpop.f32.mrf.mxu0
        %v2911 = vpop.f32.mrf.mxu0
        %2912 = vdwg.mxu0
        %v2913 = vld [vmem:[%s7] sm:$0x1]
        %v2915 = vlaneseq
        %v2916 = vshrl.u32 %v2915, 7
        %v2917 = vsub.s32 0, %v2916
        %v2918 = vrot.slane %v2913, %v2917
        %v2920 = vadd.f32 %v2860, %v2918
        %v2921 = vadd.f32 %v2863, %v2918
        %v2922 = vadd.f32 %v2868, %v2918
        %v2923 = vadd.f32 %v2871, %v2918
        %v2924 = vadd.f32 %v2876, %v2918
        %v2925 = vadd.f32 %v2879, %v2918
        %v2926 = vadd.f32 %v2884, %v2918
        %v2927 = vadd.f32 %v2887, %v2918
        %v2928 = vadd.f32 %v2892, %v2918
        %v2929 = vadd.f32 %v2895, %v2918
        %v2930 = vadd.f32 %v2900, %v2918
        %v2931 = vadd.f32 %v2903, %v2918
        %v2932 = vadd.f32 %v2908, %v2918
        %v2933 = vmul.f32 %v2920, 1.442695
        %v2934 = vpow.pop %v2933
        %v2935 = vmul.f32 %v2921, 1.442695
        %v2936 = vpow.pop %v2935
        %v2937 = vmul.f32 %v2922, 1.442695
        %v2938 = vpow.pop %v2937
        %v2939 = vmul.f32 %v2923, 1.442695
        %v2940 = vpow.pop %v2939
        %v2941 = vmul.f32 %v2924, 1.442695
        %v2942 = vpow.pop %v2941
        %v2943 = vmul.f32 %v2925, 1.442695
        %v2944 = vpow.pop %v2943
        %v2945 = vmul.f32 %v2926, 1.442695
        %v2946 = vpow.pop %v2945
        %v2947 = vmul.f32 %v2927, 1.442695
        %v2948 = vpow.pop %v2947
        %v2949 = vmul.f32 %v2928, 1.442695
        %v2950 = vpow.pop %v2949
        %v2951 = vmul.f32 %v2929, 1.442695
        %v2952 = vpow.pop %v2951
        %v2953 = vmul.f32 %v2930, 1.442695
        %v2954 = vpow.pop %v2953
        %v2955 = vmul.f32 %v2931, 1.442695
        %v2956 = vpow.pop %v2955
        %v2957 = vmul.f32 %v2932, 1.442695
        %v2958 = vpow.pop %v2957
        %2972 = vrot.lane.b32.xlu0 %v350, 16
        %v2973 = vpop.permute.xlu0 %2972
        %2974 = vrot.lane.b32.xlu0 %v351, 16
        %v2975 = vpop.permute.xlu0 %2974
        %2976 = vrot.lane.b32.xlu0 %v352, 16
        %v2977 = vpop.permute.xlu0 %2976
        %2978 = vrot.lane.b32.xlu0 %v353, 16
        %v2979 = vpop.permute.xlu0 %2978
        %2980 = vrot.lane.b32.xlu0 %v354, 16
        %v2981 = vpop.permute.xlu0 %2980
        %2982 = vrot.lane.b32.xlu0 %v355, 16
        %v2983 = vpop.permute.xlu0 %2982
        %2984 = vrot.lane.b32.xlu0 %v356, 16
        %v2985 = vpop.permute.xlu0 %2984
        %2986 = vrot.lane.b32.xlu0 %v357, 16
        %v2987 = vpop.permute.xlu0 %2986
        %2988 = vrot.lane.b32.xlu0 %v358, 16
        %v2989 = vpop.permute.xlu0 %2988
        %2990 = vrot.lane.b32.xlu0 %v359, 16
        %v2991 = vpop.permute.xlu0 %2990
        %2992 = vrot.lane.b32.xlu0 %v360, 16
        %v2993 = vpop.permute.xlu0 %2992
        %2994 = vrot.lane.b32.xlu0 %v361, 16
        %v2995 = vpop.permute.xlu0 %2994
        %2996 = vrot.lane.b32.xlu0 %v362, 16
        %v2997 = vpop.permute.xlu0 %2996
        %v3011 = vmul.f32 %v2934, %v2973
        %v3012 = vmul.f32 %v2936, %v2975
        %v3013 = vmul.f32 %v2938, %v2977
        %v3014 = vmul.f32 %v2940, %v2979
        %v3015 = vmul.f32 %v2942, %v2981
        %v3016 = vmul.f32 %v2944, %v2983
        %v3017 = vmul.f32 %v2946, %v2985
        %v3018 = vmul.f32 %v2948, %v2987
        %v3019 = vmul.f32 %v2950, %v2989
        %v3020 = vmul.f32 %v2952, %v2991
        %v3021 = vmul.f32 %v2954, %v2993
        %v3022 = vmul.f32 %v2956, %v2995
        %v3023 = vmul.f32 %v2958, %v2997
        %3037 = vrot.lane.b32.xlu0 %v3011, 112
        %v3038 = vpop.permute.xlu0 %3037
        %3039 = vrot.lane.b32.xlu0 %v3012, 112
        %v3040 = vpop.permute.xlu0 %3039
        %3041 = vrot.lane.b32.xlu0 %v3013, 112
        %v3042 = vpop.permute.xlu0 %3041
        %3043 = vrot.lane.b32.xlu0 %v3014, 112
        %v3044 = vpop.permute.xlu0 %3043
        %3045 = vrot.lane.b32.xlu0 %v3015, 112
        %v3046 = vpop.permute.xlu0 %3045
        %3047 = vrot.lane.b32.xlu0 %v3016, 112
        %v3048 = vpop.permute.xlu0 %3047
        %3049 = vrot.lane.b32.xlu0 %v3017, 112
        %v3050 = vpop.permute.xlu0 %3049
        %3051 = vrot.lane.b32.xlu0 %v3018, 112
        %v3052 = vpop.permute.xlu0 %3051
        %3053 = vrot.lane.b32.xlu0 %v3019, 112
        %v3054 = vpop.permute.xlu0 %3053
        %3055 = vrot.lane.b32.xlu0 %v3020, 112
        %v3056 = vpop.permute.xlu0 %3055
        %3057 = vrot.lane.b32.xlu0 %v3021, 112
        %v3058 = vpop.permute.xlu0 %3057
        %3059 = vrot.lane.b32.xlu0 %v3022, 112
        %v3060 = vpop.permute.xlu0 %3059
        %3061 = vrot.lane.b32.xlu0 %v3023, 112
        %v3062 = vpop.permute.xlu0 %3061
        %v3076 = vadd.f32 %v2920, %v3038
        %v3077 = vadd.f32 %v2921, %v3040
        %v3078 = vadd.f32 %v2922, %v3042
        %v3079 = vadd.f32 %v2923, %v3044
        %v3080 = vadd.f32 %v2924, %v3046
        %v3081 = vadd.f32 %v2925, %v3048
        %v3082 = vadd.f32 %v2926, %v3050
        %v3083 = vadd.f32 %v2927, %v3052
        %v3084 = vadd.f32 %v2928, %v3054
        %v3085 = vadd.f32 %v2929, %v3056
        %v3086 = vadd.f32 %v2930, %v3058
        %v3087 = vadd.f32 %v2931, %v3060
        %v3088 = vadd.f32 %v2932, %v3062
        %v3089 = vmul.f32 %v3076, 1.442695
        %v3090 = vpow.pop %v3089
        %v3091 = vmul.f32 %v3077, 1.442695
        %v3092 = vpow.pop %v3091
        %v3093 = vmul.f32 %v3078, 1.442695
        %v3094 = vpow.pop %v3093
        %v3095 = vmul.f32 %v3079, 1.442695
        %v3096 = vpow.pop %v3095
        %v3097 = vmul.f32 %v3080, 1.442695
        %v3098 = vpow.pop %v3097
        %v3099 = vmul.f32 %v3081, 1.442695
        %v3100 = vpow.pop %v3099
        %v3101 = vmul.f32 %v3082, 1.442695
        %v3102 = vpow.pop %v3101
        %v3103 = vmul.f32 %v3083, 1.442695
        %v3104 = vpow.pop %v3103
        %v3105 = vmul.f32 %v3084, 1.442695
        %v3106 = vpow.pop %v3105
        %v3107 = vmul.f32 %v3085, 1.442695
        %v3108 = vpow.pop %v3107
        %v3109 = vmul.f32 %v3086, 1.442695
        %v3110 = vpow.pop %v3109
        %v3111 = vmul.f32 %v3087, 1.442695
        %v3112 = vpow.pop %v3111
        %v3113 = vmul.f32 %v3088, 1.442695
        %v3114 = vpow.pop %v3113
        %v3115 = vmax.f32 %v2920, 0.0
        %v3116 = vmax.f32 %v2921, 0.0
        %v3117 = vmax.f32 %v2922, 0.0
        %v3118 = vmax.f32 %v2923, 0.0
        %v3119 = vmax.f32 %v2924, 0.0
        %v3120 = vmax.f32 %v2925, 0.0
        %v3121 = vmax.f32 %v2926, 0.0
        %v3122 = vmax.f32 %v2927, 0.0
        %v3123 = vmax.f32 %v2928, 0.0
        %v3124 = vmax.f32 %v2929, 0.0
        %v3125 = vmax.f32 %v2930, 0.0
        %v3126 = vmax.f32 %v2931, 0.0
        %v3127 = vmax.f32 %v2932, 0.0
        %v3128 = vadd.f32 %v3115, 1.0
        %v3129 = vadd.f32 %v3116, 1.0
        %v3130 = vadd.f32 %v3117, 1.0
        %v3131 = vadd.f32 %v3118, 1.0
        %v3132 = vadd.f32 %v3119, 1.0
        %v3133 = vadd.f32 %v3120, 1.0
        %v3134 = vadd.f32 %v3121, 1.0
        %v3135 = vadd.f32 %v3122, 1.0
        %v3136 = vadd.f32 %v3123, 1.0
        %v3137 = vadd.f32 %v3124, 1.0
        %v3138 = vadd.f32 %v3125, 1.0
        %v3139 = vadd.f32 %v3126, 1.0
        %v3140 = vadd.f32 %v3127, 1.0
        %v3141 = vadd.f32 %v3128, 1e-08
        %v3142 = vadd.f32 %v3129, 1e-08
        %v3143 = vadd.f32 %v3130, 1e-08
        %v3144 = vadd.f32 %v3131, 1e-08
        %v3145 = vadd.f32 %v3132, 1e-08
        %v3146 = vadd.f32 %v3133, 1e-08
        %v3147 = vadd.f32 %v3134, 1e-08
        %v3148 = vadd.f32 %v3135, 1e-08
        %v3149 = vadd.f32 %v3136, 1e-08
        %v3150 = vadd.f32 %v3137, 1e-08
        %v3151 = vadd.f32 %v3138, 1e-08
        %v3152 = vadd.f32 %v3139, 1e-08
        %v3153 = vadd.f32 %v3140, 1e-08
        %3167 = vrot.lane.b32.xlu0 %v3141, 96
        %v3168 = vpop.permute.xlu0 %3167
        %3169 = vrot.lane.b32.xlu0 %v3142, 96
        %v3170 = vpop.permute.xlu0 %3169
        %3171 = vrot.lane.b32.xlu0 %v3143, 96
        %v3172 = vpop.permute.xlu0 %3171
        %3173 = vrot.lane.b32.xlu0 %v3144, 96
        %v3174 = vpop.permute.xlu0 %3173
        %3175 = vrot.lane.b32.xlu0 %v3145, 96
        %v3176 = vpop.permute.xlu0 %3175
        %3177 = vrot.lane.b32.xlu0 %v3146, 96
        %v3178 = vpop.permute.xlu0 %3177
        %3179 = vrot.lane.b32.xlu0 %v3147, 96
        %v3180 = vpop.permute.xlu0 %3179
        %3181 = vrot.lane.b32.xlu0 %v3148, 96
        %v3182 = vpop.permute.xlu0 %3181
        %3183 = vrot.lane.b32.xlu0 %v3149, 96
        %v3184 = vpop.permute.xlu0 %3183
        %3185 = vrot.lane.b32.xlu0 %v3150, 96
        %v3186 = vpop.permute.xlu0 %3185
        %3187 = vrot.lane.b32.xlu0 %v3151, 96
        %v3188 = vpop.permute.xlu0 %3187
        %3189 = vrot.lane.b32.xlu0 %v3152, 96
        %v3190 = vpop.permute.xlu0 %3189
        %3191 = vrot.lane.b32.xlu0 %v3153, 96
        %v3192 = vpop.permute.xlu0 %3191
        %v3206 = vmul.f32 %v3090, %v3168
        %v3207 = vmul.f32 %v3092, %v3170
        %v3208 = vmul.f32 %v3094, %v3172
        %v3209 = vmul.f32 %v3096, %v3174
        %v3210 = vmul.f32 %v3098, %v3176
        %v3211 = vmul.f32 %v3100, %v3178
        %v3212 = vmul.f32 %v3102, %v3180
        %v3213 = vmul.f32 %v3104, %v3182
        %v3214 = vmul.f32 %v3106, %v3184
        %v3215 = vmul.f32 %v3108, %v3186
        %v3216 = vmul.f32 %v3110, %v3188
        %v3217 = vmul.f32 %v3112, %v3190
        %v3218 = vmul.f32 %v3114, %v3192
        %v3219 = vxor.u32 %v2920, 2147483648
        %v3220 = vxor.u32 %v2921, 2147483648
        %v3221 = vxor.u32 %v2922, 2147483648
        %v3222 = vxor.u32 %v2923, 2147483648
        %v3223 = vxor.u32 %v2924, 2147483648
        %v3224 = vxor.u32 %v2925, 2147483648
        %v3225 = vxor.u32 %v2926, 2147483648
        %v3226 = vxor.u32 %v2927, 2147483648
        %v3227 = vxor.u32 %v2928, 2147483648
        %v3228 = vxor.u32 %v2929, 2147483648
        %v3229 = vxor.u32 %v2930, 2147483648
        %v3230 = vxor.u32 %v2931, 2147483648
        %v3231 = vxor.u32 %v2932, 2147483648
        %v3232 = vmul.f32 %v3219, 1.442695
        %v3233 = vpow.pop %v3232
        %v3234 = vmul.f32 %v3220, 1.442695
        %v3235 = vpow.pop %v3234
        %v3236 = vmul.f32 %v3221, 1.442695
        %v3237 = vpow.pop %v3236
        %v3238 = vmul.f32 %v3222, 1.442695
        %v3239 = vpow.pop %v3238
        %v3240 = vmul.f32 %v3223, 1.442695
        %v3241 = vpow.pop %v3240
        %v3242 = vmul.f32 %v3224, 1.442695
        %v3243 = vpow.pop %v3242
        %v3244 = vmul.f32 %v3225, 1.442695
        %v3245 = vpow.pop %v3244
        %v3246 = vmul.f32 %v3226, 1.442695
        %v3247 = vpow.pop %v3246
        %v3248 = vmul.f32 %v3227, 1.442695
        %v3249 = vpow.pop %v3248
        %v3250 = vmul.f32 %v3228, 1.442695
        %v3251 = vpow.pop %v3250
        %v3252 = vmul.f32 %v3229, 1.442695
        %v3253 = vpow.pop %v3252
        %v3254 = vmul.f32 %v3230, 1.442695
        %v3255 = vpow.pop %v3254
        %v3256 = vmul.f32 %v3231, 1.442695
        %v3257 = vpow.pop %v3256
        %v3258 = vadd.f32 %v3233, 1.0
        %v3259 = vadd.f32 %v3235, 1.0
        %v3260 = vadd.f32 %v3237, 1.0
        %v3261 = vadd.f32 %v3239, 1.0
        %v3262 = vadd.f32 %v3241, 1.0
        %v3263 = vadd.f32 %v3243, 1.0
        %v3264 = vadd.f32 %v3245, 1.0
        %v3265 = vadd.f32 %v3247, 1.0
        %v3266 = vadd.f32 %v3249, 1.0
        %v3267 = vadd.f32 %v3251, 1.0
        %v3268 = vadd.f32 %v3253, 1.0
        %v3269 = vadd.f32 %v3255, 1.0
        %v3270 = vadd.f32 %v3257, 1.0
        %v3271 = vrcp.pop %v3258
        %v3272 = vmul.f32 1.0, %v3271
        %v3273 = vrcp.pop %v3259
        %v3274 = vmul.f32 1.0, %v3273
        %v3275 = vrcp.pop %v3260
        %v3276 = vmul.f32 1.0, %v3275
        %v3277 = vrcp.pop %v3261
        %v3278 = vmul.f32 1.0, %v3277
        %v3279 = vrcp.pop %v3262
        %v3280 = vmul.f32 1.0, %v3279
        %v3281 = vrcp.pop %v3263
        %v3282 = vmul.f32 1.0, %v3281
        %v3283 = vrcp.pop %v3264
        %v3284 = vmul.f32 1.0, %v3283
        %v3285 = vrcp.pop %v3265
        %v3286 = vmul.f32 1.0, %v3285
        %v3287 = vrcp.pop %v3266
        %v3288 = vmul.f32 1.0, %v3287
        %v3289 = vrcp.pop %v3267
        %v3290 = vmul.f32 1.0, %v3289
        %v3291 = vrcp.pop %v3268
        %v3292 = vmul.f32 1.0, %v3291
        %v3293 = vrcp.pop %v3269
        %v3294 = vmul.f32 1.0, %v3293
        %v3295 = vrcp.pop %v3270
        %v3296 = vmul.f32 1.0, %v3295
        %v3297 = vsub.f32 1.0, %v3272
        %v3298 = vsub.f32 1.0, %v3274
        %v3299 = vsub.f32 1.0, %v3276
        %v3300 = vsub.f32 1.0, %v3278
        %v3301 = vsub.f32 1.0, %v3280
        %v3302 = vsub.f32 1.0, %v3282
        %v3303 = vsub.f32 1.0, %v3284
        %v3304 = vsub.f32 1.0, %v3286
        %v3305 = vsub.f32 1.0, %v3288
        %v3306 = vsub.f32 1.0, %v3290
        %v3307 = vsub.f32 1.0, %v3292
        %v3308 = vsub.f32 1.0, %v3294
        %v3309 = vsub.f32 1.0, %v3296
        %3323 = vrot.lane.b32.xlu0 %v3206, 48
        %v3324 = vpop.permute.xlu0 %3323
        %3325 = vrot.lane.b32.xlu0 %v3207, 48
        %v3326 = vpop.permute.xlu0 %3325
        %3327 = vrot.lane.b32.xlu0 %v3208, 48
        %v3328 = vpop.permute.xlu0 %3327
        %3329 = vrot.lane.b32.xlu0 %v3209, 48
        %v3330 = vpop.permute.xlu0 %3329
        %3331 = vrot.lane.b32.xlu0 %v3210, 48
        %v3332 = vpop.permute.xlu0 %3331
        %3333 = vrot.lane.b32.xlu0 %v3211, 48
        %v3334 = vpop.permute.xlu0 %3333
        %3335 = vrot.lane.b32.xlu0 %v3212, 48
        %v3336 = vpop.permute.xlu0 %3335
        %3337 = vrot.lane.b32.xlu0 %v3213, 48
        %v3338 = vpop.permute.xlu0 %3337
        %3339 = vrot.lane.b32.xlu0 %v3214, 48
        %v3340 = vpop.permute.xlu0 %3339
        %3341 = vrot.lane.b32.xlu0 %v3215, 48
        %v3342 = vpop.permute.xlu0 %3341
        %3343 = vrot.lane.b32.xlu0 %v3216, 48
        %v3344 = vpop.permute.xlu0 %3343
        %3345 = vrot.lane.b32.xlu0 %v3217, 48
        %v3346 = vpop.permute.xlu0 %3345
        %3347 = vrot.lane.b32.xlu0 %v3218, 48
        %v3348 = vpop.permute.xlu0 %3347
        %v3362 = vmul.f32 %v3297, %v3324
        %v3363 = vmul.f32 %v3298, %v3326
        %v3364 = vmul.f32 %v3299, %v3328
        %v3365 = vmul.f32 %v3300, %v3330
        %v3366 = vmul.f32 %v3301, %v3332
        %v3367 = vmul.f32 %v3302, %v3334
        %v3368 = vmul.f32 %v3303, %v3336
        %v3369 = vmul.f32 %v3304, %v3338
        %v3370 = vmul.f32 %v3305, %v3340
        %v3371 = vmul.f32 %v3306, %v3342
        %v3372 = vmul.f32 %v3307, %v3344
        %v3373 = vmul.f32 %v3308, %v3346
        %v3374 = vmul.f32 %v3309, %v3348
        %v3375 = vand.u32 2147483647, %v3362
        %v3376 = vand.u32 2147483647, %v3363
        %v3377 = vand.u32 2147483647, %v3364
        %v3378 = vand.u32 2147483647, %v3365
        %v3379 = vand.u32 2147483647, %v3366
        %v3380 = vand.u32 2147483647, %v3367
        %v3381 = vand.u32 2147483647, %v3368
        %v3382 = vand.u32 2147483647, %v3369
        %v3383 = vand.u32 2147483647, %v3370
        %v3384 = vand.u32 2147483647, %v3371
        %v3385 = vand.u32 2147483647, %v3372
        %v3386 = vand.u32 2147483647, %v3373
        %v3387 = vand.u32 2147483647, %v3374
        %3401 = vrot.lane.b32.xlu0 %v3375, 80
        %v3402 = vpop.permute.xlu0 %3401
        %3403 = vrot.lane.b32.xlu0 %v3376, 80
        %v3404 = vpop.permute.xlu0 %3403
        %3405 = vrot.lane.b32.xlu0 %v3377, 80
        %v3406 = vpop.permute.xlu0 %3405
        %3407 = vrot.lane.b32.xlu0 %v3378, 80
        %v3408 = vpop.permute.xlu0 %3407
        %3409 = vrot.lane.b32.xlu0 %v3379, 80
        %v3410 = vpop.permute.xlu0 %3409
        %3411 = vrot.lane.b32.xlu0 %v3380, 80
        %v3412 = vpop.permute.xlu0 %3411
        %3413 = vrot.lane.b32.xlu0 %v3381, 80
        %v3414 = vpop.permute.xlu0 %3413
        %3415 = vrot.lane.b32.xlu0 %v3382, 80
        %v3416 = vpop.permute.xlu0 %3415
        %3417 = vrot.lane.b32.xlu0 %v3383, 80
        %v3418 = vpop.permute.xlu0 %3417
        %3419 = vrot.lane.b32.xlu0 %v3384, 80
        %v3420 = vpop.permute.xlu0 %3419
        %3421 = vrot.lane.b32.xlu0 %v3385, 80
        %v3422 = vpop.permute.xlu0 %3421
        %3423 = vrot.lane.b32.xlu0 %v3386, 80
        %v3424 = vpop.permute.xlu0 %3423
        %3425 = vrot.lane.b32.xlu0 %v3387, 80
        %v3426 = vpop.permute.xlu0 %3425
        %vm3440 = vcmask 130048
        %v3441 = vsel %vm3440, %v3402, 0.0
        %3442 = vadd.xlane.f32.xlu0 %v3441
        %v3443 = vpop.xlane.xlu0 %3442
        %v3444 = vsel %vm3440, %v3404, 0.0
        %3445 = vadd.xlane.f32.xlu0 %v3444
        %v3446 = vpop.xlane.xlu0 %3445
        %v3447 = vsel %vm3440, %v3406, 0.0
        %3448 = vadd.xlane.f32.xlu0 %v3447
        %v3449 = vpop.xlane.xlu0 %3448
        %v3450 = vsel %vm3440, %v3408, 0.0
        %3451 = vadd.xlane.f32.xlu0 %v3450
        %v3452 = vpop.xlane.xlu0 %3451
        %v3453 = vsel %vm3440, %v3410, 0.0
        %3454 = vadd.xlane.f32.xlu0 %v3453
        %v3455 = vpop.xlane.xlu0 %3454
        %v3456 = vsel %vm3440, %v3412, 0.0
        %3457 = vadd.xlane.f32.xlu0 %v3456
        %v3458 = vpop.xlane.xlu0 %3457
        %v3459 = vsel %vm3440, %v3414, 0.0
        %3460 = vadd.xlane.f32.xlu0 %v3459
        %v3461 = vpop.xlane.xlu0 %3460
        %v3462 = vsel %vm3440, %v3416, 0.0
        %3463 = vadd.xlane.f32.xlu0 %v3462
        %v3464 = vpop.xlane.xlu0 %3463
        %v3465 = vsel %vm3440, %v3418, 0.0
        %3466 = vadd.xlane.f32.xlu0 %v3465
        %v3467 = vpop.xlane.xlu0 %3466
        %v3468 = vsel %vm3440, %v3420, 0.0
        %3469 = vadd.xlane.f32.xlu0 %v3468
        %v3470 = vpop.xlane.xlu0 %3469
        %v3471 = vsel %vm3440, %v3422, 0.0
        %3472 = vadd.xlane.f32.xlu0 %v3471
        %v3473 = vpop.xlane.xlu0 %3472
        %v3474 = vsel %vm3440, %v3424, 0.0
        %3475 = vadd.xlane.f32.xlu0 %v3474
        %v3476 = vpop.xlane.xlu0 %3475
        %v3477 = vsel %vm3440, %v3426, 0.0
        %3478 = vadd.xlane.f32.xlu0 %v3477
        %v3479 = vpop.xlane.xlu0 %3478
        %v3480 = vmax.f32 %v3443, 1e-12
        %v3481 = vmax.f32 %v3446, 1e-12
        %v3482 = vmax.f32 %v3449, 1e-12
        %v3483 = vmax.f32 %v3452, 1e-12
        %v3484 = vmax.f32 %v3455, 1e-12
        %v3485 = vmax.f32 %v3458, 1e-12
        %v3486 = vmax.f32 %v3461, 1e-12
        %v3487 = vmax.f32 %v3464, 1e-12
        %v3488 = vmax.f32 %v3467, 1e-12
        %v3489 = vmax.f32 %v3470, 1e-12
        %v3490 = vmax.f32 %v3473, 1e-12
        %v3491 = vmax.f32 %v3476, 1e-12
        %v3492 = vmax.f32 %v3479, 1e-12
        %v3493 = vrcp.pop %v3480
        %v3494 = vmul.f32 %v3362, %v3493
        %v3495 = vrcp.pop %v3481
        %v3496 = vmul.f32 %v3363, %v3495
        %v3497 = vrcp.pop %v3482
        %v3498 = vmul.f32 %v3364, %v3497
        %v3499 = vrcp.pop %v3483
        %v3500 = vmul.f32 %v3365, %v3499
        %v3501 = vrcp.pop %v3484
        %v3502 = vmul.f32 %v3366, %v3501
        %v3503 = vrcp.pop %v3485
        %v3504 = vmul.f32 %v3367, %v3503
        %v3505 = vrcp.pop %v3486
        %v3506 = vmul.f32 %v3368, %v3505
        %v3507 = vrcp.pop %v3487
        %v3508 = vmul.f32 %v3369, %v3507
        %v3509 = vrcp.pop %v3488
        %v3510 = vmul.f32 %v3370, %v3509
        %v3511 = vrcp.pop %v3489
        %v3512 = vmul.f32 %v3371, %v3511
        %v3513 = vrcp.pop %v3490
        %v3514 = vmul.f32 %v3372, %v3513
        %v3515 = vrcp.pop %v3491
        %v3516 = vmul.f32 %v3373, %v3515
        %v3517 = vrcp.pop %v3492
        %v3518 = vmul.f32 %v3374, %v3517
        %3532 = vrot.lane.b32.xlu0 %v3090, 32
        %v3533 = vpop.permute.xlu0 %3532
        %3534 = vrot.lane.b32.xlu0 %v3092, 32
        %v3535 = vpop.permute.xlu0 %3534
        %3536 = vrot.lane.b32.xlu0 %v3094, 32
        %v3537 = vpop.permute.xlu0 %3536
        %3538 = vrot.lane.b32.xlu0 %v3096, 32
        %v3539 = vpop.permute.xlu0 %3538
        %3540 = vrot.lane.b32.xlu0 %v3098, 32
        %v3541 = vpop.permute.xlu0 %3540
        %3542 = vrot.lane.b32.xlu0 %v3100, 32
        %v3543 = vpop.permute.xlu0 %3542
        %3544 = vrot.lane.b32.xlu0 %v3102, 32
        %v3545 = vpop.permute.xlu0 %3544
        %3546 = vrot.lane.b32.xlu0 %v3104, 32
        %v3547 = vpop.permute.xlu0 %3546
        %3548 = vrot.lane.b32.xlu0 %v3106, 32
        %v3549 = vpop.permute.xlu0 %3548
        %3550 = vrot.lane.b32.xlu0 %v3108, 32
        %v3551 = vpop.permute.xlu0 %3550
        %3552 = vrot.lane.b32.xlu0 %v3110, 32
        %v3553 = vpop.permute.xlu0 %3552
        %3554 = vrot.lane.b32.xlu0 %v3112, 32
        %v3555 = vpop.permute.xlu0 %3554
        %3556 = vrot.lane.b32.xlu0 %v3114, 32
        %v3557 = vpop.permute.xlu0 %3556
        %3571 = vrot.lane.b32.xlu0 %v3141, 16
        %v3572 = vpop.permute.xlu0 %3571
        %3573 = vrot.lane.b32.xlu0 %v3142, 16
        %v3574 = vpop.permute.xlu0 %3573
        %3575 = vrot.lane.b32.xlu0 %v3143, 16
        %v3576 = vpop.permute.xlu0 %3575
        %3577 = vrot.lane.b32.xlu0 %v3144, 16
        %v3578 = vpop.permute.xlu0 %3577
        %3579 = vrot.lane.b32.xlu0 %v3145, 16
        %v3580 = vpop.permute.xlu0 %3579
        %3581 = vrot.lane.b32.xlu0 %v3146, 16
        %v3582 = vpop.permute.xlu0 %3581
        %3583 = vrot.lane.b32.xlu0 %v3147, 16
        %v3584 = vpop.permute.xlu0 %3583
        %3585 = vrot.lane.b32.xlu0 %v3148, 16
        %v3586 = vpop.permute.xlu0 %3585
        %3587 = vrot.lane.b32.xlu0 %v3149, 16
        %v3588 = vpop.permute.xlu0 %3587
        %3589 = vrot.lane.b32.xlu0 %v3150, 16
        %v3590 = vpop.permute.xlu0 %3589
        %3591 = vrot.lane.b32.xlu0 %v3151, 16
        %v3592 = vpop.permute.xlu0 %3591
        %3593 = vrot.lane.b32.xlu0 %v3152, 16
        %v3594 = vpop.permute.xlu0 %3593
        %3595 = vrot.lane.b32.xlu0 %v3153, 16
        %v3596 = vpop.permute.xlu0 %3595
        %3610 = vrot.lane.b32.xlu0 %v3206, 64
        %v3611 = vpop.permute.xlu0 %3610
        %3612 = vrot.lane.b32.xlu0 %v3207, 64
        %v3613 = vpop.permute.xlu0 %3612
        %3614 = vrot.lane.b32.xlu0 %v3208, 64
        %v3615 = vpop.permute.xlu0 %3614
        %3616 = vrot.lane.b32.xlu0 %v3209, 64
        %v3617 = vpop.permute.xlu0 %3616
        %3618 = vrot.lane.b32.xlu0 %v3210, 64
        %v3619 = vpop.permute.xlu0 %3618
        %3620 = vrot.lane.b32.xlu0 %v3211, 64
        %v3621 = vpop.permute.xlu0 %3620
        %3622 = vrot.lane.b32.xlu0 %v3212, 64
        %v3623 = vpop.permute.xlu0 %3622
        %3624 = vrot.lane.b32.xlu0 %v3213, 64
        %v3625 = vpop.permute.xlu0 %3624
        %3626 = vrot.lane.b32.xlu0 %v3214, 64
        %v3627 = vpop.permute.xlu0 %3626
        %3628 = vrot.lane.b32.xlu0 %v3215, 64
        %v3629 = vpop.permute.xlu0 %3628
        %3630 = vrot.lane.b32.xlu0 %v3216, 64
        %v3631 = vpop.permute.xlu0 %3630
        %3632 = vrot.lane.b32.xlu0 %v3217, 64
        %v3633 = vpop.permute.xlu0 %3632
        %3634 = vrot.lane.b32.xlu0 %v3218, 64
        %v3635 = vpop.permute.xlu0 %3634
        %3662 = vrot.lane.b32.xlu0 %v2920, 32
        %v3663 = vpop.permute.xlu0 %3662
        %3664 = vrot.lane.b32.xlu0 %v2921, 32
        %v3665 = vpop.permute.xlu0 %3664
        %3666 = vrot.lane.b32.xlu0 %v2922, 32
        %v3667 = vpop.permute.xlu0 %3666
        %3668 = vrot.lane.b32.xlu0 %v2923, 32
        %v3669 = vpop.permute.xlu0 %3668
        %3670 = vrot.lane.b32.xlu0 %v2924, 32
        %v3671 = vpop.permute.xlu0 %3670
        %3672 = vrot.lane.b32.xlu0 %v2925, 32
        %v3673 = vpop.permute.xlu0 %3672
        %3674 = vrot.lane.b32.xlu0 %v2926, 32
        %v3675 = vpop.permute.xlu0 %3674
        %3676 = vrot.lane.b32.xlu0 %v2927, 32
        %v3677 = vpop.permute.xlu0 %3676
        %3678 = vrot.lane.b32.xlu0 %v2928, 32
        %v3679 = vpop.permute.xlu0 %3678
        %3680 = vrot.lane.b32.xlu0 %v2929, 32
        %v3681 = vpop.permute.xlu0 %3680
        %3682 = vrot.lane.b32.xlu0 %v2930, 32
        %v3683 = vpop.permute.xlu0 %3682
        %3684 = vrot.lane.b32.xlu0 %v2931, 32
        %v3685 = vpop.permute.xlu0 %3684
        %3686 = vrot.lane.b32.xlu0 %v2932, 32
        %v3687 = vpop.permute.xlu0 %3686
        %3714 = vrot.lane.b32.xlu0 %v3494, 48
        %v3715 = vpop.permute.xlu0 %3714
        %3716 = vrot.lane.b32.xlu0 %v3496, 48
        %v3717 = vpop.permute.xlu0 %3716
        %3718 = vrot.lane.b32.xlu0 %v3498, 48
        %v3719 = vpop.permute.xlu0 %3718
        %3720 = vrot.lane.b32.xlu0 %v3500, 48
        %v3721 = vpop.permute.xlu0 %3720
        %3722 = vrot.lane.b32.xlu0 %v3502, 48
        %v3723 = vpop.permute.xlu0 %3722
        %3724 = vrot.lane.b32.xlu0 %v3504, 48
        %v3725 = vpop.permute.xlu0 %3724
        %3726 = vrot.lane.b32.xlu0 %v3506, 48
        %v3727 = vpop.permute.xlu0 %3726
        %3728 = vrot.lane.b32.xlu0 %v3508, 48
        %v3729 = vpop.permute.xlu0 %3728
        %3730 = vrot.lane.b32.xlu0 %v3510, 48
        %v3731 = vpop.permute.xlu0 %3730
        %3732 = vrot.lane.b32.xlu0 %v3512, 48
        %v3733 = vpop.permute.xlu0 %3732
        %3734 = vrot.lane.b32.xlu0 %v3514, 48
        %v3735 = vpop.permute.xlu0 %3734
        %3736 = vrot.lane.b32.xlu0 %v3516, 48
        %v3737 = vpop.permute.xlu0 %3736
        %3738 = vrot.lane.b32.xlu0 %v3518, 48
        %v3739 = vpop.permute.xlu0 %3738
        %3766 = vrot.lane.b32.xlu0 %v3076, 112
        %v3767 = vpop.permute.xlu0 %3766
        %3768 = vrot.lane.b32.xlu0 %v3077, 112
        %v3769 = vpop.permute.xlu0 %3768
        %3770 = vrot.lane.b32.xlu0 %v3078, 112
        %v3771 = vpop.permute.xlu0 %3770
        %3772 = vrot.lane.b32.xlu0 %v3079, 112
        %v3773 = vpop.permute.xlu0 %3772
        %3774 = vrot.lane.b32.xlu0 %v3080, 112
        %v3775 = vpop.permute.xlu0 %3774
        %3776 = vrot.lane.b32.xlu0 %v3081, 112
        %v3777 = vpop.permute.xlu0 %3776
        %3778 = vrot.lane.b32.xlu0 %v3082, 112
        %v3779 = vpop.permute.xlu0 %3778
        %3780 = vrot.lane.b32.xlu0 %v3083, 112
        %v3781 = vpop.permute.xlu0 %3780
        %3782 = vrot.lane.b32.xlu0 %v3084, 112
        %v3783 = vpop.permute.xlu0 %3782
        %3784 = vrot.lane.b32.xlu0 %v3085, 112
        %v3785 = vpop.permute.xlu0 %3784
        %3786 = vrot.lane.b32.xlu0 %v3086, 112
        %v3787 = vpop.permute.xlu0 %3786
        %3788 = vrot.lane.b32.xlu0 %v3087, 112
        %v3789 = vpop.permute.xlu0 %3788
        %3790 = vrot.lane.b32.xlu0 %v3088, 112
        %v3791 = vpop.permute.xlu0 %3790
        %v3805 = vsel %vm3440, %v2920, %v2934
        %v3806 = vsel %vm3440, %v2921, %v2936
        %v3807 = vsel %vm3440, %v2922, %v2938
        %v3808 = vsel %vm3440, %v2923, %v2940
        %v3809 = vsel %vm3440, %v2924, %v2942
        %v3810 = vsel %vm3440, %v2925, %v2944
        %v3811 = vsel %vm3440, %v2926, %v2946
        %v3812 = vsel %vm3440, %v2927, %v2948
        %v3813 = vsel %vm3440, %v2928, %v2950
        %v3814 = vsel %vm3440, %v2929, %v2952
        %v3815 = vsel %vm3440, %v2930, %v2954
        %v3816 = vsel %vm3440, %v2931, %v2956
        %v3817 = vsel %vm3440, %v2932, %v2958
        %v3818 = vsel %vm411, %v3805, %v3533
        %v3819 = vsel %vm411, %v3806, %v3535
        %v3820 = vsel %vm411, %v3807, %v3537
        %v3821 = vsel %vm411, %v3808, %v3539
        %v3822 = vsel %vm411, %v3809, %v3541
        %v3823 = vsel %vm411, %v3810, %v3543
        %v3824 = vsel %vm411, %v3811, %v3545
        %v3825 = vsel %vm411, %v3812, %v3547
        %v3826 = vsel %vm411, %v3813, %v3549
        %v3827 = vsel %vm411, %v3814, %v3551
        %v3828 = vsel %vm411, %v3815, %v3553
        %v3829 = vsel %vm411, %v3816, %v3555
        %v3830 = vsel %vm411, %v3817, %v3557
        %vm3831 = vcmask 392192
        %v3832 = vsel %vm3831, %v3818, %v3572
        %v3833 = vsel %vm3831, %v3819, %v3574
        %v3834 = vsel %vm3831, %v3820, %v3576
        %v3835 = vsel %vm3831, %v3821, %v3578
        %v3836 = vsel %vm3831, %v3822, %v3580
        %v3837 = vsel %vm3831, %v3823, %v3582
        %v3838 = vsel %vm3831, %v3824, %v3584
        %v3839 = vsel %vm3831, %v3825, %v3586
        %v3840 = vsel %vm3831, %v3826, %v3588
        %v3841 = vsel %vm3831, %v3827, %v3590
        %v3842 = vsel %vm3831, %v3828, %v3592
        %v3843 = vsel %vm3831, %v3829, %v3594
        %v3844 = vsel %vm3831, %v3830, %v3596
        %vm3845 = vcmask 523264
        %v3846 = vsel %vm3845, %v3832, %v3611
        %v3847 = vsel %vm3845, %v3833, %v3613
        %v3848 = vsel %vm3845, %v3834, %v3615
        %v3849 = vsel %vm3845, %v3835, %v3617
        %v3850 = vsel %vm3845, %v3836, %v3619
        %v3851 = vsel %vm3845, %v3837, %v3621
        %v3852 = vsel %vm3845, %v3838, %v3623
        %v3853 = vsel %vm3845, %v3839, %v3625
        %v3854 = vsel %vm3845, %v3840, %v3627
        %v3855 = vsel %vm3845, %v3841, %v3629
        %v3856 = vsel %vm3845, %v3842, %v3631
        %v3857 = vsel %vm3845, %v3843, %v3633
        %v3858 = vsel %vm3845, %v3844, %v3635
        %vm3859 = vcmask 654336
        %v3860 = vsel %vm3859, %v3846, %v3663
        %v3861 = vsel %vm3859, %v3847, %v3665
        %v3862 = vsel %vm3859, %v3848, %v3667
        %v3863 = vsel %vm3859, %v3849, %v3669
        %v3864 = vsel %vm3859, %v3850, %v3671
        %v3865 = vsel %vm3859, %v3851, %v3673
        %v3866 = vsel %vm3859, %v3852, %v3675
        %v3867 = vsel %vm3859, %v3853, %v3677
        %v3868 = vsel %vm3859, %v3854, %v3679
        %v3869 = vsel %vm3859, %v3855, %v3681
        %v3870 = vsel %vm3859, %v3856, %v3683
        %v3871 = vsel %vm3859, %v3857, %v3685
        %v3872 = vsel %vm3859, %v3858, %v3687
        %vm3873 = vcmask 785408
        %v3874 = vsel %vm3873, %v3860, %v3715
        %v3875 = vsel %vm3873, %v3861, %v3717
        %v3876 = vsel %vm3873, %v3862, %v3719
        %v3877 = vsel %vm3873, %v3863, %v3721
        %v3878 = vsel %vm3873, %v3864, %v3723
        %v3879 = vsel %vm3873, %v3865, %v3725
        %v3880 = vsel %vm3873, %v3866, %v3727
        %v3881 = vsel %vm3873, %v3867, %v3729
        %v3882 = vsel %vm3873, %v3868, %v3731
        %v3883 = vsel %vm3873, %v3869, %v3733
        %v3884 = vsel %vm3873, %v3870, %v3735
        %v3885 = vsel %vm3873, %v3871, %v3737
        %v3886 = vsel %vm3873, %v3872, %v3739
        %vm3887 = vcmask 916480
        %v3888 = vsel %vm3887, %v3874, %v3767
        %v3889 = vsel %vm3887, %v3875, %v3769
        %v3890 = vsel %vm3887, %v3876, %v3771
        %v3891 = vsel %vm3887, %v3877, %v3773
        %v3892 = vsel %vm3887, %v3878, %v3775
        %v3893 = vsel %vm3887, %v3879, %v3777
        %v3894 = vsel %vm3887, %v3880, %v3779
        %v3895 = vsel %vm3887, %v3881, %v3781
        %v3896 = vsel %vm3887, %v3882, %v3783
        %v3897 = vsel %vm3887, %v3883, %v3785
        %v3898 = vsel %vm3887, %v3884, %v3787
        %v3899 = vsel %vm3887, %v3885, %v3789
        %v3900 = vsel %vm3887, %v3886, %v3791
        %3901 = vst [vmem:[%s315] sm:$0xff] %v3888
        %3902 = vst [vmem:[%s315 + $0x8] sm:$0xff] %v3889
        %3903 = vst [vmem:[%s315 + $0x10] sm:$0xff] %v3890
        %3904 = vst [vmem:[%s315 + $0x18] sm:$0xff] %v3891
        %3905 = vst [vmem:[%s315 + $0x20] sm:$0xff] %v3892
        %3906 = vst [vmem:[%s315 + $0x28] sm:$0xff] %v3893
        %3907 = vst [vmem:[%s315 + $0x30] sm:$0xff] %v3894
        %3908 = vst [vmem:[%s315 + $0x38] sm:$0xff] %v3895
        %3909 = vst [vmem:[%s315 + $0x40] sm:$0xff] %v3896
        %3910 = vst [vmem:[%s315 + $0x48] sm:$0xff] %v3897
        %3911 = vst [vmem:[%s315 + $0x50] sm:$0xff] %v3898
        %3912 = vst [vmem:[%s315 + $0x58] sm:$0xff] %v3899
        %3913 = vst [vmem:[%s315 + $0x60] sm:$0xff] %v3900
        %s3914 = sand.u32 %s208, 1
        %s3915 = scalar_lea.sflag [#allocation3], %s3914
        %s3916 = sand.u32 %s208, 1
        %s3917 = smul.addr %s3916, 104
        %s3918 = scalar_lea.vmem [#allocation2], %s3917
        // Predicated region
        $region53: #{tpu_custom_call.1} parent=51 // pred_check
          %p3919 = pneg %p218
        $region54: #{tpu_custom_call.1} parent=51 // pred_check_branch
          %3921 = sbr.rel (%p3919) target = $region56
        $region55: #{tpu_custom_call.1} parent=51 // pred_region
          %s3922 = smul.u32 13, %s22
          %s3924 = ssub.s32 1664, 1664
          %3925 = vsyncadd %s3915, %s3924
          %s3926 = smul.addr %s3922, 128
          %s3927 = scalar_lea.hbm %s8, %s3926
          %s3928 = sshll.u32 %s3918, 4
          %s3929 = int_to_ptr.vmem [resolvable:$true] %s3928
          %3934 = dma.vmem_to_hbm [thread:$0]  %s3929, 1664, %s3927, %s3915, 128, 128, 8
        $region56: #{tpu_custom_call.1} parent=51 // pred_fallthru
          _
      $region52: #{tpu_custom_call.1} parent=5 // pred_fallthru
        _
      %p3935 = scmp.le.s32.totalorder 2, %s17
      // Predicated region
      $region57: #{tpu_custom_call.1} parent=5 // pred_check
        %p3936 = pneg %p3935
      $region58: #{tpu_custom_call.1} parent=5 // pred_check_branch
        %3938 = sbr.rel (%p3936) target = $region60
      $region59: #{tpu_custom_call.1} parent=5 // pred_region
        %s3939 = ssub.s32 %s17, 2
        // Predicated region
        $region61: #{tpu_custom_call.1} parent=59 // pred_check
          %p3940 = pneg %p224
        $region62: #{tpu_custom_call.1} parent=59 // pred_check_branch
          %3942 = sbr.rel (%p3940) target = $region64
        $region63: #{tpu_custom_call.1} parent=59 // pred_region
          %s3943 = sand.u32 %s209, 1
          %s3944 = scalar_lea.sflag [#allocation3], %s3943
          %s3945 = sand.u32 %s209, 1
          %s3946 = smul.addr %s3945, 104
          %s3947 = scalar_lea.vmem [#allocation2], %s3946
          %3948 = dma.done %s3944, 1664
        $region64: #{tpu_custom_call.1} parent=59 // pred_fallthru
          _
      $region60: #{tpu_custom_call.1} parent=5 // pred_fallthru
        _
    $region6: #{tpu_custom_call.1} parent=1 // loop_footer
      %s21 = sadd.s32 1, %s17
    $region7: #{tpu_custom_call.1} parent=1 // loop_footer_branch
      %16 = sbr.rel target = $region3
    $region8: #{tpu_custom_call.1} parent=1 // loop_exit
      _
    %3949 = vsyncpa [#allocation3], 1
    %s3950 = scalar_lea.sflag [#allocation3], 1
    %3951 = vsyncpa %s3950, 1

</llo_original>
